<compile_context>
chip_gen: v6e
topology: v6e:2x2x1
jax: 0.10.0
libtpu: 0.0.40
codegen_flags: <defaults>
</compile_context>

<pallas_src>
import functools
import math

import jax
import jax.numpy as jnp
from jax.experimental import pallas as pl
from jax.experimental.pallas import tpu as pltpu


def _round_up(x, m):
    return (x + m - 1) // m * m


def _quantize_fixed(x, bits, frac_bits):
    """Signed fixed-point quantization Q(bits, frac) -> integer code (kept in f32)."""
    scale = 2.0 ** frac_bits
    qmin = -(2.0 ** (bits - 1))
    qmax = 2.0 ** (bits - 1) - 1.0
    return jnp.clip(jnp.round(x.astype(jnp.float32) * scale), qmin, qmax)


def _split_hi_lo(q):
    """Exact split q = 256*hi + lo, hi in [-128,127], lo in [0,255] (bf16-exact)."""
    hi = jnp.floor(q * (1.0 / 256.0))
    lo = q - 256.0 * hi
    return hi, lo


def _mvm_kernel(x_ref, w_hi_ref, w_lo_ref, o_ref, acc_ref, *,
                tk, w_resident, post_scale, qmin, qmax):
    """Fixed-point GEMM tile.

    int16 patch tile is split in-kernel into exact bf16 hi/lo planes; weight hi/lo
    planes are resident bf16.  qx*qw = 65536*hx*hw + 256*(hx*lw + lx*hw) + lx*lw,
    i.e. 4 single-pass bf16 MXU matmuls with f32 accumulation over the K grid
    axis, then a Q(acm) saturate/round epilogue emitted as the int16 carrier.
    """
    k = pl.program_id(2)

    @pl.when(k == 0)
    def _():
        acc_ref[...] = jnp.zeros_like(acc_ref)

    # int16 -> exact bf16 hi/lo planes (all steps exact in f32: power-of-two
    # scaling of small integers, floor, and values in [-128, 255]).
    x = x_ref[...].astype(jnp.float32)
    x_hi = jnp.floor(x * (1.0 / 256.0))
    x_lo = (x - 256.0 * x_hi).astype(jnp.bfloat16)
    x_hi = x_hi.astype(jnp.bfloat16)

    if w_resident:
        # Weight block holds the full K_pad; slice the current reduction band.
        koff = pl.multiple_of(k * tk, 128)
        w_hi = w_hi_ref[pl.ds(koff, tk), :]
        w_lo = w_lo_ref[pl.ds(koff, tk), :]
    else:
        w_hi = w_hi_ref[...]
        w_lo = w_lo_ref[...]

    dot = functools.partial(jnp.dot, preferred_element_type=jnp.float32)
    acc_ref[...] += (65536.0 * dot(x_hi, w_hi)
                     + 256.0 * (dot(x_hi, w_lo) + dot(x_lo, w_hi))
                     + dot(x_lo, w_lo))

    @pl.when(k == pl.num_programs(2) - 1)
    def _():
        # acc holds sum(qx*qw); post_scale = 2^(acm_frac - in_frac - w_frac),
        # so this reproduces clip(round(float_acc * 2^acm_frac)).
        q = jnp.clip(jnp.round(acc_ref[...] * post_scale), qmin, qmax)
        o_ref[...] = q.astype(o_ref.dtype)          # exact int16 Q(acm) carrier


def conv2d_mvm_forward(
    x,
    weight,
    bias=None,
    stride=(1, 1),
    padding=(0, 0),
    weight_bits=16,
    weight_bit_frac=-1,
    input_bits=16,
    input_bit_frac=-1,
    acm_bits=16,
    acm_bit_frac=-1,
):
    if weight_bit_frac == -1:
        weight_bit_frac = weight_bits // 4 * 3
    if input_bit_frac == -1:
        input_bit_frac = input_bits // 4 * 3
    if acm_bit_frac == -1:
        acm_bit_frac = acm_bits // 4 * 3

    B, Cin, H, W = x.shape
    Cout, _, KH, KW = weight.shape
    sh, sw = stride
    ph, pw = padding
    OH = (H + 2 * ph - KH) // sh + 1
    OW = (W + 2 * pw - KW) // sw + 1

    # --- fixed-point quantization; inputs carried through HBM as exact int16 codes
    xq = _quantize_fixed(x, input_bits, input_bit_frac).astype(jnp.int16)
    wq = _quantize_fixed(weight, weight_bits, weight_bit_frac)

    # --- im2col directly in (M, K) layout: NHWC strided slices stacked along a
    # trailing (kh*KW + kw) axis reproduce the reference (Cin, KH, KW) flattening
    # order without an extra transpose pass over the expanded int16 buffer.
    x_nhwc = jnp.pad(xq, ((0, 0), (0, 0), (ph, ph), (pw, pw))).transpose(0, 2, 3, 1)
    slices = [x_nhwc[:, kh:kh + sh * OH:sh, kw:kw + sw * OW:sw, :]
              for kh in range(KH) for kw in range(KW)]
    patches = jnp.stack(slices, axis=-1)          # [B, OH, OW, Cin, KH*KW] int16
    M = B * OH * OW
    K = Cin * KH * KW
    patches = patches.reshape(M, K)

    # --- tiling: lane-dense K/N, single reduction step when K is small, single
    #     N pass when Cout is small, large M tiles.
    N_pad = _round_up(Cout, 128)
    if K <= 1024:
        K_pad = _round_up(K, 128)
        tk = K_pad                                 # single MXU reduction pass
    else:
        tk = 512
        K_pad = _round_up(K, tk)
    grid_k = K_pad // tk

    tn = N_pad if N_pad <= 512 else (256 if N_pad % 256 == 0 else 128)
    grid_n = N_pad // tn

    tm_cap = 1024 if tk <= 512 else 512            # bounds in-kernel f32 split temps
    M_al = _round_up(M, 16)                        # int16 (16,128) tile alignment
    tm = min(tm_cap, M_al)
    grid_m = pl.cdiv(M_al, tm)
    M_pad = grid_m * tm
    # TODO(synk): for v7x megacore, prefer grid_m >= 2 on large problems so the
    # parallel m axis can be sharded across both TensorCores.

    # Single pad pass over the expanded buffer covers both M and K padding; the
    # zero rows/columns contribute nothing (no OOB tile reads).
    patches = jnp.pad(patches, ((0, M_pad - M), (0, K_pad - K)))

    # --- weight planes: exact bf16 hi/lo split done once in the wrapper (tiny).
    w_mat = wq.reshape(Cout, K).T                  # [K, Cout] integer codes in f32
    w_hi, w_lo = _split_hi_lo(w_mat)
    w_hi = jnp.pad(w_hi, ((0, K_pad - K), (0, N_pad - Cout))).astype(jnp.bfloat16)
    w_lo = jnp.pad(w_lo, ((0, K_pad - K), (0, N_pad - Cout))).astype(jnp.bfloat16)

    # Keep the weight planes resident in VMEM across the m/k loops when they fit
    # a conservative budget (bf16 * 2 planes * double buffer); otherwise fall back
    # to per-(k,n) weight tiles.
    resident_bytes = K_pad * tn * 2 * 2 * 2
    w_resident = resident_bytes <= 16 * 1024 * 1024

    def make_w_spec():
        if w_resident:
            return pl.BlockSpec((K_pad, tn), lambda n, m, k: (0, n))
        return pl.BlockSpec((tk, tn), lambda n, m, k: (k, n))

    post_scale = 2.0 ** (acm_bit_frac - input_bit_frac - weight_bit_frac)
    qmin = -(2.0 ** (acm_bits - 1))
    qmax = 2.0 ** (acm_bits - 1) - 1.0

    kernel = functools.partial(
        _mvm_kernel,
        tk=tk,
        w_resident=w_resident,
        post_scale=post_scale,
        qmin=qmin,
        qmax=qmax,
    )

    out_q = pl.pallas_call(
        kernel,
        out_shape=jax.ShapeDtypeStruct((M_pad, N_pad), jnp.int16),
        grid_spec=pltpu.PrefetchScalarGridSpec(
            num_scalar_prefetch=0,
            grid=(grid_n, grid_m, grid_k),
            in_specs=[
                pl.BlockSpec((tm, tk), lambda n, m, k: (m, k)),   # patch tile
                make_w_spec(),                                    # weight hi plane
                make_w_spec(),                                    # weight lo plane
            ],
            out_specs=pl.BlockSpec((tm, tn), lambda n, m, k: (m, n)),
            scratch_shapes=[pltpu.VMEM((tm, tn), jnp.float32)],
        ),
        compiler_params=pltpu.CompilerParams(
            dimension_semantics=("parallel", "parallel", "arbitrary"),
            vmem_limit_bytes=48 * 1024 * 1024,
        ),
    )(patches, w_hi, w_lo)

    inv_acm_scale = 2.0 ** (-acm_bit_frac)
    out = out_q[:M, :Cout].astype(jnp.float32) * inv_acm_scale   # exact rescale
    out = out.reshape(B, OH, OW, Cout).transpose(0, 3, 1, 2)
    return out


def _reference_fixed_point_conv(x, weight, stride, padding,
                                weight_bits=16, input_bits=16, acm_bits=16):
    """Plain-JAX fixed-point reference with the same quantization semantics."""
    wf = weight_bits // 4 * 3
    inf = input_bits // 4 * 3
    af = acm_bits // 4 * 3
    sh, sw = stride
    ph, pw = padding
    xq = _quantize_fixed(x, input_bits, inf)
    wq = _quantize_fixed(weight, weight_bits, wf)
    xp = jnp.pad(xq, ((0, 0), (0, 0), (ph, ph), (pw, pw)))
    acc = jax.lax.conv_general_dilated(
        xp, wq, window_strides=(sh, sw), padding="VALID",
        dimension_numbers=("NCHW", "OIHW", "NCHW"),
        precision=jax.lax.Precision.HIGHEST)
    q = jnp.clip(jnp.round(acc * 2.0 ** (af - inf - wf)),
                 -(2.0 ** (acm_bits - 1)), 2.0 ** (acm_bits - 1) - 1.0)
    return q * 2.0 ** (-af)


def init_conv2d_mvm_params(key, in_channels, out_channels, kernel_size, bias=True):
    """Deterministic parameter init mirroring _ConvNd_mvm.reset_parameters:
    kaiming_uniform_(a=sqrt(5)) == U(-1/sqrt(fan_in), 1/sqrt(fan_in))."""
    kh, kw = kernel_size
    fan_in = in_channels * kh * kw
    bound = 1.0 / math.sqrt(fan_in)
    k_w, k_b = jax.random.split(key)
    weight = jax.random.uniform(
        k_w, (out_channels, in_channels, kh, kw),
        minval=-bound, maxval=bound, dtype=jnp.float32)
    b = None
    if bias:
        b = jax.random.uniform(
            k_b, (out_channels,), minval=-bound, maxval=bound, dtype=jnp.float32)
    return weight, b


if __name__ == "__main__":
    key = jax.random.PRNGKey(0)
    k_x, k_p = jax.random.split(key)

    # Small shapes consistent with the module: batch=2, Cin=4, 16x16 spatial,
    # Cout=8, 3x3 kernel, stride=1, padding=1.
    B, Cin, H, W = 2, 4, 16, 16
    Cout, KH, KW = 8, 3, 3
    stride = (1, 1)
    padding = (1, 1)

    x = jax.random.uniform(k_x, (B, Cin, H, W), minval=-1.0, maxval=1.0,
                           dtype=jnp.float32)
    weight, bias = init_conv2d_mvm_params(k_p, Cin, Cout, (KH, KW), bias=True)

    out = conv2d_mvm_forward(x, weight, bias, stride=stride, padding=padding)
    out = jax.block_until_ready(out)

    assert out.shape == (B, Cout, H, W), out.shape
    assert bool(jnp.all(jnp.isfinite(out)))

    ref = _reference_fixed_point_conv(x, weight, stride, padding)
    ref = jax.block_until_ready(ref)
    max_err = float(jnp.max(jnp.abs(out - ref)))
    assert max_err < 2e-3, f"max abs error vs fixed-point reference: {max_err}"

    print("KERNEL_OK")
</pallas_src>

<mosaic_0001>
module attributes {stable_mosaic.version = 11 : i64} {
  func.func @_mvm_kernel(%arg0: i32, %arg1: i32, %arg2: i32, %arg3: memref<512x128xi16, #tpu.memory_space<vmem>>, %arg4: memref<128x128xbf16, #tpu.memory_space<vmem>>, %arg5: memref<128x128xbf16, #tpu.memory_space<vmem>>, %arg6: memref<512x128xi16, #tpu.memory_space<vmem>>, %arg7: memref<512x128xf32, #tpu.memory_space<vmem>>) attributes {dimension_semantics = [#tpu.dimension_semantics<parallel>, #tpu.dimension_semantics<parallel>, #tpu.dimension_semantics<arbitrary>], iteration_bounds = array<i64: 1, 1, 1>, scalar_prefetch = 0 : i64, scratch_operands = 1 : i64, tpu.core_type = #tpu.core_type<tc>, window_params = [{transform_indices = @transform_0, window_bounds = array<i64: 512, 128>}, {transform_indices = @transform_1, window_bounds = array<i64: 128, 128>}, {transform_indices = @transform_2, window_bounds = array<i64: 128, 128>}, {transform_indices = @transform_3, window_bounds = array<i64: 512, 128>}]} {
    %c0_i32 = arith.constant 0 : i32
    %0 = arith.cmpi eq, %arg2, %c0_i32 : i32
    %1 = arith.extui %0 : i1 to i32
    %c0_i32_0 = arith.constant 0 : i32
    %2 = arith.cmpi ne, %1, %c0_i32_0 : i32
    scf.if %2 {
      %cst_17 = arith.constant 0.000000e+00 : f32
      %36 = vector.broadcast %cst_17 : f32 to vector<512x128xf32>
      %c0_18 = arith.constant 0 : index
      %c0_19 = arith.constant 0 : index
      %37 = vector.load %arg7[%c0_18, %c0_19] : memref<512x128xf32, #tpu.memory_space<vmem>>, vector<512x128xf32>
      tpu.vector_store %arg7[%c0_18, %c0_19], %36 {strides = array<i32>} : memref<512x128xf32, #tpu.memory_space<vmem>>, vector<512x128xf32>,
    } else {
    }
    %c0 = arith.constant 0 : index
    %c0_1 = arith.constant 0 : index
    %3 = vector.load %arg3[%c0, %c0_1] : memref<512x128xi16, #tpu.memory_space<vmem>>, vector<512x128xi16>
    %4 = arith.sitofp %3 : vector<512x128xi16> to vector<512x128xf32>
    %cst = arith.constant 3.906250e-03 : f32
    %5 = vector.broadcast %cst : f32 to vector<512x128xf32>
    %6 = arith.mulf %4, %5 : vector<512x128xf32>
    %7 = math.floor %6 : vector<512x128xf32>
    %cst_2 = arith.constant 2.560000e+02 : f32
    %8 = vector.broadcast %cst_2 : f32 to vector<512x128xf32>
    %9 = arith.mulf %8, %7 : vector<512x128xf32>
    %10 = arith.subf %4, %9 : vector<512x128xf32>
    %11 = arith.truncf %10 : vector<512x128xf32> to vector<512x128xbf16>
    %12 = arith.truncf %7 : vector<512x128xf32> to vector<512x128xbf16>
    %c128_i32 = arith.constant 128 : i32
    %13 = arith.muli %arg2, %c128_i32 : i32
    %14 = tpu.assume_multiple %13, 128 : i32
    %15 = arith.index_cast %14 : i32 to index
    %c0_3 = arith.constant 0 : index
    %16 = vector.load %arg4[%15, %c0_3] : memref<128x128xbf16, #tpu.memory_space<vmem>>, vector<128x128xbf16>
    %17 = arith.index_cast %14 : i32 to index
    %c0_4 = arith.constant 0 : index
    %18 = vector.load %arg5[%17, %c0_4] : memref<128x128xbf16, #tpu.memory_space<vmem>>, vector<128x128xbf16>
    %c0_5 = arith.constant 0 : index
    %c0_6 = arith.constant 0 : index
    %19 = vector.load %arg7[%c0_5, %c0_6] : memref<512x128xf32, #tpu.memory_space<vmem>>, vector<512x128xf32>
    %cst_7 = arith.constant dense<0.000000e+00> : vector<512x128xf32>
    %20 = tpu.matmul %12, %16, %cst_7 {dimension_numbers = #tpu.dot_dimension_numbers<[1], [0], [0], [1], [0, 0, 1, 1], [], []>} : vector<512x128xbf16>, vector<128x128xbf16>, vector<512x128xf32> -> vector<512x128xf32>
    %cst_8 = arith.constant 6.553600e+04 : f32
    %21 = vector.broadcast %cst_8 : f32 to vector<512x128xf32>
    %22 = arith.mulf %21, %20 : vector<512x128xf32>
    %cst_9 = arith.constant dense<0.000000e+00> : vector<512x128xf32>
    %23 = tpu.matmul %12, %18, %cst_9 {dimension_numbers = #tpu.dot_dimension_numbers<[1], [0], [0], [1], [0, 0, 1, 1], [], []>} : vector<512x128xbf16>, vector<128x128xbf16>, vector<512x128xf32> -> vector<512x128xf32>
    %cst_10 = arith.constant dense<0.000000e+00> : vector<512x128xf32>
    %24 = tpu.matmul %11, %16, %cst_10 {dimension_numbers = #tpu.dot_dimension_numbers<[1], [0], [0], [1], [0, 0, 1, 1], [], []>} : vector<512x128xbf16>, vector<128x128xbf16>, vector<512x128xf32> -> vector<512x128xf32>
    %25 = arith.addf %23, %24 : vector<512x128xf32>
    %cst_11 = arith.constant 2.560000e+02 : f32
    %26 = vector.broadcast %cst_11 : f32 to vector<512x128xf32>
    %27 = arith.mulf %26, %25 : vector<512x128xf32>
    %28 = arith.addf %22, %27 : vector<512x128xf32>
    %cst_12 = arith.constant dense<0.000000e+00> : vector<512x128xf32>
    %29 = tpu.matmul %11, %18, %cst_12 {dimension_numbers = #tpu.dot_dimension_numbers<[1], [0], [0], [1], [0, 0, 1, 1], [], []>} : vector<512x128xbf16>, vector<128x128xbf16>, vector<512x128xf32> -> vector<512x128xf32>
    %30 = arith.addf %28, %29 : vector<512x128xf32>
    %31 = arith.addf %19, %30 : vector<512x128xf32>
    %c0_13 = arith.constant 0 : index
    %c0_14 = arith.constant 0 : index
    %32 = vector.load %arg7[%c0_13, %c0_14] : memref<512x128xf32, #tpu.memory_space<vmem>>, vector<512x128xf32>
    tpu.vector_store %arg7[%c0_13, %c0_14], %31 {strides = array<i32>} : memref<512x128xf32, #tpu.memory_space<vmem>>, vector<512x128xf32>,
    %c0_i32_15 = arith.constant 0 : i32
    %33 = arith.cmpi eq, %arg2, %c0_i32_15 : i32
    %34 = arith.extui %33 : i1 to i32
    %c0_i32_16 = arith.constant 0 : i32
    %35 = arith.cmpi ne, %34, %c0_i32_16 : i32
    scf.if %35 {
      %c0_17 = arith.constant 0 : index
      %c0_18 = arith.constant 0 : index
      %36 = vector.load %arg7[%c0_17, %c0_18] : memref<512x128xf32, #tpu.memory_space<vmem>>, vector<512x128xf32>
      %cst_19 = arith.constant 2.44140625E-4 : f32
      %37 = vector.broadcast %cst_19 : f32 to vector<512x128xf32>
      %38 = arith.mulf %36, %37 : vector<512x128xf32>
      %39 = math.roundeven %38 : vector<512x128xf32>
      %cst_20 = arith.constant -3.276800e+04 : f32
      %cst_21 = arith.constant 3.276700e+04 : f32
      %40 = vector.broadcast %cst_20 : f32 to vector<512x128xf32>
      %41 = arith.maximumf %40, %39 : vector<512x128xf32>
      %42 = vector.broadcast %cst_21 : f32 to vector<512x128xf32>
      %43 = arith.minimumf %42, %41 : vector<512x128xf32>
      %44 = arith.fptosi %43 : vector<512x128xf32> to vector<512x128xi16>
      %c0_22 = arith.constant 0 : index
      %c0_23 = arith.constant 0 : index
      %45 = vector.load %arg6[%c0_22, %c0_23] : memref<512x128xi16, #tpu.memory_space<vmem>>, vector<512x128xi16>
      tpu.vector_store %arg6[%c0_22, %c0_23], %44 {strides = array<i32>} : memref<512x128xi16, #tpu.memory_space<vmem>>, vector<512x128xi16>,
    } else {
    }
    return
  }
  func.func @transform_0(%arg0: i32, %arg1: i32, %arg2: i32) -> (i32, i32) {
    %c0_i32 = arith.constant 0 : i32
    return %arg1, %arg2 : i32, i32
  }
  func.func @transform_1(%arg0: i32, %arg1: i32, %arg2: i32) -> (i32, i32) {
    %c0_i32 = arith.constant 0 : i32
    %c0_i32_0 = arith.constant 0 : i32
    return %c0_i32, %arg0 : i32, i32
  }
  func.func @transform_2(%arg0: i32, %arg1: i32, %arg2: i32) -> (i32, i32) {
    %c0_i32 = arith.constant 0 : i32
    %c0_i32_0 = arith.constant 0 : i32
    return %c0_i32, %arg0 : i32, i32
  }
  func.func @transform_3(%arg0: i32, %arg1: i32, %arg2: i32) -> (i32, i32) {
    %c0_i32 = arith.constant 0 : i32
    return %arg1, %arg0 : i32, i32
  }
}

</mosaic_0001>

<llo_original>
// kernel: tpu_custom_call.1
$region0: #{tpu_custom_call.1}
  #allocation0 [shape = 'u32[]', space=smem, size = 0x4, offset = 0x4, fixed_abs, tag = 'smem constant byte address 0x4 - core index']
  #allocation1 [shape = 'u32[144,128]{1,0:T(1,128)}', space=vmem, size = 0x12000, scoped, tag = 'internal scratch']
  #allocation2 [shape = 'f32[512,128]{1,0:T(8,128)}', space=vmem, size = 0x40000, scoped, tag = 'scratch operand']
  %s0 = inlined_call_operand.hbm [shape: s16[512,128], index: 0, kind: input, shape index: {}]
  %s1 = inlined_call_operand.hbm [shape: bf16[128,128], index: 1, kind: input, shape index: {}]
  %s2 = inlined_call_operand.hbm [shape: bf16[128,128], index: 2, kind: input, shape index: {}]
  %s3 = inlined_call_operand.hbm [shape: s16[512,128], index: 3, kind: output, shape index: {}]
  %s4 = sld [smem:[#allocation0]]
  $region42: #{tpu_custom_call.1} parent=0
    _
  %s6 = ssub.s32 1, %s4
  %s7 = scalar_select 0, %s6, %s4
  $region1: #{tpu_custom_call.1} parent=0
    #allocation3 [shape = 'u8[131072]{0}', space=vmem, size = 0x20000, scoped, tag = 'input window, operand 0, single buffered']
    #allocation4 [shape = 's32[1]{0}', space=sflag, size = 0x4, scoped, tag = 'scoped memory for tpu_custom_call.1']
    #allocation5 [shape = 's32[1]{0}', space=sflag, size = 0x4, scoped, tag = 'scoped memory for tpu_custom_call.1']
    #allocation6 [shape = 'u8[32768]{0}', space=vmem, size = 0x8000, scoped, tag = 'input window, operand 1, single buffered']
    #allocation7 [shape = 's32[1]{0}', space=sflag, size = 0x4, scoped, tag = 'scoped memory for tpu_custom_call.1']
    #allocation8 [shape = 'u8[32768]{0}', space=vmem, size = 0x8000, scoped, tag = 'input window, operand 2, single buffered']
    #allocation9 [shape = 'u8[131072]{0}', space=vmem, size = 0x20000, scoped, tag = 'output window, operand 0, single buffered']
    %8 = vsyncpa [#allocation4], 0
    %9 = vsyncpa [#allocation7], 0
    %10 = vsyncpa [#allocation5], 0
    // Predicated region
    $region2: #{tpu_custom_call.1} parent=1 // pred_check
      _
    $region3: #{tpu_custom_call.1} parent=1 // pred_check_branch
      %12 = sbr.rel (0) target = $region5
    $region4: #{tpu_custom_call.1} parent=1 // pred_region
      %s14 = ssub.s32 4096, 4096
      %15 = vsyncadd [#allocation4], %s14
      %s16 = sshll.u32 [#allocation3], 4
      %s17 = int_to_ptr.vmem [resolvable:$true] %s16
      %22 = dma.hbm_to_vmem [thread:$0]  %s0, 4096, %s17, [#allocation4], 64, 64, 4
    $region5: #{tpu_custom_call.1} parent=1 // pred_fallthru
      _
    // Predicated region
    $region6: #{tpu_custom_call.1} parent=1 // pred_check
      _
    $region7: #{tpu_custom_call.1} parent=1 // pred_check_branch
      %24 = sbr.rel (0) target = $region9
    $region8: #{tpu_custom_call.1} parent=1 // pred_region
      %s26 = ssub.s32 1024, 1024
      %27 = vsyncadd [#allocation7], %s26
      %s28 = sshll.u32 [#allocation6], 4
      %s29 = int_to_ptr.vmem [resolvable:$true] %s28
      %34 = dma.hbm_to_vmem [thread:$0]  %s1, 1024, %s29, [#allocation7], 64, 64, 4
    $region9: #{tpu_custom_call.1} parent=1 // pred_fallthru
      _
    // Predicated region
    $region10: #{tpu_custom_call.1} parent=1 // pred_check
      _
    $region11: #{tpu_custom_call.1} parent=1 // pred_check_branch
      %36 = sbr.rel (0) target = $region13
    $region12: #{tpu_custom_call.1} parent=1 // pred_region
      %s38 = ssub.s32 1024, 1024
      %39 = vsyncadd [#allocation7], %s38
      %s40 = sshll.u32 [#allocation8], 4
      %s41 = int_to_ptr.vmem [resolvable:$true] %s40
      %46 = dma.hbm_to_vmem [thread:$0]  %s2, 1024, %s41, [#allocation7], 64, 64, 4
    $region13: #{tpu_custom_call.1} parent=1 // pred_fallthru
      _
    // Predicated region
    $region14: #{tpu_custom_call.1} parent=1 // pred_check
      _
    $region15: #{tpu_custom_call.1} parent=1 // pred_check_branch
      %48 = sbr.rel (0) target = $region17
    $region16: #{tpu_custom_call.1} parent=1 // pred_region
      %49 = dma.done [#allocation4], 4096
    $region17: #{tpu_custom_call.1} parent=1 // pred_fallthru
      _
    // Predicated region
    $region18: #{tpu_custom_call.1} parent=1 // pred_check
      _
    $region19: #{tpu_custom_call.1} parent=1 // pred_check_branch
      %51 = sbr.rel (0) target = $region21
    $region20: #{tpu_custom_call.1} parent=1 // pred_region
      %52 = dma.done [#allocation7], 1024
    $region21: #{tpu_custom_call.1} parent=1 // pred_fallthru
      _
    // Predicated region
    $region22: #{tpu_custom_call.1} parent=1 // pred_check
      _
    $region23: #{tpu_custom_call.1} parent=1 // pred_check_branch
      %54 = sbr.rel (0) target = $region25
    $region24: #{tpu_custom_call.1} parent=1 // pred_region
      %55 = dma.done [#allocation7], 1024
    $region25: #{tpu_custom_call.1} parent=1 // pred_fallthru
      _
    %p57 = scmp.eq.s32.totalorder 0, 0
    // Predicated region
    $region26: #{tpu_custom_call.1} parent=1 // pred_check
      %p58 = pneg %p57
    $region27: #{tpu_custom_call.1} parent=1 // pred_check_branch
      %60 = sbr.rel (%p58) target = $region29
    $region28: #{tpu_custom_call.1} parent=1 // pred_region
      %61 = vst [vmem:[#allocation2] sm:$0xff] 0.0
      %62 = vst [vmem:[#allocation2 + $0x8] sm:$0xff] 0.0
      %63 = vst [vmem:[#allocation2 + $0x10] sm:$0xff] 0.0
      %64 = vst [vmem:[#allocation2 + $0x18] sm:$0xff] 0.0
      %65 = vst [vmem:[#allocation2 + $0x20] sm:$0xff] 0.0
      %66 = vst [vmem:[#allocation2 + $0x28] sm:$0xff] 0.0
      %67 = vst [vmem:[#allocation2 + $0x30] sm:$0xff] 0.0
      %68 = vst [vmem:[#allocation2 + $0x38] sm:$0xff] 0.0
      %69 = vst [vmem:[#allocation2 + $0x40] sm:$0xff] 0.0
      %70 = vst [vmem:[#allocation2 + $0x48] sm:$0xff] 0.0
      %71 = vst [vmem:[#allocation2 + $0x50] sm:$0xff] 0.0
      %72 = vst [vmem:[#allocation2 + $0x58] sm:$0xff] 0.0
      %73 = vst [vmem:[#allocation2 + $0x60] sm:$0xff] 0.0
      %74 = vst [vmem:[#allocation2 + $0x68] sm:$0xff] 0.0
      %75 = vst [vmem:[#allocation2 + $0x70] sm:$0xff] 0.0
      %76 = vst [vmem:[#allocation2 + $0x78] sm:$0xff] 0.0
      %77 = vst [vmem:[#allocation2 + $0x80] sm:$0xff] 0.0
      %78 = vst [vmem:[#allocation2 + $0x88] sm:$0xff] 0.0
      %79 = vst [vmem:[#allocation2 + $0x90] sm:$0xff] 0.0
      %80 = vst [vmem:[#allocation2 + $0x98] sm:$0xff] 0.0
      %81 = vst [vmem:[#allocation2 + $0xa0] sm:$0xff] 0.0
      %82 = vst [vmem:[#allocation2 + $0xa8] sm:$0xff] 0.0
      %83 = vst [vmem:[#allocation2 + $0xb0] sm:$0xff] 0.0
      %84 = vst [vmem:[#allocation2 + $0xb8] sm:$0xff] 0.0
      %85 = vst [vmem:[#allocation2 + $0xc0] sm:$0xff] 0.0
      %86 = vst [vmem:[#allocation2 + $0xc8] sm:$0xff] 0.0
      %87 = vst [vmem:[#allocation2 + $0xd0] sm:$0xff] 0.0
      %88 = vst [vmem:[#allocation2 + $0xd8] sm:$0xff] 0.0
      %89 = vst [vmem:[#allocation2 + $0xe0] sm:$0xff] 0.0
      %90 = vst [vmem:[#allocation2 + $0xe8] sm:$0xff] 0.0
      %91 = vst [vmem:[#allocation2 + $0xf0] sm:$0xff] 0.0
      %92 = vst [vmem:[#allocation2 + $0xf8] sm:$0xff] 0.0
      %93 = vst [vmem:[#allocation2 + $0x100] sm:$0xff] 0.0
      %94 = vst [vmem:[#allocation2 + $0x108] sm:$0xff] 0.0
      %95 = vst [vmem:[#allocation2 + $0x110] sm:$0xff] 0.0
      %96 = vst [vmem:[#allocation2 + $0x118] sm:$0xff] 0.0
      %97 = vst [vmem:[#allocation2 + $0x120] sm:$0xff] 0.0
      %98 = vst [vmem:[#allocation2 + $0x128] sm:$0xff] 0.0
      %99 = vst [vmem:[#allocation2 + $0x130] sm:$0xff] 0.0
      %100 = vst [vmem:[#allocation2 + $0x138] sm:$0xff] 0.0
      %101 = vst [vmem:[#allocation2 + $0x140] sm:$0xff] 0.0
      %102 = vst [vmem:[#allocation2 + $0x148] sm:$0xff] 0.0
      %103 = vst [vmem:[#allocation2 + $0x150] sm:$0xff] 0.0
      %104 = vst [vmem:[#allocation2 + $0x158] sm:$0xff] 0.0
      %105 = vst [vmem:[#allocation2 + $0x160] sm:$0xff] 0.0
      %106 = vst [vmem:[#allocation2 + $0x168] sm:$0xff] 0.0
      %107 = vst [vmem:[#allocation2 + $0x170] sm:$0xff] 0.0
      %108 = vst [vmem:[#allocation2 + $0x178] sm:$0xff] 0.0
      %109 = vst [vmem:[#allocation2 + $0x180] sm:$0xff] 0.0
      %110 = vst [vmem:[#allocation2 + $0x188] sm:$0xff] 0.0
      %111 = vst [vmem:[#allocation2 + $0x190] sm:$0xff] 0.0
      %112 = vst [vmem:[#allocation2 + $0x198] sm:$0xff] 0.0
      %113 = vst [vmem:[#allocation2 + $0x1a0] sm:$0xff] 0.0
      %114 = vst [vmem:[#allocation2 + $0x1a8] sm:$0xff] 0.0
      %115 = vst [vmem:[#allocation2 + $0x1b0] sm:$0xff] 0.0
      %116 = vst [vmem:[#allocation2 + $0x1b8] sm:$0xff] 0.0
      %117 = vst [vmem:[#allocation2 + $0x1c0] sm:$0xff] 0.0
      %118 = vst [vmem:[#allocation2 + $0x1c8] sm:$0xff] 0.0
      %119 = vst [vmem:[#allocation2 + $0x1d0] sm:$0xff] 0.0
      %120 = vst [vmem:[#allocation2 + $0x1d8] sm:$0xff] 0.0
      %121 = vst [vmem:[#allocation2 + $0x1e0] sm:$0xff] 0.0
      %122 = vst [vmem:[#allocation2 + $0x1e8] sm:$0xff] 0.0
      %123 = vst [vmem:[#allocation2 + $0x1f0] sm:$0xff] 0.0
      %124 = vst [vmem:[#allocation2 + $0x1f8] sm:$0xff] 0.0
    $region29: #{tpu_custom_call.1} parent=1 // pred_fallthru
      _
    %v125 = vld [vmem:[#allocation3] sm:$0xf]
    %v126 = vld [vmem:[#allocation3 + $0x4] sm:$0xf]
    %v127 = vld [vmem:[#allocation3 + $0x8] sm:$0xf]
    %v128 = vld [vmem:[#allocation3 + $0xc] sm:$0xf]
    %v129 = vld [vmem:[#allocation3 + $0x10] sm:$0xf]
    %v130 = vld [vmem:[#allocation3 + $0x14] sm:$0xf]
    %v131 = vld [vmem:[#allocation3 + $0x18] sm:$0xf]
    %v132 = vld [vmem:[#allocation3 + $0x1c] sm:$0xf]
    %v133 = vld [vmem:[#allocation3 + $0x20] sm:$0xf]
    %v134 = vld [vmem:[#allocation3 + $0x24] sm:$0xf]
    %v135 = vld [vmem:[#allocation3 + $0x28] sm:$0xf]
    %v136 = vld [vmem:[#allocation3 + $0x2c] sm:$0xf]
    %v137 = vld [vmem:[#allocation3 + $0x30] sm:$0xf]
    %v138 = vld [vmem:[#allocation3 + $0x34] sm:$0xf]
    %v139 = vld [vmem:[#allocation3 + $0x38] sm:$0xf]
    %v140 = vld [vmem:[#allocation3 + $0x3c] sm:$0xf]
    %v141 = vld [vmem:[#allocation3 + $0x40] sm:$0xf]
    %v142 = vld [vmem:[#allocation3 + $0x44] sm:$0xf]
    %v143 = vld [vmem:[#allocation3 + $0x48] sm:$0xf]
    %v144 = vld [vmem:[#allocation3 + $0x4c] sm:$0xf]
    %v145 = vld [vmem:[#allocation3 + $0x50] sm:$0xf]
    %v146 = vld [vmem:[#allocation3 + $0x54] sm:$0xf]
    %v147 = vld [vmem:[#allocation3 + $0x58] sm:$0xf]
    %v148 = vld [vmem:[#allocation3 + $0x5c] sm:$0xf]
    %v149 = vld [vmem:[#allocation3 + $0x60] sm:$0xf]
    %v150 = vld [vmem:[#allocation3 + $0x64] sm:$0xf]
    %v151 = vld [vmem:[#allocation3 + $0x68] sm:$0xf]
    %v152 = vld [vmem:[#allocation3 + $0x6c] sm:$0xf]
    %v153 = vld [vmem:[#allocation3 + $0x70] sm:$0xf]
    %v154 = vld [vmem:[#allocation3 + $0x74] sm:$0xf]
    %v155 = vld [vmem:[#allocation3 + $0x78] sm:$0xf]
    %v156 = vld [vmem:[#allocation3 + $0x7c] sm:$0xf]
    %v157 = vld [vmem:[#allocation3 + $0x80] sm:$0xf]
    %v158 = vld [vmem:[#allocation3 + $0x84] sm:$0xf]
    %v159 = vld [vmem:[#allocation3 + $0x88] sm:$0xf]
    %v160 = vld [vmem:[#allocation3 + $0x8c] sm:$0xf]
    %v161 = vld [vmem:[#allocation3 + $0x90] sm:$0xf]
    %v162 = vld [vmem:[#allocation3 + $0x94] sm:$0xf]
    %v163 = vld [vmem:[#allocation3 + $0x98] sm:$0xf]
    %v164 = vld [vmem:[#allocation3 + $0x9c] sm:$0xf]
    %v165 = vld [vmem:[#allocation3 + $0xa0] sm:$0xf]
    %v166 = vld [vmem:[#allocation3 + $0xa4] sm:$0xf]
    %v167 = vld [vmem:[#allocation3 + $0xa8] sm:$0xf]
    %v168 = vld [vmem:[#allocation3 + $0xac] sm:$0xf]
    %v169 = vld [vmem:[#allocation3 + $0xb0] sm:$0xf]
    %v170 = vld [vmem:[#allocation3 + $0xb4] sm:$0xf]
    %v171 = vld [vmem:[#allocation3 + $0xb8] sm:$0xf]
    %v172 = vld [vmem:[#allocation3 + $0xbc] sm:$0xf]
    %v173 = vld [vmem:[#allocation3 + $0xc0] sm:$0xf]
    %v174 = vld [vmem:[#allocation3 + $0xc4] sm:$0xf]
    %v175 = vld [vmem:[#allocation3 + $0xc8] sm:$0xf]
    %v176 = vld [vmem:[#allocation3 + $0xcc] sm:$0xf]
    %v177 = vld [vmem:[#allocation3 + $0xd0] sm:$0xf]
    %v178 = vld [vmem:[#allocation3 + $0xd4] sm:$0xf]
    %v179 = vld [vmem:[#allocation3 + $0xd8] sm:$0xf]
    %v180 = vld [vmem:[#allocation3 + $0xdc] sm:$0xf]
    %v181 = vld [vmem:[#allocation3 + $0xe0] sm:$0xf]
    %v182 = vld [vmem:[#allocation3 + $0xe4] sm:$0xf]
    %v183 = vld [vmem:[#allocation3 + $0xe8] sm:$0xf]
    %v184 = vld [vmem:[#allocation3 + $0xec] sm:$0xf]
    %v185 = vld [vmem:[#allocation3 + $0xf0] sm:$0xf]
    %v186 = vld [vmem:[#allocation3 + $0xf4] sm:$0xf]
    %v187 = vld [vmem:[#allocation3 + $0xf8] sm:$0xf]
    %v188 = vld [vmem:[#allocation3 + $0xfc] sm:$0xf]
    %v189 = vunpack.c.l.b16 %v125
    %v190 = vunpack.c.l.b16 %v126
    %v191 = vunpack.c.l.b16 %v127
    %v192 = vunpack.c.l.b16 %v128
    %v193 = vunpack.c.l.b16 %v129
    %v194 = vunpack.c.l.b16 %v130
    %v195 = vunpack.c.l.b16 %v131
    %v196 = vunpack.c.l.b16 %v132
    %v197 = vunpack.c.l.b16 %v133
    %v198 = vunpack.c.l.b16 %v134
    %v199 = vunpack.c.l.b16 %v135
    %v200 = vunpack.c.l.b16 %v136
    %v201 = vunpack.c.l.b16 %v137
    %v202 = vunpack.c.l.b16 %v138
    %v203 = vunpack.c.l.b16 %v139
    %v204 = vunpack.c.l.b16 %v140
    %v205 = vunpack.c.l.b16 %v141
    %v206 = vunpack.c.l.b16 %v142
    %v207 = vunpack.c.l.b16 %v143
    %v208 = vunpack.c.l.b16 %v144
    %v209 = vunpack.c.l.b16 %v145
    %v210 = vunpack.c.l.b16 %v146
    %v211 = vunpack.c.l.b16 %v147
    %v212 = vunpack.c.l.b16 %v148
    %v213 = vunpack.c.l.b16 %v149
    %v214 = vunpack.c.l.b16 %v150
    %v215 = vunpack.c.l.b16 %v151
    %v216 = vunpack.c.l.b16 %v152
    %v217 = vunpack.c.l.b16 %v153
    %v218 = vunpack.c.l.b16 %v154
    %v219 = vunpack.c.l.b16 %v155
    %v220 = vunpack.c.l.b16 %v156
    %v221 = vunpack.c.l.b16 %v157
    %v222 = vunpack.c.l.b16 %v158
    %v223 = vunpack.c.l.b16 %v159
    %v224 = vunpack.c.l.b16 %v160
    %v225 = vunpack.c.l.b16 %v161
    %v226 = vunpack.c.l.b16 %v162
    %v227 = vunpack.c.l.b16 %v163
    %v228 = vunpack.c.l.b16 %v164
    %v229 = vunpack.c.l.b16 %v165
    %v230 = vunpack.c.l.b16 %v166
    %v231 = vunpack.c.l.b16 %v167
    %v232 = vunpack.c.l.b16 %v168
    %v233 = vunpack.c.l.b16 %v169
    %v234 = vunpack.c.l.b16 %v170
    %v235 = vunpack.c.l.b16 %v171
    %v236 = vunpack.c.l.b16 %v172
    %v237 = vunpack.c.l.b16 %v173
    %v238 = vunpack.c.l.b16 %v174
    %v239 = vunpack.c.l.b16 %v175
    %v240 = vunpack.c.l.b16 %v176
    %v241 = vunpack.c.l.b16 %v177
    %v242 = vunpack.c.l.b16 %v178
    %v243 = vunpack.c.l.b16 %v179
    %v244 = vunpack.c.l.b16 %v180
    %v245 = vunpack.c.l.b16 %v181
    %v246 = vunpack.c.l.b16 %v182
    %v247 = vunpack.c.l.b16 %v183
    %v248 = vunpack.c.l.b16 %v184
    %v249 = vunpack.c.l.b16 %v185
    %v250 = vunpack.c.l.b16 %v186
    %v251 = vunpack.c.l.b16 %v187
    %v252 = vunpack.c.l.b16 %v188
    %v253 = vcvt.s32.f32 %v189
    %v254 = vcvt.s32.f32 %v190
    %v255 = vcvt.s32.f32 %v191
    %v256 = vcvt.s32.f32 %v192
    %v257 = vcvt.s32.f32 %v193
    %v258 = vcvt.s32.f32 %v194
    %v259 = vcvt.s32.f32 %v195
    %v260 = vcvt.s32.f32 %v196
    %v261 = vcvt.s32.f32 %v197
    %v262 = vcvt.s32.f32 %v198
    %v263 = vcvt.s32.f32 %v199
    %v264 = vcvt.s32.f32 %v200
    %v265 = vcvt.s32.f32 %v201
    %v266 = vcvt.s32.f32 %v202
    %v267 = vcvt.s32.f32 %v203
    %v268 = vcvt.s32.f32 %v204
    %v269 = vcvt.s32.f32 %v205
    %v270 = vcvt.s32.f32 %v206
    %v271 = vcvt.s32.f32 %v207
    %v272 = vcvt.s32.f32 %v208
    %v273 = vcvt.s32.f32 %v209
    %v274 = vcvt.s32.f32 %v210
    %v275 = vcvt.s32.f32 %v211
    %v276 = vcvt.s32.f32 %v212
    %v277 = vcvt.s32.f32 %v213
    %v278 = vcvt.s32.f32 %v214
    %v279 = vcvt.s32.f32 %v215
    %v280 = vcvt.s32.f32 %v216
    %v281 = vcvt.s32.f32 %v217
    %v282 = vcvt.s32.f32 %v218
    %v283 = vcvt.s32.f32 %v219
    %v284 = vcvt.s32.f32 %v220
    %v285 = vcvt.s32.f32 %v221
    %v286 = vcvt.s32.f32 %v222
    %v287 = vcvt.s32.f32 %v223
    %v288 = vcvt.s32.f32 %v224
    %v289 = vcvt.s32.f32 %v225
    %v290 = vcvt.s32.f32 %v226
    %v291 = vcvt.s32.f32 %v227
    %v292 = vcvt.s32.f32 %v228
    %v293 = vcvt.s32.f32 %v229
    %v294 = vcvt.s32.f32 %v230
    %v295 = vcvt.s32.f32 %v231
    %v296 = vcvt.s32.f32 %v232
    %v297 = vcvt.s32.f32 %v233
    %v298 = vcvt.s32.f32 %v234
    %v299 = vcvt.s32.f32 %v235
    %v300 = vcvt.s32.f32 %v236
    %v301 = vcvt.s32.f32 %v237
    %v302 = vcvt.s32.f32 %v238
    %v303 = vcvt.s32.f32 %v239
    %v304 = vcvt.s32.f32 %v240
    %v305 = vcvt.s32.f32 %v241
    %v306 = vcvt.s32.f32 %v242
    %v307 = vcvt.s32.f32 %v243
    %v308 = vcvt.s32.f32 %v244
    %v309 = vcvt.s32.f32 %v245
    %v310 = vcvt.s32.f32 %v246
    %v311 = vcvt.s32.f32 %v247
    %v312 = vcvt.s32.f32 %v248
    %v313 = vcvt.s32.f32 %v249
    %v314 = vcvt.s32.f32 %v250
    %v315 = vcvt.s32.f32 %v251
    %v316 = vcvt.s32.f32 %v252
    %v317 = vmul.f32 %v253, 0.00390625
    %v318 = vmul.f32 %v254, 0.00390625
    %v319 = vmul.f32 %v255, 0.00390625
    %v320 = vmul.f32 %v256, 0.00390625
    %v321 = vmul.f32 %v257, 0.00390625
    %v322 = vmul.f32 %v258, 0.00390625
    %v323 = vmul.f32 %v259, 0.00390625
    %v324 = vmul.f32 %v260, 0.00390625
    %v325 = vmul.f32 %v261, 0.00390625
    %v326 = vmul.f32 %v262, 0.00390625
    %v327 = vmul.f32 %v263, 0.00390625
    %v328 = vmul.f32 %v264, 0.00390625
    %v329 = vmul.f32 %v265, 0.00390625
    %v330 = vmul.f32 %v266, 0.00390625
    %v331 = vmul.f32 %v267, 0.00390625
    %v332 = vmul.f32 %v268, 0.00390625
    %v333 = vmul.f32 %v269, 0.00390625
    %v334 = vmul.f32 %v270, 0.00390625
    %v335 = vmul.f32 %v271, 0.00390625
    %v336 = vmul.f32 %v272, 0.00390625
    %v337 = vmul.f32 %v273, 0.00390625
    %v338 = vmul.f32 %v274, 0.00390625
    %v339 = vmul.f32 %v275, 0.00390625
    %v340 = vmul.f32 %v276, 0.00390625
    %v341 = vmul.f32 %v277, 0.00390625
    %v342 = vmul.f32 %v278, 0.00390625
    %v343 = vmul.f32 %v279, 0.00390625
    %v344 = vmul.f32 %v280, 0.00390625
    %v345 = vmul.f32 %v281, 0.00390625
    %v346 = vmul.f32 %v282, 0.00390625
    %v347 = vmul.f32 %v283, 0.00390625
    %v348 = vmul.f32 %v284, 0.00390625
    %v349 = vmul.f32 %v285, 0.00390625
    %v350 = vmul.f32 %v286, 0.00390625
    %v351 = vmul.f32 %v287, 0.00390625
    %v352 = vmul.f32 %v288, 0.00390625
    %v353 = vmul.f32 %v289, 0.00390625
    %v354 = vmul.f32 %v290, 0.00390625
    %v355 = vmul.f32 %v291, 0.00390625
    %v356 = vmul.f32 %v292, 0.00390625
    %v357 = vmul.f32 %v293, 0.00390625
    %v358 = vmul.f32 %v294, 0.00390625
    %v359 = vmul.f32 %v295, 0.00390625
    %v360 = vmul.f32 %v296, 0.00390625
    %v361 = vmul.f32 %v297, 0.00390625
    %v362 = vmul.f32 %v298, 0.00390625
    %v363 = vmul.f32 %v299, 0.00390625
    %v364 = vmul.f32 %v300, 0.00390625
    %v365 = vmul.f32 %v301, 0.00390625
    %v366 = vmul.f32 %v302, 0.00390625
    %v367 = vmul.f32 %v303, 0.00390625
    %v368 = vmul.f32 %v304, 0.00390625
    %v369 = vmul.f32 %v305, 0.00390625
    %v370 = vmul.f32 %v306, 0.00390625
    %v371 = vmul.f32 %v307, 0.00390625
    %v372 = vmul.f32 %v308, 0.00390625
    %v373 = vmul.f32 %v309, 0.00390625
    %v374 = vmul.f32 %v310, 0.00390625
    %v375 = vmul.f32 %v311, 0.00390625
    %v376 = vmul.f32 %v312, 0.00390625
    %v377 = vmul.f32 %v313, 0.00390625
    %v378 = vmul.f32 %v314, 0.00390625
    %v379 = vmul.f32 %v315, 0.00390625
    %v380 = vmul.f32 %v316, 0.00390625
    %v381 = vfloor.f32 %v317
    %v382 = vfloor.f32 %v318
    %v383 = vfloor.f32 %v319
    %v384 = vfloor.f32 %v320
    %v385 = vfloor.f32 %v321
    %v386 = vfloor.f32 %v322
    %v387 = vfloor.f32 %v323
    %v388 = vfloor.f32 %v324
    %v389 = vfloor.f32 %v325
    %v390 = vfloor.f32 %v326
    %v391 = vfloor.f32 %v327
    %v392 = vfloor.f32 %v328
    %v393 = vfloor.f32 %v329
    %v394 = vfloor.f32 %v330
    %v395 = vfloor.f32 %v331
    %v396 = vfloor.f32 %v332
    %v397 = vfloor.f32 %v333
    %v398 = vfloor.f32 %v334
    %v399 = vfloor.f32 %v335
    %v400 = vfloor.f32 %v336
    %v401 = vfloor.f32 %v337
    %v402 = vfloor.f32 %v338
    %v403 = vfloor.f32 %v339
    %v404 = vfloor.f32 %v340
    %v405 = vfloor.f32 %v341
    %v406 = vfloor.f32 %v342
    %v407 = vfloor.f32 %v343
    %v408 = vfloor.f32 %v344
    %v409 = vfloor.f32 %v345
    %v410 = vfloor.f32 %v346
    %v411 = vfloor.f32 %v347
    %v412 = vfloor.f32 %v348
    %v413 = vfloor.f32 %v349
    %v414 = vfloor.f32 %v350
    %v415 = vfloor.f32 %v351
    %v416 = vfloor.f32 %v352
    %v417 = vfloor.f32 %v353
    %v418 = vfloor.f32 %v354
    %v419 = vfloor.f32 %v355
    %v420 = vfloor.f32 %v356
    %v421 = vfloor.f32 %v357
    %v422 = vfloor.f32 %v358
    %v423 = vfloor.f32 %v359
    %v424 = vfloor.f32 %v360
    %v425 = vfloor.f32 %v361
    %v426 = vfloor.f32 %v362
    %v427 = vfloor.f32 %v363
    %v428 = vfloor.f32 %v364
    %v429 = vfloor.f32 %v365
    %v430 = vfloor.f32 %v366
    %v431 = vfloor.f32 %v367
    %v432 = vfloor.f32 %v368
    %v433 = vfloor.f32 %v369
    %v434 = vfloor.f32 %v370
    %v435 = vfloor.f32 %v371
    %v436 = vfloor.f32 %v372
    %v437 = vfloor.f32 %v373
    %v438 = vfloor.f32 %v374
    %v439 = vfloor.f32 %v375
    %v440 = vfloor.f32 %v376
    %v441 = vfloor.f32 %v377
    %v442 = vfloor.f32 %v378
    %v443 = vfloor.f32 %v379
    %v444 = vfloor.f32 %v380
    %v445 = vmul.f32 %v381, 256.0
    %v446 = vmul.f32 %v382, 256.0
    %v447 = vmul.f32 %v383, 256.0
    %v448 = vmul.f32 %v384, 256.0
    %v449 = vmul.f32 %v385, 256.0
    %v450 = vmul.f32 %v386, 256.0
    %v451 = vmul.f32 %v387, 256.0
    %v452 = vmul.f32 %v388, 256.0
    %v453 = vmul.f32 %v389, 256.0
    %v454 = vmul.f32 %v390, 256.0
    %v455 = vmul.f32 %v391, 256.0
    %v456 = vmul.f32 %v392, 256.0
    %v457 = vmul.f32 %v393, 256.0
    %v458 = vmul.f32 %v394, 256.0
    %v459 = vmul.f32 %v395, 256.0
    %v460 = vmul.f32 %v396, 256.0
    %v461 = vmul.f32 %v397, 256.0
    %v462 = vmul.f32 %v398, 256.0
    %v463 = vmul.f32 %v399, 256.0
    %v464 = vmul.f32 %v400, 256.0
    %v465 = vmul.f32 %v401, 256.0
    %v466 = vmul.f32 %v402, 256.0
    %v467 = vmul.f32 %v403, 256.0
    %v468 = vmul.f32 %v404, 256.0
    %v469 = vmul.f32 %v405, 256.0
    %v470 = vmul.f32 %v406, 256.0
    %v471 = vmul.f32 %v407, 256.0
    %v472 = vmul.f32 %v408, 256.0
    %v473 = vmul.f32 %v409, 256.0
    %v474 = vmul.f32 %v410, 256.0
    %v475 = vmul.f32 %v411, 256.0
    %v476 = vmul.f32 %v412, 256.0
    %v477 = vmul.f32 %v413, 256.0
    %v478 = vmul.f32 %v414, 256.0
    %v479 = vmul.f32 %v415, 256.0
    %v480 = vmul.f32 %v416, 256.0
    %v481 = vmul.f32 %v417, 256.0
    %v482 = vmul.f32 %v418, 256.0
    %v483 = vmul.f32 %v419, 256.0
    %v484 = vmul.f32 %v420, 256.0
    %v485 = vmul.f32 %v421, 256.0
    %v486 = vmul.f32 %v422, 256.0
    %v487 = vmul.f32 %v423, 256.0
    %v488 = vmul.f32 %v424, 256.0
    %v489 = vmul.f32 %v425, 256.0
    %v490 = vmul.f32 %v426, 256.0
    %v491 = vmul.f32 %v427, 256.0
    %v492 = vmul.f32 %v428, 256.0
    %v493 = vmul.f32 %v429, 256.0
    %v494 = vmul.f32 %v430, 256.0
    %v495 = vmul.f32 %v431, 256.0
    %v496 = vmul.f32 %v432, 256.0
    %v497 = vmul.f32 %v433, 256.0
    %v498 = vmul.f32 %v434, 256.0
    %v499 = vmul.f32 %v435, 256.0
    %v500 = vmul.f32 %v436, 256.0
    %v501 = vmul.f32 %v437, 256.0
    %v502 = vmul.f32 %v438, 256.0
    %v503 = vmul.f32 %v439, 256.0
    %v504 = vmul.f32 %v440, 256.0
    %v505 = vmul.f32 %v441, 256.0
    %v506 = vmul.f32 %v442, 256.0
    %v507 = vmul.f32 %v443, 256.0
    %v508 = vmul.f32 %v444, 256.0
    %v509 = vsub.f32 %v253, %v445
    %v510 = vsub.f32 %v254, %v446
    %v511 = vsub.f32 %v255, %v447
    %v512 = vsub.f32 %v256, %v448
    %v513 = vsub.f32 %v257, %v449
    %v514 = vsub.f32 %v258, %v450
    %v515 = vsub.f32 %v259, %v451
    %v516 = vsub.f32 %v260, %v452
    %v517 = vsub.f32 %v261, %v453
    %v518 = vsub.f32 %v262, %v454
    %v519 = vsub.f32 %v263, %v455
    %v520 = vsub.f32 %v264, %v456
    %v521 = vsub.f32 %v265, %v457
    %v522 = vsub.f32 %v266, %v458
    %v523 = vsub.f32 %v267, %v459
    %v524 = vsub.f32 %v268, %v460
    %v525 = vsub.f32 %v269, %v461
    %v526 = vsub.f32 %v270, %v462
    %v527 = vsub.f32 %v271, %v463
    %v528 = vsub.f32 %v272, %v464
    %v529 = vsub.f32 %v273, %v465
    %v530 = vsub.f32 %v274, %v466
    %v531 = vsub.f32 %v275, %v467
    %v532 = vsub.f32 %v276, %v468
    %v533 = vsub.f32 %v277, %v469
    %v534 = vsub.f32 %v278, %v470
    %v535 = vsub.f32 %v279, %v471
    %v536 = vsub.f32 %v280, %v472
    %v537 = vsub.f32 %v281, %v473
    %v538 = vsub.f32 %v282, %v474
    %v539 = vsub.f32 %v283, %v475
    %v540 = vsub.f32 %v284, %v476
    %v541 = vsub.f32 %v285, %v477
    %v542 = vsub.f32 %v286, %v478
    %v543 = vsub.f32 %v287, %v479
    %v544 = vsub.f32 %v288, %v480
    %v545 = vsub.f32 %v289, %v481
    %v546 = vsub.f32 %v290, %v482
    %v547 = vsub.f32 %v291, %v483
    %v548 = vsub.f32 %v292, %v484
    %v549 = vsub.f32 %v293, %v485
    %v550 = vsub.f32 %v294, %v486
    %v551 = vsub.f32 %v295, %v487
    %v552 = vsub.f32 %v296, %v488
    %v553 = vsub.f32 %v297, %v489
    %v554 = vsub.f32 %v298, %v490
    %v555 = vsub.f32 %v299, %v491
    %v556 = vsub.f32 %v300, %v492
    %v557 = vsub.f32 %v301, %v493
    %v558 = vsub.f32 %v302, %v494
    %v559 = vsub.f32 %v303, %v495
    %v560 = vsub.f32 %v304, %v496
    %v561 = vsub.f32 %v305, %v497
    %v562 = vsub.f32 %v306, %v498
    %v563 = vsub.f32 %v307, %v499
    %v564 = vsub.f32 %v308, %v500
    %v565 = vsub.f32 %v309, %v501
    %v566 = vsub.f32 %v310, %v502
    %v567 = vsub.f32 %v311, %v503
    %v568 = vsub.f32 %v312, %v504
    %v569 = vsub.f32 %v313, %v505
    %v570 = vsub.f32 %v314, %v506
    %v571 = vsub.f32 %v315, %v507
    %v572 = vsub.f32 %v316, %v508
    %v573 = vpack.c.bf16 %v510, %v509
    %v574 = vpack.c.bf16 %v512, %v511
    %v575 = vpack.c.bf16 %v514, %v513
    %v576 = vpack.c.bf16 %v516, %v515
    %v577 = vpack.c.bf16 %v518, %v517
    %v578 = vpack.c.bf16 %v520, %v519
    %v579 = vpack.c.bf16 %v522, %v521
    %v580 = vpack.c.bf16 %v524, %v523
    %v581 = vpack.c.bf16 %v526, %v525
    %v582 = vpack.c.bf16 %v528, %v527
    %v583 = vpack.c.bf16 %v530, %v529
    %v584 = vpack.c.bf16 %v532, %v531
    %v585 = vpack.c.bf16 %v534, %v533
    %v586 = vpack.c.bf16 %v536, %v535
    %v587 = vpack.c.bf16 %v538, %v537
    %v588 = vpack.c.bf16 %v540, %v539
    %v589 = vpack.c.bf16 %v542, %v541
    %v590 = vpack.c.bf16 %v544, %v543
    %v591 = vpack.c.bf16 %v546, %v545
    %v592 = vpack.c.bf16 %v548, %v547
    %v593 = vpack.c.bf16 %v550, %v549
    %v594 = vpack.c.bf16 %v552, %v551
    %v595 = vpack.c.bf16 %v554, %v553
    %v596 = vpack.c.bf16 %v556, %v555
    %v597 = vpack.c.bf16 %v558, %v557
    %v598 = vpack.c.bf16 %v560, %v559
    %v599 = vpack.c.bf16 %v562, %v561
    %v600 = vpack.c.bf16 %v564, %v563
    %v601 = vpack.c.bf16 %v566, %v565
    %v602 = vpack.c.bf16 %v568, %v567
    %v603 = vpack.c.bf16 %v570, %v569
    %v604 = vpack.c.bf16 %v572, %v571
    %v605 = vpack.c.bf16 %v382, %v381
    %v606 = vpack.c.bf16 %v384, %v383
    %v607 = vpack.c.bf16 %v386, %v385
    %v608 = vpack.c.bf16 %v388, %v387
    %v609 = vpack.c.bf16 %v390, %v389
    %v610 = vpack.c.bf16 %v392, %v391
    %v611 = vpack.c.bf16 %v394, %v393
    %v612 = vpack.c.bf16 %v396, %v395
    %v613 = vpack.c.bf16 %v398, %v397
    %v614 = vpack.c.bf16 %v400, %v399
    %v615 = vpack.c.bf16 %v402, %v401
    %v616 = vpack.c.bf16 %v404, %v403
    %v617 = vpack.c.bf16 %v406, %v405
    %v618 = vpack.c.bf16 %v408, %v407
    %v619 = vpack.c.bf16 %v410, %v409
    %v620 = vpack.c.bf16 %v412, %v411
    %v621 = vpack.c.bf16 %v414, %v413
    %v622 = vpack.c.bf16 %v416, %v415
    %v623 = vpack.c.bf16 %v418, %v417
    %v624 = vpack.c.bf16 %v420, %v419
    %v625 = vpack.c.bf16 %v422, %v421
    %v626 = vpack.c.bf16 %v424, %v423
    %v627 = vpack.c.bf16 %v426, %v425
    %v628 = vpack.c.bf16 %v428, %v427
    %v629 = vpack.c.bf16 %v430, %v429
    %v630 = vpack.c.bf16 %v432, %v431
    %v631 = vpack.c.bf16 %v434, %v433
    %v632 = vpack.c.bf16 %v436, %v435
    %v633 = vpack.c.bf16 %v438, %v437
    %v634 = vpack.c.bf16 %v440, %v439
    %v635 = vpack.c.bf16 %v442, %v441
    %v636 = vpack.c.bf16 %v444, %v443
    %s637 = smul.u32 0, 128
    %s638 = sshra.s32 %s637, 3
    %s639 = sand.u32 %s637, 7
    %s640 = smul.addr %s638, 4
    %s641 = scalar_lea.vmem [#allocation6], %s640
    %v642 = vld [vmem:[%s641] sm:$0xf]
    %v643 = vld [vmem:[%s641 + $0x4] sm:$0xf]
    %v644 = vld [vmem:[%s641 + $0x8] sm:$0xf]
    %v645 = vld [vmem:[%s641 + $0xc] sm:$0xf]
    %v646 = vld [vmem:[%s641 + $0x10] sm:$0xf]
    %v647 = vld [vmem:[%s641 + $0x14] sm:$0xf]
    %v648 = vld [vmem:[%s641 + $0x18] sm:$0xf]
    %v649 = vld [vmem:[%s641 + $0x1c] sm:$0xf]
    %v650 = vld [vmem:[%s641 + $0x20] sm:$0xf]
    %v651 = vld [vmem:[%s641 + $0x24] sm:$0xf]
    %v652 = vld [vmem:[%s641 + $0x28] sm:$0xf]
    %v653 = vld [vmem:[%s641 + $0x2c] sm:$0xf]
    %v654 = vld [vmem:[%s641 + $0x30] sm:$0xf]
    %v655 = vld [vmem:[%s641 + $0x34] sm:$0xf]
    %v656 = vld [vmem:[%s641 + $0x38] sm:$0xf]
    %v657 = vld [vmem:[%s641 + $0x3c] sm:$0xf]
    %s658 = smul.addr %s638, 4
    %s659 = scalar_lea.vmem [#allocation8], %s658
    %v660 = vld [vmem:[%s659] sm:$0xf]
    %v661 = vld [vmem:[%s659 + $0x4] sm:$0xf]
    %v662 = vld [vmem:[%s659 + $0x8] sm:$0xf]
    %v663 = vld [vmem:[%s659 + $0xc] sm:$0xf]
    %v664 = vld [vmem:[%s659 + $0x10] sm:$0xf]
    %v665 = vld [vmem:[%s659 + $0x14] sm:$0xf]
    %v666 = vld [vmem:[%s659 + $0x18] sm:$0xf]
    %v667 = vld [vmem:[%s659 + $0x1c] sm:$0xf]
    %v668 = vld [vmem:[%s659 + $0x20] sm:$0xf]
    %v669 = vld [vmem:[%s659 + $0x24] sm:$0xf]
    %v670 = vld [vmem:[%s659 + $0x28] sm:$0xf]
    %v671 = vld [vmem:[%s659 + $0x2c] sm:$0xf]
    %v672 = vld [vmem:[%s659 + $0x30] sm:$0xf]
    %v673 = vld [vmem:[%s659 + $0x34] sm:$0xf]
    %v674 = vld [vmem:[%s659 + $0x38] sm:$0xf]
    %v675 = vld [vmem:[%s659 + $0x3c] sm:$0xf]
    %v676 = vld [vmem:[#allocation2] sm:$0xff]
    %v677 = vld [vmem:[#allocation2 + $0x8] sm:$0xff]
    %v678 = vld [vmem:[#allocation2 + $0x10] sm:$0xff]
    %v679 = vld [vmem:[#allocation2 + $0x18] sm:$0xff]
    %v680 = vld [vmem:[#allocation2 + $0x20] sm:$0xff]
    %v681 = vld [vmem:[#allocation2 + $0x28] sm:$0xff]
    %v682 = vld [vmem:[#allocation2 + $0x30] sm:$0xff]
    %v683 = vld [vmem:[#allocation2 + $0x38] sm:$0xff]
    %v684 = vld [vmem:[#allocation2 + $0x40] sm:$0xff]
    %v685 = vld [vmem:[#allocation2 + $0x48] sm:$0xff]
    %v686 = vld [vmem:[#allocation2 + $0x50] sm:$0xff]
    %v687 = vld [vmem:[#allocation2 + $0x58] sm:$0xff]
    %v688 = vld [vmem:[#allocation2 + $0x60] sm:$0xff]
    %v689 = vld [vmem:[#allocation2 + $0x68] sm:$0xff]
    %v690 = vld [vmem:[#allocation2 + $0x70] sm:$0xff]
    %v691 = vld [vmem:[#allocation2 + $0x78] sm:$0xff]
    %v692 = vld [vmem:[#allocation2 + $0x80] sm:$0xff]
    %v693 = vld [vmem:[#allocation2 + $0x88] sm:$0xff]
    %v694 = vld [vmem:[#allocation2 + $0x90] sm:$0xff]
    %v695 = vld [vmem:[#allocation2 + $0x98] sm:$0xff]
    %v696 = vld [vmem:[#allocation2 + $0xa0] sm:$0xff]
    %v697 = vld [vmem:[#allocation2 + $0xa8] sm:$0xff]
    %v698 = vld [vmem:[#allocation2 + $0xb0] sm:$0xff]
    %v699 = vld [vmem:[#allocation2 + $0xb8] sm:$0xff]
    %v700 = vld [vmem:[#allocation2 + $0xc0] sm:$0xff]
    %v701 = vld [vmem:[#allocation2 + $0xc8] sm:$0xff]
    %v702 = vld [vmem:[#allocation2 + $0xd0] sm:$0xff]
    %v703 = vld [vmem:[#allocation2 + $0xd8] sm:$0xff]
    %v704 = vld [vmem:[#allocation2 + $0xe0] sm:$0xff]
    %v705 = vld [vmem:[#allocation2 + $0xe8] sm:$0xff]
    %v706 = vld [vmem:[#allocation2 + $0xf0] sm:$0xff]
    %v707 = vld [vmem:[#allocation2 + $0xf8] sm:$0xff]
    %v708 = vld [vmem:[#allocation2 + $0x100] sm:$0xff]
    %v709 = vld [vmem:[#allocation2 + $0x108] sm:$0xff]
    %v710 = vld [vmem:[#allocation2 + $0x110] sm:$0xff]
    %v711 = vld [vmem:[#allocation2 + $0x118] sm:$0xff]
    %v712 = vld [vmem:[#allocation2 + $0x120] sm:$0xff]
    %v713 = vld [vmem:[#allocation2 + $0x128] sm:$0xff]
    %v714 = vld [vmem:[#allocation2 + $0x130] sm:$0xff]
    %v715 = vld [vmem:[#allocation2 + $0x138] sm:$0xff]
    %v716 = vld [vmem:[#allocation2 + $0x140] sm:$0xff]
    %v717 = vld [vmem:[#allocation2 + $0x148] sm:$0xff]
    %v718 = vld [vmem:[#allocation2 + $0x150] sm:$0xff]
    %v719 = vld [vmem:[#allocation2 + $0x158] sm:$0xff]
    %v720 = vld [vmem:[#allocation2 + $0x160] sm:$0xff]
    %v721 = vld [vmem:[#allocation2 + $0x168] sm:$0xff]
    %v722 = vld [vmem:[#allocation2 + $0x170] sm:$0xff]
    %v723 = vld [vmem:[#allocation2 + $0x178] sm:$0xff]
    %v724 = vld [vmem:[#allocation2 + $0x180] sm:$0xff]
    %v725 = vld [vmem:[#allocation2 + $0x188] sm:$0xff]
    %v726 = vld [vmem:[#allocation2 + $0x190] sm:$0xff]
    %v727 = vld [vmem:[#allocation2 + $0x198] sm:$0xff]
    %v728 = vld [vmem:[#allocation2 + $0x1a0] sm:$0xff]
    %v729 = vld [vmem:[#allocation2 + $0x1a8] sm:$0xff]
    %v730 = vld [vmem:[#allocation2 + $0x1b0] sm:$0xff]
    %v731 = vld [vmem:[#allocation2 + $0x1b8] sm:$0xff]
    %v732 = vld [vmem:[#allocation2 + $0x1c0] sm:$0xff]
    %v733 = vld [vmem:[#allocation2 + $0x1c8] sm:$0xff]
    %v734 = vld [vmem:[#allocation2 + $0x1d0] sm:$0xff]
    %v735 = vld [vmem:[#allocation2 + $0x1d8] sm:$0xff]
    %v736 = vld [vmem:[#allocation2 + $0x1e0] sm:$0xff]
    %v737 = vld [vmem:[#allocation2 + $0x1e8] sm:$0xff]
    %v738 = vld [vmem:[#allocation2 + $0x1f0] sm:$0xff]
    %v739 = vld [vmem:[#allocation2 + $0x1f8] sm:$0xff]
    %v756 = vunpack.c.l.b16 %v642
    %v757 = vunpack.c.l.b16 %v643
    %v758 = vunpack.c.l.b16 %v644
    %v759 = vunpack.c.l.b16 %v645
    %v760 = vunpack.c.l.b16 %v646
    %v761 = vunpack.c.l.b16 %v647
    %v762 = vunpack.c.l.b16 %v648
    %v763 = vunpack.c.l.b16 %v649
    %v764 = vunpack.c.l.b16 %v650
    %v765 = vunpack.c.l.b16 %v651
    %v766 = vunpack.c.l.b16 %v652
    %v767 = vunpack.c.l.b16 %v653
    %v768 = vunpack.c.l.b16 %v654
    %v769 = vunpack.c.l.b16 %v655
    %v770 = vunpack.c.l.b16 %v656
    %v771 = vunpack.c.l.b16 %v657
    %v772 = vpack.c.b16 %v757, %v756
    %v773 = vpack.c.b16 %v759, %v758
    %v774 = vpack.c.b16 %v761, %v760
    %v775 = vpack.c.b16 %v763, %v762
    %v776 = vpack.c.b16 %v765, %v764
    %v777 = vpack.c.b16 %v767, %v766
    %v778 = vpack.c.b16 %v769, %v768
    %v779 = vpack.c.b16 %v771, %v770
    %788 = vmatprep.subr.bf16.mxu0 0
    %789 = vmatpush1.bf16.msra.mxu0 %v779
    %790 = vmatprep.subr.bf16.mxu0 0
    %791 = vmatpush1.bf16.msra.mxu0 %v778
    %792 = vmatprep.subr.bf16.mxu0 0
    %793 = vmatpush1.bf16.msra.mxu0 %v777
    %794 = vmatprep.subr.bf16.mxu0 0
    %795 = vmatpush1.bf16.msra.mxu0 %v776
    %796 = vmatprep.subr.bf16.mxu0 0
    %797 = vmatpush1.bf16.msra.mxu0 %v775
    %798 = vmatprep.subr.bf16.mxu0 0
    %799 = vmatpush1.bf16.msra.mxu0 %v774
    %800 = vmatprep.subr.bf16.mxu0 0
    %801 = vmatpush1.bf16.msra.mxu0 %v773
    %802 = vmatprep.subr.bf16.mxu0 0
    %803 = vmatpush1.bf16.msra.mxu0 %v772
    %804 = vmatprep.subr.bf16.mxu0 0
    %805 = vmatpush2.bf16.msra.mxu0 0
    %806 = vmatprep.subr.bf16.mxu0 0
    %807 = vmatpush2.bf16.msra.mxu0 0
    %808 = vmatprep.subr.bf16.mxu0 0
    %809 = vmatpush2.bf16.msra.mxu0 0
    %810 = vmatprep.subr.bf16.mxu0 0
    %811 = vmatpush2.bf16.msra.mxu0 0
    %812 = vmatprep.subr.bf16.mxu0 0
    %813 = vmatpush2.bf16.msra.mxu0 0
    %814 = vmatprep.subr.bf16.mxu0 0
    %815 = vmatpush2.bf16.msra.mxu0 0
    %816 = vmatprep.subr.bf16.mxu0 0
    %817 = vmatpush2.bf16.msra.mxu0 0
    %818 = vmatprep.subr.bf16.mxu0 0
    %819 = vmatpush2.bf16.msra.mxu0 0
    %820 = vmatprep.mubr.bf16.mxu0 0
    %821 = vmatmul.mubr.bf16.gmra.mxu0 %v605
    %v822 = vpop.f32.mrf.mxu0
    %v823 = vadd.f32 0.0, %v822
    %v824 = vpop.f32.mrf.mxu0
    %v825 = vpop.f32.mrf.mxu0
    %v826 = vadd.f32 0.0, %v825
    %v827 = vpop.f32.mrf.mxu0
    %828 = vmatprep.mubr.bf16.mxu0 0
    %829 = vmatmul.mubr.bf16.gmra.mxu0 %v606
    %v830 = vpop.f32.mrf.mxu0
    %v831 = vadd.f32 0.0, %v830
    %v832 = vpop.f32.mrf.mxu0
    %v833 = vpop.f32.mrf.mxu0
    %v834 = vadd.f32 0.0, %v833
    %v835 = vpop.f32.mrf.mxu0
    %836 = vmatprep.mubr.bf16.mxu0 0
    %837 = vmatmul.mubr.bf16.gmra.mxu0 %v607
    %v838 = vpop.f32.mrf.mxu0
    %v839 = vadd.f32 0.0, %v838
    %v840 = vpop.f32.mrf.mxu0
    %v841 = vpop.f32.mrf.mxu0
    %v842 = vadd.f32 0.0, %v841
    %v843 = vpop.f32.mrf.mxu0
    %844 = vmatprep.mubr.bf16.mxu0 0
    %845 = vmatmul.mubr.bf16.gmra.mxu0 %v608
    %v846 = vpop.f32.mrf.mxu0
    %v847 = vadd.f32 0.0, %v846
    %v848 = vpop.f32.mrf.mxu0
    %v849 = vpop.f32.mrf.mxu0
    %v850 = vadd.f32 0.0, %v849
    %v851 = vpop.f32.mrf.mxu0
    %852 = vmatprep.mubr.bf16.mxu0 0
    %853 = vmatmul.mubr.bf16.gmra.mxu0 %v609
    %v854 = vpop.f32.mrf.mxu0
    %v855 = vadd.f32 0.0, %v854
    %v856 = vpop.f32.mrf.mxu0
    %v857 = vpop.f32.mrf.mxu0
    %v858 = vadd.f32 0.0, %v857
    %v859 = vpop.f32.mrf.mxu0
    %860 = vmatprep.mubr.bf16.mxu0 0
    %861 = vmatmul.mubr.bf16.gmra.mxu0 %v610
    %v862 = vpop.f32.mrf.mxu0
    %v863 = vadd.f32 0.0, %v862
    %v864 = vpop.f32.mrf.mxu0
    %v865 = vpop.f32.mrf.mxu0
    %v866 = vadd.f32 0.0, %v865
    %v867 = vpop.f32.mrf.mxu0
    %868 = vmatprep.mubr.bf16.mxu0 0
    %869 = vmatmul.mubr.bf16.gmra.mxu0 %v611
    %v870 = vpop.f32.mrf.mxu0
    %v871 = vadd.f32 0.0, %v870
    %v872 = vpop.f32.mrf.mxu0
    %v873 = vpop.f32.mrf.mxu0
    %v874 = vadd.f32 0.0, %v873
    %v875 = vpop.f32.mrf.mxu0
    %876 = vmatprep.mubr.bf16.mxu0 0
    %877 = vmatmul.mubr.bf16.gmra.mxu0 %v612
    %v878 = vpop.f32.mrf.mxu0
    %v879 = vadd.f32 0.0, %v878
    %v880 = vpop.f32.mrf.mxu0
    %v881 = vpop.f32.mrf.mxu0
    %v882 = vadd.f32 0.0, %v881
    %v883 = vpop.f32.mrf.mxu0
    %884 = vmatprep.mubr.bf16.mxu0 0
    %885 = vmatmul.mubr.bf16.gmra.mxu0 %v613
    %v886 = vpop.f32.mrf.mxu0
    %v887 = vadd.f32 0.0, %v886
    %v888 = vpop.f32.mrf.mxu0
    %v889 = vpop.f32.mrf.mxu0
    %v890 = vadd.f32 0.0, %v889
    %v891 = vpop.f32.mrf.mxu0
    %892 = vmatprep.mubr.bf16.mxu0 0
    %893 = vmatmul.mubr.bf16.gmra.mxu0 %v614
    %v894 = vpop.f32.mrf.mxu0
    %v895 = vadd.f32 0.0, %v894
    %v896 = vpop.f32.mrf.mxu0
    %v897 = vpop.f32.mrf.mxu0
    %v898 = vadd.f32 0.0, %v897
    %v899 = vpop.f32.mrf.mxu0
    %900 = vmatprep.mubr.bf16.mxu0 0
    %901 = vmatmul.mubr.bf16.gmra.mxu0 %v615
    %v902 = vpop.f32.mrf.mxu0
    %v903 = vadd.f32 0.0, %v902
    %v904 = vpop.f32.mrf.mxu0
    %v905 = vpop.f32.mrf.mxu0
    %v906 = vadd.f32 0.0, %v905
    %v907 = vpop.f32.mrf.mxu0
    %908 = vmatprep.mubr.bf16.mxu0 0
    %909 = vmatmul.mubr.bf16.gmra.mxu0 %v616
    %v910 = vpop.f32.mrf.mxu0
    %v911 = vadd.f32 0.0, %v910
    %v912 = vpop.f32.mrf.mxu0
    %v913 = vpop.f32.mrf.mxu0
    %v914 = vadd.f32 0.0, %v913
    %v915 = vpop.f32.mrf.mxu0
    %916 = vmatprep.mubr.bf16.mxu0 0
    %917 = vmatmul.mubr.bf16.gmra.mxu0 %v617
    %v918 = vpop.f32.mrf.mxu0
    %v919 = vadd.f32 0.0, %v918
    %v920 = vpop.f32.mrf.mxu0
    %v921 = vpop.f32.mrf.mxu0
    %v922 = vadd.f32 0.0, %v921
    %v923 = vpop.f32.mrf.mxu0
    %924 = vmatprep.mubr.bf16.mxu0 0
    %925 = vmatmul.mubr.bf16.gmra.mxu0 %v618
    %v926 = vpop.f32.mrf.mxu0
    %v927 = vadd.f32 0.0, %v926
    %v928 = vpop.f32.mrf.mxu0
    %v929 = vpop.f32.mrf.mxu0
    %v930 = vadd.f32 0.0, %v929
    %v931 = vpop.f32.mrf.mxu0
    %932 = vmatprep.mubr.bf16.mxu0 0
    %933 = vmatmul.mubr.bf16.gmra.mxu0 %v619
    %v934 = vpop.f32.mrf.mxu0
    %v935 = vadd.f32 0.0, %v934
    %v936 = vpop.f32.mrf.mxu0
    %v937 = vpop.f32.mrf.mxu0
    %v938 = vadd.f32 0.0, %v937
    %v939 = vpop.f32.mrf.mxu0
    %940 = vmatprep.mubr.bf16.mxu0 0
    %941 = vmatmul.mubr.bf16.gmra.mxu0 %v620
    %v942 = vpop.f32.mrf.mxu0
    %v943 = vadd.f32 0.0, %v942
    %v944 = vpop.f32.mrf.mxu0
    %v945 = vpop.f32.mrf.mxu0
    %v946 = vadd.f32 0.0, %v945
    %v947 = vpop.f32.mrf.mxu0
    %948 = vmatprep.mubr.bf16.mxu0 0
    %949 = vmatmul.mubr.bf16.gmra.mxu0 %v621
    %v950 = vpop.f32.mrf.mxu0
    %v951 = vadd.f32 0.0, %v950
    %v952 = vpop.f32.mrf.mxu0
    %v953 = vpop.f32.mrf.mxu0
    %v954 = vadd.f32 0.0, %v953
    %v955 = vpop.f32.mrf.mxu0
    %956 = vmatprep.mubr.bf16.mxu0 0
    %957 = vmatmul.mubr.bf16.gmra.mxu0 %v622
    %v958 = vpop.f32.mrf.mxu0
    %v959 = vadd.f32 0.0, %v958
    %v960 = vpop.f32.mrf.mxu0
    %v961 = vpop.f32.mrf.mxu0
    %v962 = vadd.f32 0.0, %v961
    %v963 = vpop.f32.mrf.mxu0
    %964 = vmatprep.mubr.bf16.mxu0 0
    %965 = vmatmul.mubr.bf16.gmra.mxu0 %v623
    %v966 = vpop.f32.mrf.mxu0
    %v967 = vadd.f32 0.0, %v966
    %v968 = vpop.f32.mrf.mxu0
    %v969 = vpop.f32.mrf.mxu0
    %v970 = vadd.f32 0.0, %v969
    %v971 = vpop.f32.mrf.mxu0
    %972 = vmatprep.mubr.bf16.mxu0 0
    %973 = vmatmul.mubr.bf16.gmra.mxu0 %v624
    %v974 = vpop.f32.mrf.mxu0
    %v975 = vadd.f32 0.0, %v974
    %v976 = vpop.f32.mrf.mxu0
    %v977 = vpop.f32.mrf.mxu0
    %v978 = vadd.f32 0.0, %v977
    %v979 = vpop.f32.mrf.mxu0
    %980 = vmatprep.mubr.bf16.mxu0 0
    %981 = vmatmul.mubr.bf16.gmra.mxu0 %v625
    %v982 = vpop.f32.mrf.mxu0
    %v983 = vadd.f32 0.0, %v982
    %v984 = vpop.f32.mrf.mxu0
    %v985 = vpop.f32.mrf.mxu0
    %v986 = vadd.f32 0.0, %v985
    %v987 = vpop.f32.mrf.mxu0
    %988 = vmatprep.mubr.bf16.mxu0 0
    %989 = vmatmul.mubr.bf16.gmra.mxu0 %v626
    %v990 = vpop.f32.mrf.mxu0
    %v991 = vadd.f32 0.0, %v990
    %v992 = vpop.f32.mrf.mxu0
    %v993 = vpop.f32.mrf.mxu0
    %v994 = vadd.f32 0.0, %v993
    %v995 = vpop.f32.mrf.mxu0
    %996 = vmatprep.mubr.bf16.mxu0 0
    %997 = vmatmul.mubr.bf16.gmra.mxu0 %v627
    %v998 = vpop.f32.mrf.mxu0
    %v999 = vadd.f32 0.0, %v998
    %v1000 = vpop.f32.mrf.mxu0
    %v1001 = vpop.f32.mrf.mxu0
    %v1002 = vadd.f32 0.0, %v1001
    %v1003 = vpop.f32.mrf.mxu0
    %1004 = vmatprep.mubr.bf16.mxu0 0
    %1005 = vmatmul.mubr.bf16.gmra.mxu0 %v628
    %v1006 = vpop.f32.mrf.mxu0
    %v1007 = vadd.f32 0.0, %v1006
    %v1008 = vpop.f32.mrf.mxu0
    %v1009 = vpop.f32.mrf.mxu0
    %v1010 = vadd.f32 0.0, %v1009
    %v1011 = vpop.f32.mrf.mxu0
    %1012 = vmatprep.mubr.bf16.mxu0 0
    %1013 = vmatmul.mubr.bf16.gmra.mxu0 %v629
    %v1014 = vpop.f32.mrf.mxu0
    %v1015 = vadd.f32 0.0, %v1014
    %v1016 = vpop.f32.mrf.mxu0
    %v1017 = vpop.f32.mrf.mxu0
    %v1018 = vadd.f32 0.0, %v1017
    %v1019 = vpop.f32.mrf.mxu0
    %1020 = vmatprep.mubr.bf16.mxu0 0
    %1021 = vmatmul.mubr.bf16.gmra.mxu0 %v630
    %v1022 = vpop.f32.mrf.mxu0
    %v1023 = vadd.f32 0.0, %v1022
    %v1024 = vpop.f32.mrf.mxu0
    %v1025 = vpop.f32.mrf.mxu0
    %v1026 = vadd.f32 0.0, %v1025
    %v1027 = vpop.f32.mrf.mxu0
    %1028 = vmatprep.mubr.bf16.mxu0 0
    %1029 = vmatmul.mubr.bf16.gmra.mxu0 %v631
    %v1030 = vpop.f32.mrf.mxu0
    %v1031 = vadd.f32 0.0, %v1030
    %v1032 = vpop.f32.mrf.mxu0
    %v1033 = vpop.f32.mrf.mxu0
    %v1034 = vadd.f32 0.0, %v1033
    %v1035 = vpop.f32.mrf.mxu0
    %1036 = vmatprep.mubr.bf16.mxu0 0
    %1037 = vmatmul.mubr.bf16.gmra.mxu0 %v632
    %v1038 = vpop.f32.mrf.mxu0
    %v1039 = vadd.f32 0.0, %v1038
    %v1040 = vpop.f32.mrf.mxu0
    %v1041 = vpop.f32.mrf.mxu0
    %v1042 = vadd.f32 0.0, %v1041
    %v1043 = vpop.f32.mrf.mxu0
    %1044 = vmatprep.mubr.bf16.mxu0 0
    %1045 = vmatmul.mubr.bf16.gmra.mxu0 %v633
    %v1046 = vpop.f32.mrf.mxu0
    %v1047 = vadd.f32 0.0, %v1046
    %v1048 = vpop.f32.mrf.mxu0
    %v1049 = vpop.f32.mrf.mxu0
    %v1050 = vadd.f32 0.0, %v1049
    %v1051 = vpop.f32.mrf.mxu0
    %1052 = vmatprep.mubr.bf16.mxu0 0
    %1053 = vmatmul.mubr.bf16.gmra.mxu0 %v634
    %v1054 = vpop.f32.mrf.mxu0
    %v1055 = vadd.f32 0.0, %v1054
    %v1056 = vpop.f32.mrf.mxu0
    %v1057 = vpop.f32.mrf.mxu0
    %v1058 = vadd.f32 0.0, %v1057
    %v1059 = vpop.f32.mrf.mxu0
    %1060 = vmatprep.mubr.bf16.mxu0 0
    %1061 = vmatmul.mubr.bf16.gmra.mxu0 %v635
    %v1062 = vpop.f32.mrf.mxu0
    %v1063 = vadd.f32 0.0, %v1062
    %v1064 = vpop.f32.mrf.mxu0
    %v1065 = vpop.f32.mrf.mxu0
    %v1066 = vadd.f32 0.0, %v1065
    %v1067 = vpop.f32.mrf.mxu0
    %1068 = vmatprep.mubr.bf16.mxu0 0
    %1069 = vmatmul.mubr.bf16.gmra.mxu0 %v636
    %v1070 = vpop.f32.mrf.mxu0
    %v1071 = vadd.f32 0.0, %v1070
    %v1072 = vpop.f32.mrf.mxu0
    %v1073 = vpop.f32.mrf.mxu0
    %v1074 = vadd.f32 0.0, %v1073
    %v1075 = vpop.f32.mrf.mxu0
    %1076 = vdwg.mxu0
    %v1077 = vmul.f32 %v823, 65536.0
    %v1078 = vmul.f32 %v826, 65536.0
    %v1079 = vmul.f32 %v831, 65536.0
    %v1080 = vmul.f32 %v834, 65536.0
    %v1081 = vmul.f32 %v839, 65536.0
    %v1082 = vmul.f32 %v842, 65536.0
    %v1083 = vmul.f32 %v847, 65536.0
    %v1084 = vmul.f32 %v850, 65536.0
    %v1085 = vmul.f32 %v855, 65536.0
    %v1086 = vmul.f32 %v858, 65536.0
    %v1087 = vmul.f32 %v863, 65536.0
    %v1088 = vmul.f32 %v866, 65536.0
    %v1089 = vmul.f32 %v871, 65536.0
    %v1090 = vmul.f32 %v874, 65536.0
    %v1091 = vmul.f32 %v879, 65536.0
    %v1092 = vmul.f32 %v882, 65536.0
    %v1093 = vmul.f32 %v887, 65536.0
    %v1094 = vmul.f32 %v890, 65536.0
    %v1095 = vmul.f32 %v895, 65536.0
    %v1096 = vmul.f32 %v898, 65536.0
    %v1097 = vmul.f32 %v903, 65536.0
    %v1098 = vmul.f32 %v906, 65536.0
    %v1099 = vmul.f32 %v911, 65536.0
    %v1100 = vmul.f32 %v914, 65536.0
    %v1101 = vmul.f32 %v919, 65536.0
    %v1102 = vmul.f32 %v922, 65536.0
    %v1103 = vmul.f32 %v927, 65536.0
    %v1104 = vmul.f32 %v930, 65536.0
    %v1105 = vmul.f32 %v935, 65536.0
    %v1106 = vmul.f32 %v938, 65536.0
    %v1107 = vmul.f32 %v943, 65536.0
    %v1108 = vmul.f32 %v946, 65536.0
    %v1109 = vmul.f32 %v951, 65536.0
    %v1110 = vmul.f32 %v954, 65536.0
    %v1111 = vmul.f32 %v959, 65536.0
    %v1112 = vmul.f32 %v962, 65536.0
    %v1113 = vmul.f32 %v967, 65536.0
    %v1114 = vmul.f32 %v970, 65536.0
    %v1115 = vmul.f32 %v975, 65536.0
    %v1116 = vmul.f32 %v978, 65536.0
    %v1117 = vmul.f32 %v983, 65536.0
    %v1118 = vmul.f32 %v986, 65536.0
    %v1119 = vmul.f32 %v991, 65536.0
    %v1120 = vmul.f32 %v994, 65536.0
    %v1121 = vmul.f32 %v999, 65536.0
    %v1122 = vmul.f32 %v1002, 65536.0
    %v1123 = vmul.f32 %v1007, 65536.0
    %v1124 = vmul.f32 %v1010, 65536.0
    %v1125 = vmul.f32 %v1015, 65536.0
    %v1126 = vmul.f32 %v1018, 65536.0
    %v1127 = vmul.f32 %v1023, 65536.0
    %v1128 = vmul.f32 %v1026, 65536.0
    %v1129 = vmul.f32 %v1031, 65536.0
    %v1130 = vmul.f32 %v1034, 65536.0
    %v1131 = vmul.f32 %v1039, 65536.0
    %v1132 = vmul.f32 %v1042, 65536.0
    %v1133 = vmul.f32 %v1047, 65536.0
    %v1134 = vmul.f32 %v1050, 65536.0
    %v1135 = vmul.f32 %v1055, 65536.0
    %v1136 = vmul.f32 %v1058, 65536.0
    %v1137 = vmul.f32 %v1063, 65536.0
    %v1138 = vmul.f32 %v1066, 65536.0
    %v1139 = vmul.f32 %v1071, 65536.0
    %v1140 = vmul.f32 %v1074, 65536.0
    %1141 = vmatprep.subr.bf16.mxu0 0
    %1142 = vmatpush1.bf16.msra.mxu0 %v779
    %1143 = vmatprep.subr.bf16.mxu0 0
    %1144 = vmatpush1.bf16.msra.mxu0 %v778
    %1145 = vmatprep.subr.bf16.mxu0 0
    %1146 = vmatpush1.bf16.msra.mxu0 %v777
    %1147 = vmatprep.subr.bf16.mxu0 0
    %1148 = vmatpush1.bf16.msra.mxu0 %v776
    %1149 = vmatprep.subr.bf16.mxu0 0
    %1150 = vmatpush1.bf16.msra.mxu0 %v775
    %1151 = vmatprep.subr.bf16.mxu0 0
    %1152 = vmatpush1.bf16.msra.mxu0 %v774
    %1153 = vmatprep.subr.bf16.mxu0 0
    %1154 = vmatpush1.bf16.msra.mxu0 %v773
    %1155 = vmatprep.subr.bf16.mxu0 0
    %1156 = vmatpush1.bf16.msra.mxu0 %v772
    %1157 = vmatprep.subr.bf16.mxu0 0
    %1158 = vmatpush2.bf16.msra.mxu0 0
    %1159 = vmatprep.subr.bf16.mxu0 0
    %1160 = vmatpush2.bf16.msra.mxu0 0
    %1161 = vmatprep.subr.bf16.mxu0 0
    %1162 = vmatpush2.bf16.msra.mxu0 0
    %1163 = vmatprep.subr.bf16.mxu0 0
    %1164 = vmatpush2.bf16.msra.mxu0 0
    %1165 = vmatprep.subr.bf16.mxu0 0
    %1166 = vmatpush2.bf16.msra.mxu0 0
    %1167 = vmatprep.subr.bf16.mxu0 0
    %1168 = vmatpush2.bf16.msra.mxu0 0
    %1169 = vmatprep.subr.bf16.mxu0 0
    %1170 = vmatpush2.bf16.msra.mxu0 0
    %1171 = vmatprep.subr.bf16.mxu0 0
    %1172 = vmatpush2.bf16.msra.mxu0 0
    %1173 = vmatprep.mubr.bf16.mxu0 0
    %1174 = vmatmul.mubr.bf16.gmra.mxu0 %v573
    %v1175 = vpop.f32.mrf.mxu0
    %v1176 = vadd.f32 0.0, %v1175
    %v1177 = vpop.f32.mrf.mxu0
    %v1178 = vpop.f32.mrf.mxu0
    %v1179 = vadd.f32 0.0, %v1178
    %v1180 = vpop.f32.mrf.mxu0
    %1181 = vmatprep.mubr.bf16.mxu0 0
    %1182 = vmatmul.mubr.bf16.gmra.mxu0 %v574
    %v1183 = vpop.f32.mrf.mxu0
    %v1184 = vadd.f32 0.0, %v1183
    %v1185 = vpop.f32.mrf.mxu0
    %v1186 = vpop.f32.mrf.mxu0
    %v1187 = vadd.f32 0.0, %v1186
    %v1188 = vpop.f32.mrf.mxu0
    %1189 = vmatprep.mubr.bf16.mxu0 0
    %1190 = vmatmul.mubr.bf16.gmra.mxu0 %v575
    %v1191 = vpop.f32.mrf.mxu0
    %v1192 = vadd.f32 0.0, %v1191
    %v1193 = vpop.f32.mrf.mxu0
    %v1194 = vpop.f32.mrf.mxu0
    %v1195 = vadd.f32 0.0, %v1194
    %v1196 = vpop.f32.mrf.mxu0
    %1197 = vmatprep.mubr.bf16.mxu0 0
    %1198 = vmatmul.mubr.bf16.gmra.mxu0 %v576
    %v1199 = vpop.f32.mrf.mxu0
    %v1200 = vadd.f32 0.0, %v1199
    %v1201 = vpop.f32.mrf.mxu0
    %v1202 = vpop.f32.mrf.mxu0
    %v1203 = vadd.f32 0.0, %v1202
    %v1204 = vpop.f32.mrf.mxu0
    %1205 = vmatprep.mubr.bf16.mxu0 0
    %1206 = vmatmul.mubr.bf16.gmra.mxu0 %v577
    %v1207 = vpop.f32.mrf.mxu0
    %v1208 = vadd.f32 0.0, %v1207
    %v1209 = vpop.f32.mrf.mxu0
    %v1210 = vpop.f32.mrf.mxu0
    %v1211 = vadd.f32 0.0, %v1210
    %v1212 = vpop.f32.mrf.mxu0
    %1213 = vmatprep.mubr.bf16.mxu0 0
    %1214 = vmatmul.mubr.bf16.gmra.mxu0 %v578
    %v1215 = vpop.f32.mrf.mxu0
    %v1216 = vadd.f32 0.0, %v1215
    %v1217 = vpop.f32.mrf.mxu0
    %v1218 = vpop.f32.mrf.mxu0
    %v1219 = vadd.f32 0.0, %v1218
    %v1220 = vpop.f32.mrf.mxu0
    %1221 = vmatprep.mubr.bf16.mxu0 0
    %1222 = vmatmul.mubr.bf16.gmra.mxu0 %v579
    %v1223 = vpop.f32.mrf.mxu0
    %v1224 = vadd.f32 0.0, %v1223
    %v1225 = vpop.f32.mrf.mxu0
    %v1226 = vpop.f32.mrf.mxu0
    %v1227 = vadd.f32 0.0, %v1226
    %v1228 = vpop.f32.mrf.mxu0
    %1229 = vmatprep.mubr.bf16.mxu0 0
    %1230 = vmatmul.mubr.bf16.gmra.mxu0 %v580
    %v1231 = vpop.f32.mrf.mxu0
    %v1232 = vadd.f32 0.0, %v1231
    %v1233 = vpop.f32.mrf.mxu0
    %v1234 = vpop.f32.mrf.mxu0
    %v1235 = vadd.f32 0.0, %v1234
    %v1236 = vpop.f32.mrf.mxu0
    %1237 = vmatprep.mubr.bf16.mxu0 0
    %1238 = vmatmul.mubr.bf16.gmra.mxu0 %v581
    %v1239 = vpop.f32.mrf.mxu0
    %v1240 = vadd.f32 0.0, %v1239
    %v1241 = vpop.f32.mrf.mxu0
    %v1242 = vpop.f32.mrf.mxu0
    %v1243 = vadd.f32 0.0, %v1242
    %v1244 = vpop.f32.mrf.mxu0
    %1245 = vmatprep.mubr.bf16.mxu0 0
    %1246 = vmatmul.mubr.bf16.gmra.mxu0 %v582
    %v1247 = vpop.f32.mrf.mxu0
    %v1248 = vadd.f32 0.0, %v1247
    %v1249 = vpop.f32.mrf.mxu0
    %v1250 = vpop.f32.mrf.mxu0
    %v1251 = vadd.f32 0.0, %v1250
    %v1252 = vpop.f32.mrf.mxu0
    %1253 = vmatprep.mubr.bf16.mxu0 0
    %1254 = vmatmul.mubr.bf16.gmra.mxu0 %v583
    %v1255 = vpop.f32.mrf.mxu0
    %v1256 = vadd.f32 0.0, %v1255
    %v1257 = vpop.f32.mrf.mxu0
    %v1258 = vpop.f32.mrf.mxu0
    %v1259 = vadd.f32 0.0, %v1258
    %v1260 = vpop.f32.mrf.mxu0
    %1261 = vmatprep.mubr.bf16.mxu0 0
    %1262 = vmatmul.mubr.bf16.gmra.mxu0 %v584
    %v1263 = vpop.f32.mrf.mxu0
    %v1264 = vadd.f32 0.0, %v1263
    %v1265 = vpop.f32.mrf.mxu0
    %v1266 = vpop.f32.mrf.mxu0
    %v1267 = vadd.f32 0.0, %v1266
    %v1268 = vpop.f32.mrf.mxu0
    %1269 = vmatprep.mubr.bf16.mxu0 0
    %1270 = vmatmul.mubr.bf16.gmra.mxu0 %v585
    %v1271 = vpop.f32.mrf.mxu0
    %v1272 = vadd.f32 0.0, %v1271
    %v1273 = vpop.f32.mrf.mxu0
    %v1274 = vpop.f32.mrf.mxu0
    %v1275 = vadd.f32 0.0, %v1274
    %v1276 = vpop.f32.mrf.mxu0
    %1277 = vmatprep.mubr.bf16.mxu0 0
    %1278 = vmatmul.mubr.bf16.gmra.mxu0 %v586
    %v1279 = vpop.f32.mrf.mxu0
    %v1280 = vadd.f32 0.0, %v1279
    %v1281 = vpop.f32.mrf.mxu0
    %v1282 = vpop.f32.mrf.mxu0
    %v1283 = vadd.f32 0.0, %v1282
    %v1284 = vpop.f32.mrf.mxu0
    %1285 = vmatprep.mubr.bf16.mxu0 0
    %1286 = vmatmul.mubr.bf16.gmra.mxu0 %v587
    %v1287 = vpop.f32.mrf.mxu0
    %v1288 = vadd.f32 0.0, %v1287
    %v1289 = vpop.f32.mrf.mxu0
    %v1290 = vpop.f32.mrf.mxu0
    %v1291 = vadd.f32 0.0, %v1290
    %v1292 = vpop.f32.mrf.mxu0
    %1293 = vmatprep.mubr.bf16.mxu0 0
    %1294 = vmatmul.mubr.bf16.gmra.mxu0 %v588
    %v1295 = vpop.f32.mrf.mxu0
    %v1296 = vadd.f32 0.0, %v1295
    %v1297 = vpop.f32.mrf.mxu0
    %v1298 = vpop.f32.mrf.mxu0
    %v1299 = vadd.f32 0.0, %v1298
    %v1300 = vpop.f32.mrf.mxu0
    %1301 = vmatprep.mubr.bf16.mxu0 0
    %1302 = vmatmul.mubr.bf16.gmra.mxu0 %v589
    %v1303 = vpop.f32.mrf.mxu0
    %v1304 = vadd.f32 0.0, %v1303
    %v1305 = vpop.f32.mrf.mxu0
    %v1306 = vpop.f32.mrf.mxu0
    %v1307 = vadd.f32 0.0, %v1306
    %v1308 = vpop.f32.mrf.mxu0
    %1309 = vmatprep.mubr.bf16.mxu0 0
    %1310 = vmatmul.mubr.bf16.gmra.mxu0 %v590
    %v1311 = vpop.f32.mrf.mxu0
    %v1312 = vadd.f32 0.0, %v1311
    %v1313 = vpop.f32.mrf.mxu0
    %v1314 = vpop.f32.mrf.mxu0
    %v1315 = vadd.f32 0.0, %v1314
    %v1316 = vpop.f32.mrf.mxu0
    %1317 = vmatprep.mubr.bf16.mxu0 0
    %1318 = vmatmul.mubr.bf16.gmra.mxu0 %v591
    %v1319 = vpop.f32.mrf.mxu0
    %v1320 = vadd.f32 0.0, %v1319
    %v1321 = vpop.f32.mrf.mxu0
    %v1322 = vpop.f32.mrf.mxu0
    %v1323 = vadd.f32 0.0, %v1322
    %v1324 = vpop.f32.mrf.mxu0
    %1325 = vmatprep.mubr.bf16.mxu0 0
    %1326 = vmatmul.mubr.bf16.gmra.mxu0 %v592
    %v1327 = vpop.f32.mrf.mxu0
    %v1328 = vadd.f32 0.0, %v1327
    %v1329 = vpop.f32.mrf.mxu0
    %v1330 = vpop.f32.mrf.mxu0
    %v1331 = vadd.f32 0.0, %v1330
    %v1332 = vpop.f32.mrf.mxu0
    %1333 = vmatprep.mubr.bf16.mxu0 0
    %1334 = vmatmul.mubr.bf16.gmra.mxu0 %v593
    %v1335 = vpop.f32.mrf.mxu0
    %v1336 = vadd.f32 0.0, %v1335
    %v1337 = vpop.f32.mrf.mxu0
    %v1338 = vpop.f32.mrf.mxu0
    %v1339 = vadd.f32 0.0, %v1338
    %v1340 = vpop.f32.mrf.mxu0
    %1341 = vmatprep.mubr.bf16.mxu0 0
    %1342 = vmatmul.mubr.bf16.gmra.mxu0 %v594
    %v1343 = vpop.f32.mrf.mxu0
    %v1344 = vadd.f32 0.0, %v1343
    %v1345 = vpop.f32.mrf.mxu0
    %v1346 = vpop.f32.mrf.mxu0
    %v1347 = vadd.f32 0.0, %v1346
    %v1348 = vpop.f32.mrf.mxu0
    %1349 = vmatprep.mubr.bf16.mxu0 0
    %1350 = vmatmul.mubr.bf16.gmra.mxu0 %v595
    %v1351 = vpop.f32.mrf.mxu0
    %v1352 = vadd.f32 0.0, %v1351
    %v1353 = vpop.f32.mrf.mxu0
    %v1354 = vpop.f32.mrf.mxu0
    %v1355 = vadd.f32 0.0, %v1354
    %v1356 = vpop.f32.mrf.mxu0
    %1357 = vmatprep.mubr.bf16.mxu0 0
    %1358 = vmatmul.mubr.bf16.gmra.mxu0 %v596
    %v1359 = vpop.f32.mrf.mxu0
    %v1360 = vadd.f32 0.0, %v1359
    %v1361 = vpop.f32.mrf.mxu0
    %v1362 = vpop.f32.mrf.mxu0
    %v1363 = vadd.f32 0.0, %v1362
    %v1364 = vpop.f32.mrf.mxu0
    %1365 = vmatprep.mubr.bf16.mxu0 0
    %1366 = vmatmul.mubr.bf16.gmra.mxu0 %v597
    %v1367 = vpop.f32.mrf.mxu0
    %v1368 = vadd.f32 0.0, %v1367
    %v1369 = vpop.f32.mrf.mxu0
    %v1370 = vpop.f32.mrf.mxu0
    %v1371 = vadd.f32 0.0, %v1370
    %v1372 = vpop.f32.mrf.mxu0
    %1373 = vmatprep.mubr.bf16.mxu0 0
    %1374 = vmatmul.mubr.bf16.gmra.mxu0 %v598
    %v1375 = vpop.f32.mrf.mxu0
    %v1376 = vadd.f32 0.0, %v1375
    %v1377 = vpop.f32.mrf.mxu0
    %v1378 = vpop.f32.mrf.mxu0
    %v1379 = vadd.f32 0.0, %v1378
    %v1380 = vpop.f32.mrf.mxu0
    %1381 = vmatprep.mubr.bf16.mxu0 0
    %1382 = vmatmul.mubr.bf16.gmra.mxu0 %v599
    %v1383 = vpop.f32.mrf.mxu0
    %v1384 = vadd.f32 0.0, %v1383
    %v1385 = vpop.f32.mrf.mxu0
    %v1386 = vpop.f32.mrf.mxu0
    %v1387 = vadd.f32 0.0, %v1386
    %v1388 = vpop.f32.mrf.mxu0
    %1389 = vmatprep.mubr.bf16.mxu0 0
    %1390 = vmatmul.mubr.bf16.gmra.mxu0 %v600
    %v1391 = vpop.f32.mrf.mxu0
    %v1392 = vadd.f32 0.0, %v1391
    %v1393 = vpop.f32.mrf.mxu0
    %v1394 = vpop.f32.mrf.mxu0
    %v1395 = vadd.f32 0.0, %v1394
    %v1396 = vpop.f32.mrf.mxu0
    %1397 = vmatprep.mubr.bf16.mxu0 0
    %1398 = vmatmul.mubr.bf16.gmra.mxu0 %v601
    %v1399 = vpop.f32.mrf.mxu0
    %v1400 = vadd.f32 0.0, %v1399
    %v1401 = vpop.f32.mrf.mxu0
    %v1402 = vpop.f32.mrf.mxu0
    %v1403 = vadd.f32 0.0, %v1402
    %v1404 = vpop.f32.mrf.mxu0
    %1405 = vmatprep.mubr.bf16.mxu0 0
    %1406 = vmatmul.mubr.bf16.gmra.mxu0 %v602
    %v1407 = vpop.f32.mrf.mxu0
    %v1408 = vadd.f32 0.0, %v1407
    %v1409 = vpop.f32.mrf.mxu0
    %v1410 = vpop.f32.mrf.mxu0
    %v1411 = vadd.f32 0.0, %v1410
    %v1412 = vpop.f32.mrf.mxu0
    %1413 = vmatprep.mubr.bf16.mxu0 0
    %1414 = vmatmul.mubr.bf16.gmra.mxu0 %v603
    %v1415 = vpop.f32.mrf.mxu0
    %v1416 = vadd.f32 0.0, %v1415
    %v1417 = vpop.f32.mrf.mxu0
    %v1418 = vpop.f32.mrf.mxu0
    %v1419 = vadd.f32 0.0, %v1418
    %v1420 = vpop.f32.mrf.mxu0
    %1421 = vmatprep.mubr.bf16.mxu0 0
    %1422 = vmatmul.mubr.bf16.gmra.mxu0 %v604
    %v1423 = vpop.f32.mrf.mxu0
    %v1424 = vadd.f32 0.0, %v1423
    %v1425 = vpop.f32.mrf.mxu0
    %v1426 = vpop.f32.mrf.mxu0
    %v1427 = vadd.f32 0.0, %v1426
    %v1428 = vpop.f32.mrf.mxu0
    %1429 = vdwg.mxu0
    %v1446 = vunpack.c.l.b16 %v660
    %v1447 = vunpack.c.l.b16 %v661
    %v1448 = vunpack.c.l.b16 %v662
    %v1449 = vunpack.c.l.b16 %v663
    %v1450 = vunpack.c.l.b16 %v664
    %v1451 = vunpack.c.l.b16 %v665
    %v1452 = vunpack.c.l.b16 %v666
    %v1453 = vunpack.c.l.b16 %v667
    %v1454 = vunpack.c.l.b16 %v668
    %v1455 = vunpack.c.l.b16 %v669
    %v1456 = vunpack.c.l.b16 %v670
    %v1457 = vunpack.c.l.b16 %v671
    %v1458 = vunpack.c.l.b16 %v672
    %v1459 = vunpack.c.l.b16 %v673
    %v1460 = vunpack.c.l.b16 %v674
    %v1461 = vunpack.c.l.b16 %v675
    %v1462 = vpack.c.b16 %v1447, %v1446
    %v1463 = vpack.c.b16 %v1449, %v1448
    %v1464 = vpack.c.b16 %v1451, %v1450
    %v1465 = vpack.c.b16 %v1453, %v1452
    %v1466 = vpack.c.b16 %v1455, %v1454
    %v1467 = vpack.c.b16 %v1457, %v1456
    %v1468 = vpack.c.b16 %v1459, %v1458
    %v1469 = vpack.c.b16 %v1461, %v1460
    %1478 = vmatprep.subr.bf16.mxu0 0
    %1479 = vmatpush1.bf16.msra.mxu0 %v1469
    %1480 = vmatprep.subr.bf16.mxu0 0
    %1481 = vmatpush1.bf16.msra.mxu0 %v1468
    %1482 = vmatprep.subr.bf16.mxu0 0
    %1483 = vmatpush1.bf16.msra.mxu0 %v1467
    %1484 = vmatprep.subr.bf16.mxu0 0
    %1485 = vmatpush1.bf16.msra.mxu0 %v1466
    %1486 = vmatprep.subr.bf16.mxu0 0
    %1487 = vmatpush1.bf16.msra.mxu0 %v1465
    %1488 = vmatprep.subr.bf16.mxu0 0
    %1489 = vmatpush1.bf16.msra.mxu0 %v1464
    %1490 = vmatprep.subr.bf16.mxu0 0
    %1491 = vmatpush1.bf16.msra.mxu0 %v1463
    %1492 = vmatprep.subr.bf16.mxu0 0
    %1493 = vmatpush1.bf16.msra.mxu0 %v1462
    %1494 = vmatprep.subr.bf16.mxu0 0
    %1495 = vmatpush2.bf16.msra.mxu0 0
    %1496 = vmatprep.subr.bf16.mxu0 0
    %1497 = vmatpush2.bf16.msra.mxu0 0
    %1498 = vmatprep.subr.bf16.mxu0 0
    %1499 = vmatpush2.bf16.msra.mxu0 0
    %1500 = vmatprep.subr.bf16.mxu0 0
    %1501 = vmatpush2.bf16.msra.mxu0 0
    %1502 = vmatprep.subr.bf16.mxu0 0
    %1503 = vmatpush2.bf16.msra.mxu0 0
    %1504 = vmatprep.subr.bf16.mxu0 0
    %1505 = vmatpush2.bf16.msra.mxu0 0
    %1506 = vmatprep.subr.bf16.mxu0 0
    %1507 = vmatpush2.bf16.msra.mxu0 0
    %1508 = vmatprep.subr.bf16.mxu0 0
    %1509 = vmatpush2.bf16.msra.mxu0 0
    %1510 = vmatprep.mubr.bf16.mxu0 0
    %1511 = vmatmul.mubr.bf16.gmra.mxu0 %v605
    %v1512 = vpop.f32.mrf.mxu0
    %v1513 = vadd.f32 %v1176, %v1512
    %v1514 = vpop.f32.mrf.mxu0
    %v1515 = vpop.f32.mrf.mxu0
    %v1516 = vadd.f32 %v1179, %v1515
    %v1517 = vpop.f32.mrf.mxu0
    %1518 = vmatprep.mubr.bf16.mxu0 0
    %1519 = vmatmul.mubr.bf16.gmra.mxu0 %v606
    %v1520 = vpop.f32.mrf.mxu0
    %v1521 = vadd.f32 %v1184, %v1520
    %v1522 = vpop.f32.mrf.mxu0
    %v1523 = vpop.f32.mrf.mxu0
    %v1524 = vadd.f32 %v1187, %v1523
    %v1525 = vpop.f32.mrf.mxu0
    %1526 = vmatprep.mubr.bf16.mxu0 0
    %1527 = vmatmul.mubr.bf16.gmra.mxu0 %v607
    %v1528 = vpop.f32.mrf.mxu0
    %v1529 = vadd.f32 %v1192, %v1528
    %v1530 = vpop.f32.mrf.mxu0
    %v1531 = vpop.f32.mrf.mxu0
    %v1532 = vadd.f32 %v1195, %v1531
    %v1533 = vpop.f32.mrf.mxu0
    %1534 = vmatprep.mubr.bf16.mxu0 0
    %1535 = vmatmul.mubr.bf16.gmra.mxu0 %v608
    %v1536 = vpop.f32.mrf.mxu0
    %v1537 = vadd.f32 %v1200, %v1536
    %v1538 = vpop.f32.mrf.mxu0
    %v1539 = vpop.f32.mrf.mxu0
    %v1540 = vadd.f32 %v1203, %v1539
    %v1541 = vpop.f32.mrf.mxu0
    %1542 = vmatprep.mubr.bf16.mxu0 0
    %1543 = vmatmul.mubr.bf16.gmra.mxu0 %v609
    %v1544 = vpop.f32.mrf.mxu0
    %v1545 = vadd.f32 %v1208, %v1544
    %v1546 = vpop.f32.mrf.mxu0
    %v1547 = vpop.f32.mrf.mxu0
    %v1548 = vadd.f32 %v1211, %v1547
    %v1549 = vpop.f32.mrf.mxu0
    %1550 = vmatprep.mubr.bf16.mxu0 0
    %1551 = vmatmul.mubr.bf16.gmra.mxu0 %v610
    %v1552 = vpop.f32.mrf.mxu0
    %v1553 = vadd.f32 %v1216, %v1552
    %v1554 = vpop.f32.mrf.mxu0
    %v1555 = vpop.f32.mrf.mxu0
    %v1556 = vadd.f32 %v1219, %v1555
    %v1557 = vpop.f32.mrf.mxu0
    %1558 = vmatprep.mubr.bf16.mxu0 0
    %1559 = vmatmul.mubr.bf16.gmra.mxu0 %v611
    %v1560 = vpop.f32.mrf.mxu0
    %v1561 = vadd.f32 %v1224, %v1560
    %v1562 = vpop.f32.mrf.mxu0
    %v1563 = vpop.f32.mrf.mxu0
    %v1564 = vadd.f32 %v1227, %v1563
    %v1565 = vpop.f32.mrf.mxu0
    %1566 = vmatprep.mubr.bf16.mxu0 0
    %1567 = vmatmul.mubr.bf16.gmra.mxu0 %v612
    %v1568 = vpop.f32.mrf.mxu0
    %v1569 = vadd.f32 %v1232, %v1568
    %v1570 = vpop.f32.mrf.mxu0
    %v1571 = vpop.f32.mrf.mxu0
    %v1572 = vadd.f32 %v1235, %v1571
    %v1573 = vpop.f32.mrf.mxu0
    %1574 = vmatprep.mubr.bf16.mxu0 0
    %1575 = vmatmul.mubr.bf16.gmra.mxu0 %v613
    %v1576 = vpop.f32.mrf.mxu0
    %v1577 = vadd.f32 %v1240, %v1576
    %v1578 = vpop.f32.mrf.mxu0
    %v1579 = vpop.f32.mrf.mxu0
    %v1580 = vadd.f32 %v1243, %v1579
    %v1581 = vpop.f32.mrf.mxu0
    %1582 = vmatprep.mubr.bf16.mxu0 0
    %1583 = vmatmul.mubr.bf16.gmra.mxu0 %v614
    %v1584 = vpop.f32.mrf.mxu0
    %v1585 = vadd.f32 %v1248, %v1584
    %v1586 = vpop.f32.mrf.mxu0
    %v1587 = vpop.f32.mrf.mxu0
    %v1588 = vadd.f32 %v1251, %v1587
    %v1589 = vpop.f32.mrf.mxu0
    %1590 = vmatprep.mubr.bf16.mxu0 0
    %1591 = vmatmul.mubr.bf16.gmra.mxu0 %v615
    %v1592 = vpop.f32.mrf.mxu0
    %v1593 = vadd.f32 %v1256, %v1592
    %v1594 = vpop.f32.mrf.mxu0
    %v1595 = vpop.f32.mrf.mxu0
    %v1596 = vadd.f32 %v1259, %v1595
    %v1597 = vpop.f32.mrf.mxu0
    %1598 = vmatprep.mubr.bf16.mxu0 0
    %1599 = vmatmul.mubr.bf16.gmra.mxu0 %v616
    %v1600 = vpop.f32.mrf.mxu0
    %v1601 = vadd.f32 %v1264, %v1600
    %v1602 = vpop.f32.mrf.mxu0
    %v1603 = vpop.f32.mrf.mxu0
    %v1604 = vadd.f32 %v1267, %v1603
    %v1605 = vpop.f32.mrf.mxu0
    %1606 = vmatprep.mubr.bf16.mxu0 0
    %1607 = vmatmul.mubr.bf16.gmra.mxu0 %v617
    %v1608 = vpop.f32.mrf.mxu0
    %v1609 = vadd.f32 %v1272, %v1608
    %v1610 = vpop.f32.mrf.mxu0
    %v1611 = vpop.f32.mrf.mxu0
    %v1612 = vadd.f32 %v1275, %v1611
    %v1613 = vpop.f32.mrf.mxu0
    %1614 = vmatprep.mubr.bf16.mxu0 0
    %1615 = vmatmul.mubr.bf16.gmra.mxu0 %v618
    %v1616 = vpop.f32.mrf.mxu0
    %v1617 = vadd.f32 %v1280, %v1616
    %v1618 = vpop.f32.mrf.mxu0
    %v1619 = vpop.f32.mrf.mxu0
    %v1620 = vadd.f32 %v1283, %v1619
    %v1621 = vpop.f32.mrf.mxu0
    %1622 = vmatprep.mubr.bf16.mxu0 0
    %1623 = vmatmul.mubr.bf16.gmra.mxu0 %v619
    %v1624 = vpop.f32.mrf.mxu0
    %v1625 = vadd.f32 %v1288, %v1624
    %v1626 = vpop.f32.mrf.mxu0
    %v1627 = vpop.f32.mrf.mxu0
    %v1628 = vadd.f32 %v1291, %v1627
    %v1629 = vpop.f32.mrf.mxu0
    %1630 = vmatprep.mubr.bf16.mxu0 0
    %1631 = vmatmul.mubr.bf16.gmra.mxu0 %v620
    %v1632 = vpop.f32.mrf.mxu0
    %v1633 = vadd.f32 %v1296, %v1632
    %v1634 = vpop.f32.mrf.mxu0
    %v1635 = vpop.f32.mrf.mxu0
    %v1636 = vadd.f32 %v1299, %v1635
    %v1637 = vpop.f32.mrf.mxu0
    %1638 = vmatprep.mubr.bf16.mxu0 0
    %1639 = vmatmul.mubr.bf16.gmra.mxu0 %v621
    %v1640 = vpop.f32.mrf.mxu0
    %v1641 = vadd.f32 %v1304, %v1640
    %v1642 = vpop.f32.mrf.mxu0
    %v1643 = vpop.f32.mrf.mxu0
    %v1644 = vadd.f32 %v1307, %v1643
    %v1645 = vpop.f32.mrf.mxu0
    %1646 = vmatprep.mubr.bf16.mxu0 0
    %1647 = vmatmul.mubr.bf16.gmra.mxu0 %v622
    %v1648 = vpop.f32.mrf.mxu0
    %v1649 = vadd.f32 %v1312, %v1648
    %v1650 = vpop.f32.mrf.mxu0
    %v1651 = vpop.f32.mrf.mxu0
    %v1652 = vadd.f32 %v1315, %v1651
    %v1653 = vpop.f32.mrf.mxu0
    %1654 = vmatprep.mubr.bf16.mxu0 0
    %1655 = vmatmul.mubr.bf16.gmra.mxu0 %v623
    %v1656 = vpop.f32.mrf.mxu0
    %v1657 = vadd.f32 %v1320, %v1656
    %v1658 = vpop.f32.mrf.mxu0
    %v1659 = vpop.f32.mrf.mxu0
    %v1660 = vadd.f32 %v1323, %v1659
    %v1661 = vpop.f32.mrf.mxu0
    %1662 = vmatprep.mubr.bf16.mxu0 0
    %1663 = vmatmul.mubr.bf16.gmra.mxu0 %v624
    %v1664 = vpop.f32.mrf.mxu0
    %v1665 = vadd.f32 %v1328, %v1664
    %v1666 = vpop.f32.mrf.mxu0
    %v1667 = vpop.f32.mrf.mxu0
    %v1668 = vadd.f32 %v1331, %v1667
    %v1669 = vpop.f32.mrf.mxu0
    %1670 = vmatprep.mubr.bf16.mxu0 0
    %1671 = vmatmul.mubr.bf16.gmra.mxu0 %v625
    %v1672 = vpop.f32.mrf.mxu0
    %v1673 = vadd.f32 %v1336, %v1672
    %v1674 = vpop.f32.mrf.mxu0
    %v1675 = vpop.f32.mrf.mxu0
    %v1676 = vadd.f32 %v1339, %v1675
    %v1677 = vpop.f32.mrf.mxu0
    %1678 = vmatprep.mubr.bf16.mxu0 0
    %1679 = vmatmul.mubr.bf16.gmra.mxu0 %v626
    %v1680 = vpop.f32.mrf.mxu0
    %v1681 = vadd.f32 %v1344, %v1680
    %v1682 = vpop.f32.mrf.mxu0
    %v1683 = vpop.f32.mrf.mxu0
    %v1684 = vadd.f32 %v1347, %v1683
    %v1685 = vpop.f32.mrf.mxu0
    %1686 = vmatprep.mubr.bf16.mxu0 0
    %1687 = vmatmul.mubr.bf16.gmra.mxu0 %v627
    %v1688 = vpop.f32.mrf.mxu0
    %v1689 = vadd.f32 %v1352, %v1688
    %v1690 = vpop.f32.mrf.mxu0
    %v1691 = vpop.f32.mrf.mxu0
    %v1692 = vadd.f32 %v1355, %v1691
    %v1693 = vpop.f32.mrf.mxu0
    %1694 = vmatprep.mubr.bf16.mxu0 0
    %1695 = vmatmul.mubr.bf16.gmra.mxu0 %v628
    %v1696 = vpop.f32.mrf.mxu0
    %v1697 = vadd.f32 %v1360, %v1696
    %v1698 = vpop.f32.mrf.mxu0
    %v1699 = vpop.f32.mrf.mxu0
    %v1700 = vadd.f32 %v1363, %v1699
    %v1701 = vpop.f32.mrf.mxu0
    %1702 = vmatprep.mubr.bf16.mxu0 0
    %1703 = vmatmul.mubr.bf16.gmra.mxu0 %v629
    %v1704 = vpop.f32.mrf.mxu0
    %v1705 = vadd.f32 %v1368, %v1704
    %v1706 = vpop.f32.mrf.mxu0
    %v1707 = vpop.f32.mrf.mxu0
    %v1708 = vadd.f32 %v1371, %v1707
    %v1709 = vpop.f32.mrf.mxu0
    %1710 = vmatprep.mubr.bf16.mxu0 0
    %1711 = vmatmul.mubr.bf16.gmra.mxu0 %v630
    %v1712 = vpop.f32.mrf.mxu0
    %v1713 = vadd.f32 %v1376, %v1712
    %v1714 = vpop.f32.mrf.mxu0
    %v1715 = vpop.f32.mrf.mxu0
    %v1716 = vadd.f32 %v1379, %v1715
    %v1717 = vpop.f32.mrf.mxu0
    %1718 = vmatprep.mubr.bf16.mxu0 0
    %1719 = vmatmul.mubr.bf16.gmra.mxu0 %v631
    %v1720 = vpop.f32.mrf.mxu0
    %v1721 = vadd.f32 %v1384, %v1720
    %v1722 = vpop.f32.mrf.mxu0
    %v1723 = vpop.f32.mrf.mxu0
    %v1724 = vadd.f32 %v1387, %v1723
    %v1725 = vpop.f32.mrf.mxu0
    %1726 = vmatprep.mubr.bf16.mxu0 0
    %1727 = vmatmul.mubr.bf16.gmra.mxu0 %v632
    %v1728 = vpop.f32.mrf.mxu0
    %v1729 = vadd.f32 %v1392, %v1728
    %v1730 = vpop.f32.mrf.mxu0
    %v1731 = vpop.f32.mrf.mxu0
    %v1732 = vadd.f32 %v1395, %v1731
    %v1733 = vpop.f32.mrf.mxu0
    %1734 = vmatprep.mubr.bf16.mxu0 0
    %1735 = vmatmul.mubr.bf16.gmra.mxu0 %v633
    %v1736 = vpop.f32.mrf.mxu0
    %v1737 = vadd.f32 %v1400, %v1736
    %v1738 = vpop.f32.mrf.mxu0
    %v1739 = vpop.f32.mrf.mxu0
    %v1740 = vadd.f32 %v1403, %v1739
    %v1741 = vpop.f32.mrf.mxu0
    %1742 = vmatprep.mubr.bf16.mxu0 0
    %1743 = vmatmul.mubr.bf16.gmra.mxu0 %v634
    %v1744 = vpop.f32.mrf.mxu0
    %v1745 = vadd.f32 %v1408, %v1744
    %v1746 = vpop.f32.mrf.mxu0
    %v1747 = vpop.f32.mrf.mxu0
    %v1748 = vadd.f32 %v1411, %v1747
    %v1749 = vpop.f32.mrf.mxu0
    %1750 = vmatprep.mubr.bf16.mxu0 0
    %1751 = vmatmul.mubr.bf16.gmra.mxu0 %v635
    %v1752 = vpop.f32.mrf.mxu0
    %v1753 = vadd.f32 %v1416, %v1752
    %v1754 = vpop.f32.mrf.mxu0
    %v1755 = vpop.f32.mrf.mxu0
    %v1756 = vadd.f32 %v1419, %v1755
    %v1757 = vpop.f32.mrf.mxu0
    %1758 = vmatprep.mubr.bf16.mxu0 0
    %1759 = vmatmul.mubr.bf16.gmra.mxu0 %v636
    %v1760 = vpop.f32.mrf.mxu0
    %v1761 = vadd.f32 %v1424, %v1760
    %v1762 = vpop.f32.mrf.mxu0
    %v1763 = vpop.f32.mrf.mxu0
    %v1764 = vadd.f32 %v1427, %v1763
    %v1765 = vpop.f32.mrf.mxu0
    %1766 = vdwg.mxu0
    %v1767 = vmul.f32 %v1513, 256.0
    %v1768 = vmul.f32 %v1516, 256.0
    %v1769 = vmul.f32 %v1521, 256.0
    %v1770 = vmul.f32 %v1524, 256.0
    %v1771 = vmul.f32 %v1529, 256.0
    %v1772 = vmul.f32 %v1532, 256.0
    %v1773 = vmul.f32 %v1537, 256.0
    %v1774 = vmul.f32 %v1540, 256.0
    %v1775 = vmul.f32 %v1545, 256.0
    %v1776 = vmul.f32 %v1548, 256.0
    %v1777 = vmul.f32 %v1553, 256.0
    %v1778 = vmul.f32 %v1556, 256.0
    %v1779 = vmul.f32 %v1561, 256.0
    %v1780 = vmul.f32 %v1564, 256.0
    %v1781 = vmul.f32 %v1569, 256.0
    %v1782 = vmul.f32 %v1572, 256.0
    %v1783 = vmul.f32 %v1577, 256.0
    %v1784 = vmul.f32 %v1580, 256.0
    %v1785 = vmul.f32 %v1585, 256.0
    %v1786 = vmul.f32 %v1588, 256.0
    %v1787 = vmul.f32 %v1593, 256.0
    %v1788 = vmul.f32 %v1596, 256.0
    %v1789 = vmul.f32 %v1601, 256.0
    %v1790 = vmul.f32 %v1604, 256.0
    %v1791 = vmul.f32 %v1609, 256.0
    %v1792 = vmul.f32 %v1612, 256.0
    %v1793 = vmul.f32 %v1617, 256.0
    %v1794 = vmul.f32 %v1620, 256.0
    %v1795 = vmul.f32 %v1625, 256.0
    %v1796 = vmul.f32 %v1628, 256.0
    %v1797 = vmul.f32 %v1633, 256.0
    %v1798 = vmul.f32 %v1636, 256.0
    %v1799 = vmul.f32 %v1641, 256.0
    %v1800 = vmul.f32 %v1644, 256.0
    %v1801 = vmul.f32 %v1649, 256.0
    %v1802 = vmul.f32 %v1652, 256.0
    %v1803 = vmul.f32 %v1657, 256.0
    %v1804 = vmul.f32 %v1660, 256.0
    %v1805 = vmul.f32 %v1665, 256.0
    %v1806 = vmul.f32 %v1668, 256.0
    %v1807 = vmul.f32 %v1673, 256.0
    %v1808 = vmul.f32 %v1676, 256.0
    %v1809 = vmul.f32 %v1681, 256.0
    %v1810 = vmul.f32 %v1684, 256.0
    %v1811 = vmul.f32 %v1689, 256.0
    %v1812 = vmul.f32 %v1692, 256.0
    %v1813 = vmul.f32 %v1697, 256.0
    %v1814 = vmul.f32 %v1700, 256.0
    %v1815 = vmul.f32 %v1705, 256.0
    %v1816 = vmul.f32 %v1708, 256.0
    %v1817 = vmul.f32 %v1713, 256.0
    %v1818 = vmul.f32 %v1716, 256.0
    %v1819 = vmul.f32 %v1721, 256.0
    %v1820 = vmul.f32 %v1724, 256.0
    %v1821 = vmul.f32 %v1729, 256.0
    %v1822 = vmul.f32 %v1732, 256.0
    %v1823 = vmul.f32 %v1737, 256.0
    %v1824 = vmul.f32 %v1740, 256.0
    %v1825 = vmul.f32 %v1745, 256.0
    %v1826 = vmul.f32 %v1748, 256.0
    %v1827 = vmul.f32 %v1753, 256.0
    %v1828 = vmul.f32 %v1756, 256.0
    %v1829 = vmul.f32 %v1761, 256.0
    %v1830 = vmul.f32 %v1764, 256.0
    %v1831 = vadd.f32 %v1077, %v1767
    %v1832 = vadd.f32 %v1078, %v1768
    %v1833 = vadd.f32 %v1079, %v1769
    %v1834 = vadd.f32 %v1080, %v1770
    %v1835 = vadd.f32 %v1081, %v1771
    %v1836 = vadd.f32 %v1082, %v1772
    %v1837 = vadd.f32 %v1083, %v1773
    %v1838 = vadd.f32 %v1084, %v1774
    %v1839 = vadd.f32 %v1085, %v1775
    %v1840 = vadd.f32 %v1086, %v1776
    %v1841 = vadd.f32 %v1087, %v1777
    %v1842 = vadd.f32 %v1088, %v1778
    %v1843 = vadd.f32 %v1089, %v1779
    %v1844 = vadd.f32 %v1090, %v1780
    %v1845 = vadd.f32 %v1091, %v1781
    %v1846 = vadd.f32 %v1092, %v1782
    %v1847 = vadd.f32 %v1093, %v1783
    %v1848 = vadd.f32 %v1094, %v1784
    %v1849 = vadd.f32 %v1095, %v1785
    %v1850 = vadd.f32 %v1096, %v1786
    %v1851 = vadd.f32 %v1097, %v1787
    %v1852 = vadd.f32 %v1098, %v1788
    %v1853 = vadd.f32 %v1099, %v1789
    %v1854 = vadd.f32 %v1100, %v1790
    %v1855 = vadd.f32 %v1101, %v1791
    %v1856 = vadd.f32 %v1102, %v1792
    %v1857 = vadd.f32 %v1103, %v1793
    %v1858 = vadd.f32 %v1104, %v1794
    %v1859 = vadd.f32 %v1105, %v1795
    %v1860 = vadd.f32 %v1106, %v1796
    %v1861 = vadd.f32 %v1107, %v1797
    %v1862 = vadd.f32 %v1108, %v1798
    %v1863 = vadd.f32 %v1109, %v1799
    %v1864 = vadd.f32 %v1110, %v1800
    %v1865 = vadd.f32 %v1111, %v1801
    %v1866 = vadd.f32 %v1112, %v1802
    %v1867 = vadd.f32 %v1113, %v1803
    %v1868 = vadd.f32 %v1114, %v1804
    %v1869 = vadd.f32 %v1115, %v1805
    %v1870 = vadd.f32 %v1116, %v1806
    %v1871 = vadd.f32 %v1117, %v1807
    %v1872 = vadd.f32 %v1118, %v1808
    %v1873 = vadd.f32 %v1119, %v1809
    %v1874 = vadd.f32 %v1120, %v1810
    %v1875 = vadd.f32 %v1121, %v1811
    %v1876 = vadd.f32 %v1122, %v1812
    %v1877 = vadd.f32 %v1123, %v1813
    %v1878 = vadd.f32 %v1124, %v1814
    %v1879 = vadd.f32 %v1125, %v1815
    %v1880 = vadd.f32 %v1126, %v1816
    %v1881 = vadd.f32 %v1127, %v1817
    %v1882 = vadd.f32 %v1128, %v1818
    %v1883 = vadd.f32 %v1129, %v1819
    %v1884 = vadd.f32 %v1130, %v1820
    %v1885 = vadd.f32 %v1131, %v1821
    %v1886 = vadd.f32 %v1132, %v1822
    %v1887 = vadd.f32 %v1133, %v1823
    %v1888 = vadd.f32 %v1134, %v1824
    %v1889 = vadd.f32 %v1135, %v1825
    %v1890 = vadd.f32 %v1136, %v1826
    %v1891 = vadd.f32 %v1137, %v1827
    %v1892 = vadd.f32 %v1138, %v1828
    %v1893 = vadd.f32 %v1139, %v1829
    %v1894 = vadd.f32 %v1140, %v1830
    %1895 = vmatprep.subr.bf16.mxu0 0
    %1896 = vmatpush1.bf16.msra.mxu0 %v1469
    %1897 = vmatprep.subr.bf16.mxu0 0
    %1898 = vmatpush1.bf16.msra.mxu0 %v1468
    %1899 = vmatprep.subr.bf16.mxu0 0
    %1900 = vmatpush1.bf16.msra.mxu0 %v1467
    %1901 = vmatprep.subr.bf16.mxu0 0
    %1902 = vmatpush1.bf16.msra.mxu0 %v1466
    %1903 = vmatprep.subr.bf16.mxu0 0
    %1904 = vmatpush1.bf16.msra.mxu0 %v1465
    %1905 = vmatprep.subr.bf16.mxu0 0
    %1906 = vmatpush1.bf16.msra.mxu0 %v1464
    %1907 = vmatprep.subr.bf16.mxu0 0
    %1908 = vmatpush1.bf16.msra.mxu0 %v1463
    %1909 = vmatprep.subr.bf16.mxu0 0
    %1910 = vmatpush1.bf16.msra.mxu0 %v1462
    %1911 = vmatprep.subr.bf16.mxu0 0
    %1912 = vmatpush2.bf16.msra.mxu0 0
    %1913 = vmatprep.subr.bf16.mxu0 0
    %1914 = vmatpush2.bf16.msra.mxu0 0
    %1915 = vmatprep.subr.bf16.mxu0 0
    %1916 = vmatpush2.bf16.msra.mxu0 0
    %1917 = vmatprep.subr.bf16.mxu0 0
    %1918 = vmatpush2.bf16.msra.mxu0 0
    %1919 = vmatprep.subr.bf16.mxu0 0
    %1920 = vmatpush2.bf16.msra.mxu0 0
    %1921 = vmatprep.subr.bf16.mxu0 0
    %1922 = vmatpush2.bf16.msra.mxu0 0
    %1923 = vmatprep.subr.bf16.mxu0 0
    %1924 = vmatpush2.bf16.msra.mxu0 0
    %1925 = vmatprep.subr.bf16.mxu0 0
    %1926 = vmatpush2.bf16.msra.mxu0 0
    %1927 = vmatprep.mubr.bf16.mxu0 0
    %1928 = vmatmul.mubr.bf16.gmra.mxu0 %v573
    %v1929 = vpop.f32.mrf.mxu0
    %v1930 = vadd.f32 0.0, %v1929
    %v1931 = vpop.f32.mrf.mxu0
    %v1932 = vpop.f32.mrf.mxu0
    %v1933 = vadd.f32 0.0, %v1932
    %v1934 = vpop.f32.mrf.mxu0
    %1935 = vmatprep.mubr.bf16.mxu0 0
    %1936 = vmatmul.mubr.bf16.gmra.mxu0 %v574
    %v1937 = vpop.f32.mrf.mxu0
    %v1938 = vadd.f32 0.0, %v1937
    %v1939 = vpop.f32.mrf.mxu0
    %v1940 = vpop.f32.mrf.mxu0
    %v1941 = vadd.f32 0.0, %v1940
    %v1942 = vpop.f32.mrf.mxu0
    %1943 = vmatprep.mubr.bf16.mxu0 0
    %1944 = vmatmul.mubr.bf16.gmra.mxu0 %v575
    %v1945 = vpop.f32.mrf.mxu0
    %v1946 = vadd.f32 0.0, %v1945
    %v1947 = vpop.f32.mrf.mxu0
    %v1948 = vpop.f32.mrf.mxu0
    %v1949 = vadd.f32 0.0, %v1948
    %v1950 = vpop.f32.mrf.mxu0
    %1951 = vmatprep.mubr.bf16.mxu0 0
    %1952 = vmatmul.mubr.bf16.gmra.mxu0 %v576
    %v1953 = vpop.f32.mrf.mxu0
    %v1954 = vadd.f32 0.0, %v1953
    %v1955 = vpop.f32.mrf.mxu0
    %v1956 = vpop.f32.mrf.mxu0
    %v1957 = vadd.f32 0.0, %v1956
    %v1958 = vpop.f32.mrf.mxu0
    %1959 = vmatprep.mubr.bf16.mxu0 0
    %1960 = vmatmul.mubr.bf16.gmra.mxu0 %v577
    %v1961 = vpop.f32.mrf.mxu0
    %v1962 = vadd.f32 0.0, %v1961
    %v1963 = vpop.f32.mrf.mxu0
    %v1964 = vpop.f32.mrf.mxu0
    %v1965 = vadd.f32 0.0, %v1964
    %v1966 = vpop.f32.mrf.mxu0
    %1967 = vmatprep.mubr.bf16.mxu0 0
    %1968 = vmatmul.mubr.bf16.gmra.mxu0 %v578
    %v1969 = vpop.f32.mrf.mxu0
    %v1970 = vadd.f32 0.0, %v1969
    %v1971 = vpop.f32.mrf.mxu0
    %v1972 = vpop.f32.mrf.mxu0
    %v1973 = vadd.f32 0.0, %v1972
    %v1974 = vpop.f32.mrf.mxu0
    %1975 = vmatprep.mubr.bf16.mxu0 0
    %1976 = vmatmul.mubr.bf16.gmra.mxu0 %v579
    %v1977 = vpop.f32.mrf.mxu0
    %v1978 = vadd.f32 0.0, %v1977
    %v1979 = vpop.f32.mrf.mxu0
    %v1980 = vpop.f32.mrf.mxu0
    %v1981 = vadd.f32 0.0, %v1980
    %v1982 = vpop.f32.mrf.mxu0
    %1983 = vmatprep.mubr.bf16.mxu0 0
    %1984 = vmatmul.mubr.bf16.gmra.mxu0 %v580
    %v1985 = vpop.f32.mrf.mxu0
    %v1986 = vadd.f32 0.0, %v1985
    %v1987 = vpop.f32.mrf.mxu0
    %v1988 = vpop.f32.mrf.mxu0
    %v1989 = vadd.f32 0.0, %v1988
    %v1990 = vpop.f32.mrf.mxu0
    %1991 = vmatprep.mubr.bf16.mxu0 0
    %1992 = vmatmul.mubr.bf16.gmra.mxu0 %v581
    %v1993 = vpop.f32.mrf.mxu0
    %v1994 = vadd.f32 0.0, %v1993
    %v1995 = vpop.f32.mrf.mxu0
    %v1996 = vpop.f32.mrf.mxu0
    %v1997 = vadd.f32 0.0, %v1996
    %v1998 = vpop.f32.mrf.mxu0
    %1999 = vmatprep.mubr.bf16.mxu0 0
    %2000 = vmatmul.mubr.bf16.gmra.mxu0 %v582
    %v2001 = vpop.f32.mrf.mxu0
    %v2002 = vadd.f32 0.0, %v2001
    %v2003 = vpop.f32.mrf.mxu0
    %v2004 = vpop.f32.mrf.mxu0
    %v2005 = vadd.f32 0.0, %v2004
    %v2006 = vpop.f32.mrf.mxu0
    %2007 = vmatprep.mubr.bf16.mxu0 0
    %2008 = vmatmul.mubr.bf16.gmra.mxu0 %v583
    %v2009 = vpop.f32.mrf.mxu0
    %v2010 = vadd.f32 0.0, %v2009
    %v2011 = vpop.f32.mrf.mxu0
    %v2012 = vpop.f32.mrf.mxu0
    %v2013 = vadd.f32 0.0, %v2012
    %v2014 = vpop.f32.mrf.mxu0
    %2015 = vmatprep.mubr.bf16.mxu0 0
    %2016 = vmatmul.mubr.bf16.gmra.mxu0 %v584
    %v2017 = vpop.f32.mrf.mxu0
    %v2018 = vadd.f32 0.0, %v2017
    %v2019 = vpop.f32.mrf.mxu0
    %v2020 = vpop.f32.mrf.mxu0
    %v2021 = vadd.f32 0.0, %v2020
    %v2022 = vpop.f32.mrf.mxu0
    %2023 = vmatprep.mubr.bf16.mxu0 0
    %2024 = vmatmul.mubr.bf16.gmra.mxu0 %v585
    %v2025 = vpop.f32.mrf.mxu0
    %v2026 = vadd.f32 0.0, %v2025
    %v2027 = vpop.f32.mrf.mxu0
    %v2028 = vpop.f32.mrf.mxu0
    %v2029 = vadd.f32 0.0, %v2028
    %v2030 = vpop.f32.mrf.mxu0
    %2031 = vmatprep.mubr.bf16.mxu0 0
    %2032 = vmatmul.mubr.bf16.gmra.mxu0 %v586
    %v2033 = vpop.f32.mrf.mxu0
    %v2034 = vadd.f32 0.0, %v2033
    %v2035 = vpop.f32.mrf.mxu0
    %v2036 = vpop.f32.mrf.mxu0
    %v2037 = vadd.f32 0.0, %v2036
    %v2038 = vpop.f32.mrf.mxu0
    %2039 = vmatprep.mubr.bf16.mxu0 0
    %2040 = vmatmul.mubr.bf16.gmra.mxu0 %v587
    %v2041 = vpop.f32.mrf.mxu0
    %v2042 = vadd.f32 0.0, %v2041
    %v2043 = vpop.f32.mrf.mxu0
    %v2044 = vpop.f32.mrf.mxu0
    %v2045 = vadd.f32 0.0, %v2044
    %v2046 = vpop.f32.mrf.mxu0
    %2047 = vmatprep.mubr.bf16.mxu0 0
    %2048 = vmatmul.mubr.bf16.gmra.mxu0 %v588
    %v2049 = vpop.f32.mrf.mxu0
    %v2050 = vadd.f32 0.0, %v2049
    %v2051 = vpop.f32.mrf.mxu0
    %v2052 = vpop.f32.mrf.mxu0
    %v2053 = vadd.f32 0.0, %v2052
    %v2054 = vpop.f32.mrf.mxu0
    %2055 = vmatprep.mubr.bf16.mxu0 0
    %2056 = vmatmul.mubr.bf16.gmra.mxu0 %v589
    %v2057 = vpop.f32.mrf.mxu0
    %v2058 = vadd.f32 0.0, %v2057
    %v2059 = vpop.f32.mrf.mxu0
    %v2060 = vpop.f32.mrf.mxu0
    %v2061 = vadd.f32 0.0, %v2060
    %v2062 = vpop.f32.mrf.mxu0
    %2063 = vmatprep.mubr.bf16.mxu0 0
    %2064 = vmatmul.mubr.bf16.gmra.mxu0 %v590
    %v2065 = vpop.f32.mrf.mxu0
    %v2066 = vadd.f32 0.0, %v2065
    %v2067 = vpop.f32.mrf.mxu0
    %v2068 = vpop.f32.mrf.mxu0
    %v2069 = vadd.f32 0.0, %v2068
    %v2070 = vpop.f32.mrf.mxu0
    %2071 = vmatprep.mubr.bf16.mxu0 0
    %2072 = vmatmul.mubr.bf16.gmra.mxu0 %v591
    %v2073 = vpop.f32.mrf.mxu0
    %v2074 = vadd.f32 0.0, %v2073
    %v2075 = vpop.f32.mrf.mxu0
    %v2076 = vpop.f32.mrf.mxu0
    %v2077 = vadd.f32 0.0, %v2076
    %v2078 = vpop.f32.mrf.mxu0
    %2079 = vmatprep.mubr.bf16.mxu0 0
    %2080 = vmatmul.mubr.bf16.gmra.mxu0 %v592
    %v2081 = vpop.f32.mrf.mxu0
    %v2082 = vadd.f32 0.0, %v2081
    %v2083 = vpop.f32.mrf.mxu0
    %v2084 = vpop.f32.mrf.mxu0
    %v2085 = vadd.f32 0.0, %v2084
    %v2086 = vpop.f32.mrf.mxu0
    %2087 = vmatprep.mubr.bf16.mxu0 0
    %2088 = vmatmul.mubr.bf16.gmra.mxu0 %v593
    %v2089 = vpop.f32.mrf.mxu0
    %v2090 = vadd.f32 0.0, %v2089
    %v2091 = vpop.f32.mrf.mxu0
    %v2092 = vpop.f32.mrf.mxu0
    %v2093 = vadd.f32 0.0, %v2092
    %v2094 = vpop.f32.mrf.mxu0
    %2095 = vmatprep.mubr.bf16.mxu0 0
    %2096 = vmatmul.mubr.bf16.gmra.mxu0 %v594
    %v2097 = vpop.f32.mrf.mxu0
    %v2098 = vadd.f32 0.0, %v2097
    %v2099 = vpop.f32.mrf.mxu0
    %v2100 = vpop.f32.mrf.mxu0
    %v2101 = vadd.f32 0.0, %v2100
    %v2102 = vpop.f32.mrf.mxu0
    %2103 = vmatprep.mubr.bf16.mxu0 0
    %2104 = vmatmul.mubr.bf16.gmra.mxu0 %v595
    %v2105 = vpop.f32.mrf.mxu0
    %v2106 = vadd.f32 0.0, %v2105
    %v2107 = vpop.f32.mrf.mxu0
    %v2108 = vpop.f32.mrf.mxu0
    %v2109 = vadd.f32 0.0, %v2108
    %v2110 = vpop.f32.mrf.mxu0
    %2111 = vmatprep.mubr.bf16.mxu0 0
    %2112 = vmatmul.mubr.bf16.gmra.mxu0 %v596
    %v2113 = vpop.f32.mrf.mxu0
    %v2114 = vadd.f32 0.0, %v2113
    %v2115 = vpop.f32.mrf.mxu0
    %v2116 = vpop.f32.mrf.mxu0
    %v2117 = vadd.f32 0.0, %v2116
    %v2118 = vpop.f32.mrf.mxu0
    %2119 = vmatprep.mubr.bf16.mxu0 0
    %2120 = vmatmul.mubr.bf16.gmra.mxu0 %v597
    %v2121 = vpop.f32.mrf.mxu0
    %v2122 = vadd.f32 0.0, %v2121
    %v2123 = vpop.f32.mrf.mxu0
    %v2124 = vpop.f32.mrf.mxu0
    %v2125 = vadd.f32 0.0, %v2124
    %v2126 = vpop.f32.mrf.mxu0
    %2127 = vmatprep.mubr.bf16.mxu0 0
    %2128 = vmatmul.mubr.bf16.gmra.mxu0 %v598
    %v2129 = vpop.f32.mrf.mxu0
    %v2130 = vadd.f32 0.0, %v2129
    %v2131 = vpop.f32.mrf.mxu0
    %v2132 = vpop.f32.mrf.mxu0
    %v2133 = vadd.f32 0.0, %v2132
    %v2134 = vpop.f32.mrf.mxu0
    %2135 = vmatprep.mubr.bf16.mxu0 0
    %2136 = vmatmul.mubr.bf16.gmra.mxu0 %v599
    %v2137 = vpop.f32.mrf.mxu0
    %v2138 = vadd.f32 0.0, %v2137
    %v2139 = vpop.f32.mrf.mxu0
    %v2140 = vpop.f32.mrf.mxu0
    %v2141 = vadd.f32 0.0, %v2140
    %v2142 = vpop.f32.mrf.mxu0
    %2143 = vmatprep.mubr.bf16.mxu0 0
    %2144 = vmatmul.mubr.bf16.gmra.mxu0 %v600
    %v2145 = vpop.f32.mrf.mxu0
    %v2146 = vadd.f32 0.0, %v2145
    %v2147 = vpop.f32.mrf.mxu0
    %v2148 = vpop.f32.mrf.mxu0
    %v2149 = vadd.f32 0.0, %v2148
    %v2150 = vpop.f32.mrf.mxu0
    %2151 = vmatprep.mubr.bf16.mxu0 0
    %2152 = vmatmul.mubr.bf16.gmra.mxu0 %v601
    %v2153 = vpop.f32.mrf.mxu0
    %v2154 = vadd.f32 0.0, %v2153
    %v2155 = vpop.f32.mrf.mxu0
    %v2156 = vpop.f32.mrf.mxu0
    %v2157 = vadd.f32 0.0, %v2156
    %v2158 = vpop.f32.mrf.mxu0
    %2159 = vmatprep.mubr.bf16.mxu0 0
    %2160 = vmatmul.mubr.bf16.gmra.mxu0 %v602
    %v2161 = vpop.f32.mrf.mxu0
    %v2162 = vadd.f32 0.0, %v2161
    %v2163 = vpop.f32.mrf.mxu0
    %v2164 = vpop.f32.mrf.mxu0
    %v2165 = vadd.f32 0.0, %v2164
    %v2166 = vpop.f32.mrf.mxu0
    %2167 = vmatprep.mubr.bf16.mxu0 0
    %2168 = vmatmul.mubr.bf16.gmra.mxu0 %v603
    %v2169 = vpop.f32.mrf.mxu0
    %v2170 = vadd.f32 0.0, %v2169
    %v2171 = vpop.f32.mrf.mxu0
    %v2172 = vpop.f32.mrf.mxu0
    %v2173 = vadd.f32 0.0, %v2172
    %v2174 = vpop.f32.mrf.mxu0
    %2175 = vmatprep.mubr.bf16.mxu0 0
    %2176 = vmatmul.mubr.bf16.gmra.mxu0 %v604
    %v2177 = vpop.f32.mrf.mxu0
    %v2178 = vadd.f32 0.0, %v2177
    %v2179 = vpop.f32.mrf.mxu0
    %v2180 = vpop.f32.mrf.mxu0
    %v2181 = vadd.f32 0.0, %v2180
    %v2182 = vpop.f32.mrf.mxu0
    %2183 = vdwg.mxu0
    %v2184 = vadd.f32 %v1831, %v1930
    %v2185 = vadd.f32 %v1832, %v1933
    %v2186 = vadd.f32 %v1833, %v1938
    %v2187 = vadd.f32 %v1834, %v1941
    %v2188 = vadd.f32 %v1835, %v1946
    %v2189 = vadd.f32 %v1836, %v1949
    %v2190 = vadd.f32 %v1837, %v1954
    %v2191 = vadd.f32 %v1838, %v1957
    %v2192 = vadd.f32 %v1839, %v1962
    %v2193 = vadd.f32 %v1840, %v1965
    %v2194 = vadd.f32 %v1841, %v1970
    %v2195 = vadd.f32 %v1842, %v1973
    %v2196 = vadd.f32 %v1843, %v1978
    %v2197 = vadd.f32 %v1844, %v1981
    %v2198 = vadd.f32 %v1845, %v1986
    %v2199 = vadd.f32 %v1846, %v1989
    %v2200 = vadd.f32 %v1847, %v1994
    %v2201 = vadd.f32 %v1848, %v1997
    %v2202 = vadd.f32 %v1849, %v2002
    %v2203 = vadd.f32 %v1850, %v2005
    %v2204 = vadd.f32 %v1851, %v2010
    %v2205 = vadd.f32 %v1852, %v2013
    %v2206 = vadd.f32 %v1853, %v2018
    %v2207 = vadd.f32 %v1854, %v2021
    %v2208 = vadd.f32 %v1855, %v2026
    %v2209 = vadd.f32 %v1856, %v2029
    %v2210 = vadd.f32 %v1857, %v2034
    %v2211 = vadd.f32 %v1858, %v2037
    %v2212 = vadd.f32 %v1859, %v2042
    %v2213 = vadd.f32 %v1860, %v2045
    %v2214 = vadd.f32 %v1861, %v2050
    %v2215 = vadd.f32 %v1862, %v2053
    %v2216 = vadd.f32 %v1863, %v2058
    %v2217 = vadd.f32 %v1864, %v2061
    %v2218 = vadd.f32 %v1865, %v2066
    %v2219 = vadd.f32 %v1866, %v2069
    %v2220 = vadd.f32 %v1867, %v2074
    %v2221 = vadd.f32 %v1868, %v2077
    %v2222 = vadd.f32 %v1869, %v2082
    %v2223 = vadd.f32 %v1870, %v2085
    %v2224 = vadd.f32 %v1871, %v2090
    %v2225 = vadd.f32 %v1872, %v2093
    %v2226 = vadd.f32 %v1873, %v2098
    %v2227 = vadd.f32 %v1874, %v2101
    %v2228 = vadd.f32 %v1875, %v2106
    %v2229 = vadd.f32 %v1876, %v2109
    %v2230 = vadd.f32 %v1877, %v2114
    %v2231 = vadd.f32 %v1878, %v2117
    %v2232 = vadd.f32 %v1879, %v2122
    %v2233 = vadd.f32 %v1880, %v2125
    %v2234 = vadd.f32 %v1881, %v2130
    %v2235 = vadd.f32 %v1882, %v2133
    %v2236 = vadd.f32 %v1883, %v2138
    %v2237 = vadd.f32 %v1884, %v2141
    %v2238 = vadd.f32 %v1885, %v2146
    %v2239 = vadd.f32 %v1886, %v2149
    %v2240 = vadd.f32 %v1887, %v2154
    %v2241 = vadd.f32 %v1888, %v2157
    %v2242 = vadd.f32 %v1889, %v2162
    %v2243 = vadd.f32 %v1890, %v2165
    %v2244 = vadd.f32 %v1891, %v2170
    %v2245 = vadd.f32 %v1892, %v2173
    %v2246 = vadd.f32 %v1893, %v2178
    %v2247 = vadd.f32 %v1894, %v2181
    %v2248 = vadd.f32 %v676, %v2184
    %v2249 = vadd.f32 %v677, %v2185
    %v2250 = vadd.f32 %v678, %v2186
    %v2251 = vadd.f32 %v679, %v2187
    %v2252 = vadd.f32 %v680, %v2188
    %v2253 = vadd.f32 %v681, %v2189
    %v2254 = vadd.f32 %v682, %v2190
    %v2255 = vadd.f32 %v683, %v2191
    %v2256 = vadd.f32 %v684, %v2192
    %v2257 = vadd.f32 %v685, %v2193
    %v2258 = vadd.f32 %v686, %v2194
    %v2259 = vadd.f32 %v687, %v2195
    %v2260 = vadd.f32 %v688, %v2196
    %v2261 = vadd.f32 %v689, %v2197
    %v2262 = vadd.f32 %v690, %v2198
    %v2263 = vadd.f32 %v691, %v2199
    %v2264 = vadd.f32 %v692, %v2200
    %v2265 = vadd.f32 %v693, %v2201
    %v2266 = vadd.f32 %v694, %v2202
    %v2267 = vadd.f32 %v695, %v2203
    %v2268 = vadd.f32 %v696, %v2204
    %v2269 = vadd.f32 %v697, %v2205
    %v2270 = vadd.f32 %v698, %v2206
    %v2271 = vadd.f32 %v699, %v2207
    %v2272 = vadd.f32 %v700, %v2208
    %v2273 = vadd.f32 %v701, %v2209
    %v2274 = vadd.f32 %v702, %v2210
    %v2275 = vadd.f32 %v703, %v2211
    %v2276 = vadd.f32 %v704, %v2212
    %v2277 = vadd.f32 %v705, %v2213
    %v2278 = vadd.f32 %v706, %v2214
    %v2279 = vadd.f32 %v707, %v2215
    %v2280 = vadd.f32 %v708, %v2216
    %v2281 = vadd.f32 %v709, %v2217
    %v2282 = vadd.f32 %v710, %v2218
    %v2283 = vadd.f32 %v711, %v2219
    %v2284 = vadd.f32 %v712, %v2220
    %v2285 = vadd.f32 %v713, %v2221
    %v2286 = vadd.f32 %v714, %v2222
    %v2287 = vadd.f32 %v715, %v2223
    %v2288 = vadd.f32 %v716, %v2224
    %v2289 = vadd.f32 %v717, %v2225
    %v2290 = vadd.f32 %v718, %v2226
    %v2291 = vadd.f32 %v719, %v2227
    %v2292 = vadd.f32 %v720, %v2228
    %v2293 = vadd.f32 %v721, %v2229
    %v2294 = vadd.f32 %v722, %v2230
    %v2295 = vadd.f32 %v723, %v2231
    %v2296 = vadd.f32 %v724, %v2232
    %v2297 = vadd.f32 %v725, %v2233
    %v2298 = vadd.f32 %v726, %v2234
    %v2299 = vadd.f32 %v727, %v2235
    %v2300 = vadd.f32 %v728, %v2236
    %v2301 = vadd.f32 %v729, %v2237
    %v2302 = vadd.f32 %v730, %v2238
    %v2303 = vadd.f32 %v731, %v2239
    %v2304 = vadd.f32 %v732, %v2240
    %v2305 = vadd.f32 %v733, %v2241
    %v2306 = vadd.f32 %v734, %v2242
    %v2307 = vadd.f32 %v735, %v2243
    %v2308 = vadd.f32 %v736, %v2244
    %v2309 = vadd.f32 %v737, %v2245
    %v2310 = vadd.f32 %v738, %v2246
    %v2311 = vadd.f32 %v739, %v2247
    %2312 = vst [vmem:[#allocation2] sm:$0xff] %v2248
    %2313 = vst [vmem:[#allocation2 + $0x8] sm:$0xff] %v2249
    %2314 = vst [vmem:[#allocation2 + $0x10] sm:$0xff] %v2250
    %2315 = vst [vmem:[#allocation2 + $0x18] sm:$0xff] %v2251
    %2316 = vst [vmem:[#allocation2 + $0x20] sm:$0xff] %v2252
    %2317 = vst [vmem:[#allocation2 + $0x28] sm:$0xff] %v2253
    %2318 = vst [vmem:[#allocation2 + $0x30] sm:$0xff] %v2254
    %2319 = vst [vmem:[#allocation2 + $0x38] sm:$0xff] %v2255
    %2320 = vst [vmem:[#allocation2 + $0x40] sm:$0xff] %v2256
    %2321 = vst [vmem:[#allocation2 + $0x48] sm:$0xff] %v2257
    %2322 = vst [vmem:[#allocation2 + $0x50] sm:$0xff] %v2258
    %2323 = vst [vmem:[#allocation2 + $0x58] sm:$0xff] %v2259
    %2324 = vst [vmem:[#allocation2 + $0x60] sm:$0xff] %v2260
    %2325 = vst [vmem:[#allocation2 + $0x68] sm:$0xff] %v2261
    %2326 = vst [vmem:[#allocation2 + $0x70] sm:$0xff] %v2262
    %2327 = vst [vmem:[#allocation2 + $0x78] sm:$0xff] %v2263
    %2328 = vst [vmem:[#allocation2 + $0x80] sm:$0xff] %v2264
    %2329 = vst [vmem:[#allocation2 + $0x88] sm:$0xff] %v2265
    %2330 = vst [vmem:[#allocation2 + $0x90] sm:$0xff] %v2266
    %2331 = vst [vmem:[#allocation2 + $0x98] sm:$0xff] %v2267
    %2332 = vst [vmem:[#allocation2 + $0xa0] sm:$0xff] %v2268
    %2333 = vst [vmem:[#allocation2 + $0xa8] sm:$0xff] %v2269
    %2334 = vst [vmem:[#allocation2 + $0xb0] sm:$0xff] %v2270
    %2335 = vst [vmem:[#allocation2 + $0xb8] sm:$0xff] %v2271
    %2336 = vst [vmem:[#allocation2 + $0xc0] sm:$0xff] %v2272
    %2337 = vst [vmem:[#allocation2 + $0xc8] sm:$0xff] %v2273
    %2338 = vst [vmem:[#allocation2 + $0xd0] sm:$0xff] %v2274
    %2339 = vst [vmem:[#allocation2 + $0xd8] sm:$0xff] %v2275
    %2340 = vst [vmem:[#allocation2 + $0xe0] sm:$0xff] %v2276
    %2341 = vst [vmem:[#allocation2 + $0xe8] sm:$0xff] %v2277
    %2342 = vst [vmem:[#allocation2 + $0xf0] sm:$0xff] %v2278
    %2343 = vst [vmem:[#allocation2 + $0xf8] sm:$0xff] %v2279
    %2344 = vst [vmem:[#allocation2 + $0x100] sm:$0xff] %v2280
    %2345 = vst [vmem:[#allocation2 + $0x108] sm:$0xff] %v2281
    %2346 = vst [vmem:[#allocation2 + $0x110] sm:$0xff] %v2282
    %2347 = vst [vmem:[#allocation2 + $0x118] sm:$0xff] %v2283
    %2348 = vst [vmem:[#allocation2 + $0x120] sm:$0xff] %v2284
    %2349 = vst [vmem:[#allocation2 + $0x128] sm:$0xff] %v2285
    %2350 = vst [vmem:[#allocation2 + $0x130] sm:$0xff] %v2286
    %2351 = vst [vmem:[#allocation2 + $0x138] sm:$0xff] %v2287
    %2352 = vst [vmem:[#allocation2 + $0x140] sm:$0xff] %v2288
    %2353 = vst [vmem:[#allocation2 + $0x148] sm:$0xff] %v2289
    %2354 = vst [vmem:[#allocation2 + $0x150] sm:$0xff] %v2290
    %2355 = vst [vmem:[#allocation2 + $0x158] sm:$0xff] %v2291
    %2356 = vst [vmem:[#allocation2 + $0x160] sm:$0xff] %v2292
    %2357 = vst [vmem:[#allocation2 + $0x168] sm:$0xff] %v2293
    %2358 = vst [vmem:[#allocation2 + $0x170] sm:$0xff] %v2294
    %2359 = vst [vmem:[#allocation2 + $0x178] sm:$0xff] %v2295
    %2360 = vst [vmem:[#allocation2 + $0x180] sm:$0xff] %v2296
    %2361 = vst [vmem:[#allocation2 + $0x188] sm:$0xff] %v2297
    %2362 = vst [vmem:[#allocation2 + $0x190] sm:$0xff] %v2298
    %2363 = vst [vmem:[#allocation2 + $0x198] sm:$0xff] %v2299
    %2364 = vst [vmem:[#allocation2 + $0x1a0] sm:$0xff] %v2300
    %2365 = vst [vmem:[#allocation2 + $0x1a8] sm:$0xff] %v2301
    %2366 = vst [vmem:[#allocation2 + $0x1b0] sm:$0xff] %v2302
    %2367 = vst [vmem:[#allocation2 + $0x1b8] sm:$0xff] %v2303
    %2368 = vst [vmem:[#allocation2 + $0x1c0] sm:$0xff] %v2304
    %2369 = vst [vmem:[#allocation2 + $0x1c8] sm:$0xff] %v2305
    %2370 = vst [vmem:[#allocation2 + $0x1d0] sm:$0xff] %v2306
    %2371 = vst [vmem:[#allocation2 + $0x1d8] sm:$0xff] %v2307
    %2372 = vst [vmem:[#allocation2 + $0x1e0] sm:$0xff] %v2308
    %2373 = vst [vmem:[#allocation2 + $0x1e8] sm:$0xff] %v2309
    %2374 = vst [vmem:[#allocation2 + $0x1f0] sm:$0xff] %v2310
    %2375 = vst [vmem:[#allocation2 + $0x1f8] sm:$0xff] %v2311
    // Predicated region
    $region30: #{tpu_custom_call.1} parent=1 // pred_check
      %p2376 = pneg %p57
    $region31: #{tpu_custom_call.1} parent=1 // pred_check_branch
      %2378 = sbr.rel (%p2376) target = $region33
    $region32: #{tpu_custom_call.1} parent=1 // pred_region
      %v2379 = vld [vmem:[#allocation2] sm:$0xff]
      %v2380 = vld [vmem:[#allocation2 + $0x8] sm:$0xff]
      %v2381 = vld [vmem:[#allocation2 + $0x10] sm:$0xff]
      %v2382 = vld [vmem:[#allocation2 + $0x18] sm:$0xff]
      %v2383 = vld [vmem:[#allocation2 + $0x20] sm:$0xff]
      %v2384 = vld [vmem:[#allocation2 + $0x28] sm:$0xff]
      %v2385 = vld [vmem:[#allocation2 + $0x30] sm:$0xff]
      %v2386 = vld [vmem:[#allocation2 + $0x38] sm:$0xff]
      %v2387 = vld [vmem:[#allocation2 + $0x40] sm:$0xff]
      %v2388 = vld [vmem:[#allocation2 + $0x48] sm:$0xff]
      %v2389 = vld [vmem:[#allocation2 + $0x50] sm:$0xff]
      %v2390 = vld [vmem:[#allocation2 + $0x58] sm:$0xff]
      %v2391 = vld [vmem:[#allocation2 + $0x60] sm:$0xff]
      %v2392 = vld [vmem:[#allocation2 + $0x68] sm:$0xff]
      %v2393 = vld [vmem:[#allocation2 + $0x70] sm:$0xff]
      %v2394 = vld [vmem:[#allocation2 + $0x78] sm:$0xff]
      %v2395 = vld [vmem:[#allocation2 + $0x80] sm:$0xff]
      %v2396 = vld [vmem:[#allocation2 + $0x88] sm:$0xff]
      %v2397 = vld [vmem:[#allocation2 + $0x90] sm:$0xff]
      %v2398 = vld [vmem:[#allocation2 + $0x98] sm:$0xff]
      %v2399 = vld [vmem:[#allocation2 + $0xa0] sm:$0xff]
      %v2400 = vld [vmem:[#allocation2 + $0xa8] sm:$0xff]
      %v2401 = vld [vmem:[#allocation2 + $0xb0] sm:$0xff]
      %v2402 = vld [vmem:[#allocation2 + $0xb8] sm:$0xff]
      %v2403 = vld [vmem:[#allocation2 + $0xc0] sm:$0xff]
      %v2404 = vld [vmem:[#allocation2 + $0xc8] sm:$0xff]
      %v2405 = vld [vmem:[#allocation2 + $0xd0] sm:$0xff]
      %v2406 = vld [vmem:[#allocation2 + $0xd8] sm:$0xff]
      %v2407 = vld [vmem:[#allocation2 + $0xe0] sm:$0xff]
      %v2408 = vld [vmem:[#allocation2 + $0xe8] sm:$0xff]
      %v2409 = vld [vmem:[#allocation2 + $0xf0] sm:$0xff]
      %v2410 = vld [vmem:[#allocation2 + $0xf8] sm:$0xff]
      %v2411 = vld [vmem:[#allocation2 + $0x100] sm:$0xff]
      %v2412 = vld [vmem:[#allocation2 + $0x108] sm:$0xff]
      %v2413 = vld [vmem:[#allocation2 + $0x110] sm:$0xff]
      %v2414 = vld [vmem:[#allocation2 + $0x118] sm:$0xff]
      %v2415 = vld [vmem:[#allocation2 + $0x120] sm:$0xff]
      %v2416 = vld [vmem:[#allocation2 + $0x128] sm:$0xff]
      %v2417 = vld [vmem:[#allocation2 + $0x130] sm:$0xff]
      %v2418 = vld [vmem:[#allocation2 + $0x138] sm:$0xff]
      %v2419 = vld [vmem:[#allocation2 + $0x140] sm:$0xff]
      %v2420 = vld [vmem:[#allocation2 + $0x148] sm:$0xff]
      %v2421 = vld [vmem:[#allocation2 + $0x150] sm:$0xff]
      %v2422 = vld [vmem:[#allocation2 + $0x158] sm:$0xff]
      %v2423 = vld [vmem:[#allocation2 + $0x160] sm:$0xff]
      %v2424 = vld [vmem:[#allocation2 + $0x168] sm:$0xff]
      %v2425 = vld [vmem:[#allocation2 + $0x170] sm:$0xff]
      %v2426 = vld [vmem:[#allocation2 + $0x178] sm:$0xff]
      %v2427 = vld [vmem:[#allocation2 + $0x180] sm:$0xff]
      %v2428 = vld [vmem:[#allocation2 + $0x188] sm:$0xff]
      %v2429 = vld [vmem:[#allocation2 + $0x190] sm:$0xff]
      %v2430 = vld [vmem:[#allocation2 + $0x198] sm:$0xff]
      %v2431 = vld [vmem:[#allocation2 + $0x1a0] sm:$0xff]
      %v2432 = vld [vmem:[#allocation2 + $0x1a8] sm:$0xff]
      %v2433 = vld [vmem:[#allocation2 + $0x1b0] sm:$0xff]
      %v2434 = vld [vmem:[#allocation2 + $0x1b8] sm:$0xff]
      %v2435 = vld [vmem:[#allocation2 + $0x1c0] sm:$0xff]
      %v2436 = vld [vmem:[#allocation2 + $0x1c8] sm:$0xff]
      %v2437 = vld [vmem:[#allocation2 + $0x1d0] sm:$0xff]
      %v2438 = vld [vmem:[#allocation2 + $0x1d8] sm:$0xff]
      %v2439 = vld [vmem:[#allocation2 + $0x1e0] sm:$0xff]
      %v2440 = vld [vmem:[#allocation2 + $0x1e8] sm:$0xff]
      %v2441 = vld [vmem:[#allocation2 + $0x1f0] sm:$0xff]
      %v2442 = vld [vmem:[#allocation2 + $0x1f8] sm:$0xff]
      %v2443 = vmul.f32 %v2379, 0.00024414063
      %v2444 = vmul.f32 %v2380, 0.00024414063
      %v2445 = vmul.f32 %v2381, 0.00024414063
      %v2446 = vmul.f32 %v2382, 0.00024414063
      %v2447 = vmul.f32 %v2383, 0.00024414063
      %v2448 = vmul.f32 %v2384, 0.00024414063
      %v2449 = vmul.f32 %v2385, 0.00024414063
      %v2450 = vmul.f32 %v2386, 0.00024414063
      %v2451 = vmul.f32 %v2387, 0.00024414063
      %v2452 = vmul.f32 %v2388, 0.00024414063
      %v2453 = vmul.f32 %v2389, 0.00024414063
      %v2454 = vmul.f32 %v2390, 0.00024414063
      %v2455 = vmul.f32 %v2391, 0.00024414063
      %v2456 = vmul.f32 %v2392, 0.00024414063
      %v2457 = vmul.f32 %v2393, 0.00024414063
      %v2458 = vmul.f32 %v2394, 0.00024414063
      %v2459 = vmul.f32 %v2395, 0.00024414063
      %v2460 = vmul.f32 %v2396, 0.00024414063
      %v2461 = vmul.f32 %v2397, 0.00024414063
      %v2462 = vmul.f32 %v2398, 0.00024414063
      %v2463 = vmul.f32 %v2399, 0.00024414063
      %v2464 = vmul.f32 %v2400, 0.00024414063
      %v2465 = vmul.f32 %v2401, 0.00024414063
      %v2466 = vmul.f32 %v2402, 0.00024414063
      %v2467 = vmul.f32 %v2403, 0.00024414063
      %v2468 = vmul.f32 %v2404, 0.00024414063
      %v2469 = vmul.f32 %v2405, 0.00024414063
      %v2470 = vmul.f32 %v2406, 0.00024414063
      %v2471 = vmul.f32 %v2407, 0.00024414063
      %v2472 = vmul.f32 %v2408, 0.00024414063
      %v2473 = vmul.f32 %v2409, 0.00024414063
      %v2474 = vmul.f32 %v2410, 0.00024414063
      %v2475 = vmul.f32 %v2411, 0.00024414063
      %v2476 = vmul.f32 %v2412, 0.00024414063
      %v2477 = vmul.f32 %v2413, 0.00024414063
      %v2478 = vmul.f32 %v2414, 0.00024414063
      %v2479 = vmul.f32 %v2415, 0.00024414063
      %v2480 = vmul.f32 %v2416, 0.00024414063
      %v2481 = vmul.f32 %v2417, 0.00024414063
      %v2482 = vmul.f32 %v2418, 0.00024414063
      %v2483 = vmul.f32 %v2419, 0.00024414063
      %v2484 = vmul.f32 %v2420, 0.00024414063
      %v2485 = vmul.f32 %v2421, 0.00024414063
      %v2486 = vmul.f32 %v2422, 0.00024414063
      %v2487 = vmul.f32 %v2423, 0.00024414063
      %v2488 = vmul.f32 %v2424, 0.00024414063
      %v2489 = vmul.f32 %v2425, 0.00024414063
      %v2490 = vmul.f32 %v2426, 0.00024414063
      %v2491 = vmul.f32 %v2427, 0.00024414063
      %v2492 = vmul.f32 %v2428, 0.00024414063
      %v2493 = vmul.f32 %v2429, 0.00024414063
      %v2494 = vmul.f32 %v2430, 0.00024414063
      %v2495 = vmul.f32 %v2431, 0.00024414063
      %v2496 = vmul.f32 %v2432, 0.00024414063
      %v2497 = vmul.f32 %v2433, 0.00024414063
      %v2498 = vmul.f32 %v2434, 0.00024414063
      %v2499 = vmul.f32 %v2435, 0.00024414063
      %v2500 = vmul.f32 %v2436, 0.00024414063
      %v2501 = vmul.f32 %v2437, 0.00024414063
      %v2502 = vmul.f32 %v2438, 0.00024414063
      %v2503 = vmul.f32 %v2439, 0.00024414063
      %v2504 = vmul.f32 %v2440, 0.00024414063
      %v2505 = vmul.f32 %v2441, 0.00024414063
      %v2506 = vmul.f32 %v2442, 0.00024414063
      %v2507 = vround.ne.pseudo %v2443
      %v2508 = vround.ne.pseudo %v2444
      %v2509 = vround.ne.pseudo %v2445
      %v2510 = vround.ne.pseudo %v2446
      %v2511 = vround.ne.pseudo %v2447
      %v2512 = vround.ne.pseudo %v2448
      %v2513 = vround.ne.pseudo %v2449
      %v2514 = vround.ne.pseudo %v2450
      %v2515 = vround.ne.pseudo %v2451
      %v2516 = vround.ne.pseudo %v2452
      %v2517 = vround.ne.pseudo %v2453
      %v2518 = vround.ne.pseudo %v2454
      %v2519 = vround.ne.pseudo %v2455
      %v2520 = vround.ne.pseudo %v2456
      %v2521 = vround.ne.pseudo %v2457
      %v2522 = vround.ne.pseudo %v2458
      %v2523 = vround.ne.pseudo %v2459
      %v2524 = vround.ne.pseudo %v2460
      %v2525 = vround.ne.pseudo %v2461
      %v2526 = vround.ne.pseudo %v2462
      %v2527 = vround.ne.pseudo %v2463
      %v2528 = vround.ne.pseudo %v2464
      %v2529 = vround.ne.pseudo %v2465
      %v2530 = vround.ne.pseudo %v2466
      %v2531 = vround.ne.pseudo %v2467
      %v2532 = vround.ne.pseudo %v2468
      %v2533 = vround.ne.pseudo %v2469
      %v2534 = vround.ne.pseudo %v2470
      %v2535 = vround.ne.pseudo %v2471
      %v2536 = vround.ne.pseudo %v2472
      %v2537 = vround.ne.pseudo %v2473
      %v2538 = vround.ne.pseudo %v2474
      %v2539 = vround.ne.pseudo %v2475
      %v2540 = vround.ne.pseudo %v2476
      %v2541 = vround.ne.pseudo %v2477
      %v2542 = vround.ne.pseudo %v2478
      %v2543 = vround.ne.pseudo %v2479
      %v2544 = vround.ne.pseudo %v2480
      %v2545 = vround.ne.pseudo %v2481
      %v2546 = vround.ne.pseudo %v2482
      %v2547 = vround.ne.pseudo %v2483
      %v2548 = vround.ne.pseudo %v2484
      %v2549 = vround.ne.pseudo %v2485
      %v2550 = vround.ne.pseudo %v2486
      %v2551 = vround.ne.pseudo %v2487
      %v2552 = vround.ne.pseudo %v2488
      %v2553 = vround.ne.pseudo %v2489
      %v2554 = vround.ne.pseudo %v2490
      %v2555 = vround.ne.pseudo %v2491
      %v2556 = vround.ne.pseudo %v2492
      %v2557 = vround.ne.pseudo %v2493
      %v2558 = vround.ne.pseudo %v2494
      %v2559 = vround.ne.pseudo %v2495
      %v2560 = vround.ne.pseudo %v2496
      %v2561 = vround.ne.pseudo %v2497
      %v2562 = vround.ne.pseudo %v2498
      %v2563 = vround.ne.pseudo %v2499
      %v2564 = vround.ne.pseudo %v2500
      %v2565 = vround.ne.pseudo %v2501
      %v2566 = vround.ne.pseudo %v2502
      %v2567 = vround.ne.pseudo %v2503
      %v2568 = vround.ne.pseudo %v2504
      %v2569 = vround.ne.pseudo %v2505
      %v2570 = vround.ne.pseudo %v2506
      %v2571 = vmax.f32 %v2507, -32768.0
      %v2572 = vmax.f32 %v2508, -32768.0
      %v2573 = vmax.f32 %v2509, -32768.0
      %v2574 = vmax.f32 %v2510, -32768.0
      %v2575 = vmax.f32 %v2511, -32768.0
      %v2576 = vmax.f32 %v2512, -32768.0
      %v2577 = vmax.f32 %v2513, -32768.0
      %v2578 = vmax.f32 %v2514, -32768.0
      %v2579 = vmax.f32 %v2515, -32768.0
      %v2580 = vmax.f32 %v2516, -32768.0
      %v2581 = vmax.f32 %v2517, -32768.0
      %v2582 = vmax.f32 %v2518, -32768.0
      %v2583 = vmax.f32 %v2519, -32768.0
      %v2584 = vmax.f32 %v2520, -32768.0
      %v2585 = vmax.f32 %v2521, -32768.0
      %v2586 = vmax.f32 %v2522, -32768.0
      %v2587 = vmax.f32 %v2523, -32768.0
      %v2588 = vmax.f32 %v2524, -32768.0
      %v2589 = vmax.f32 %v2525, -32768.0
      %v2590 = vmax.f32 %v2526, -32768.0
      %v2591 = vmax.f32 %v2527, -32768.0
      %v2592 = vmax.f32 %v2528, -32768.0
      %v2593 = vmax.f32 %v2529, -32768.0
      %v2594 = vmax.f32 %v2530, -32768.0
      %v2595 = vmax.f32 %v2531, -32768.0
      %v2596 = vmax.f32 %v2532, -32768.0
      %v2597 = vmax.f32 %v2533, -32768.0
      %v2598 = vmax.f32 %v2534, -32768.0
      %v2599 = vmax.f32 %v2535, -32768.0
      %v2600 = vmax.f32 %v2536, -32768.0
      %v2601 = vmax.f32 %v2537, -32768.0
      %v2602 = vmax.f32 %v2538, -32768.0
      %v2603 = vmax.f32 %v2539, -32768.0
      %v2604 = vmax.f32 %v2540, -32768.0
      %v2605 = vmax.f32 %v2541, -32768.0
      %v2606 = vmax.f32 %v2542, -32768.0
      %v2607 = vmax.f32 %v2543, -32768.0
      %v2608 = vmax.f32 %v2544, -32768.0
      %v2609 = vmax.f32 %v2545, -32768.0
      %v2610 = vmax.f32 %v2546, -32768.0
      %v2611 = vmax.f32 %v2547, -32768.0
      %v2612 = vmax.f32 %v2548, -32768.0
      %v2613 = vmax.f32 %v2549, -32768.0
      %v2614 = vmax.f32 %v2550, -32768.0
      %v2615 = vmax.f32 %v2551, -32768.0
      %v2616 = vmax.f32 %v2552, -32768.0
      %v2617 = vmax.f32 %v2553, -32768.0
      %v2618 = vmax.f32 %v2554, -32768.0
      %v2619 = vmax.f32 %v2555, -32768.0
      %v2620 = vmax.f32 %v2556, -32768.0
      %v2621 = vmax.f32 %v2557, -32768.0
      %v2622 = vmax.f32 %v2558, -32768.0
      %v2623 = vmax.f32 %v2559, -32768.0
      %v2624 = vmax.f32 %v2560, -32768.0
      %v2625 = vmax.f32 %v2561, -32768.0
      %v2626 = vmax.f32 %v2562, -32768.0
      %v2627 = vmax.f32 %v2563, -32768.0
      %v2628 = vmax.f32 %v2564, -32768.0
      %v2629 = vmax.f32 %v2565, -32768.0
      %v2630 = vmax.f32 %v2566, -32768.0
      %v2631 = vmax.f32 %v2567, -32768.0
      %v2632 = vmax.f32 %v2568, -32768.0
      %v2633 = vmax.f32 %v2569, -32768.0
      %v2634 = vmax.f32 %v2570, -32768.0
      %v2635 = vmin.f32 %v2571, 32767.0
      %v2636 = vmin.f32 %v2572, 32767.0
      %v2637 = vmin.f32 %v2573, 32767.0
      %v2638 = vmin.f32 %v2574, 32767.0
      %v2639 = vmin.f32 %v2575, 32767.0
      %v2640 = vmin.f32 %v2576, 32767.0
      %v2641 = vmin.f32 %v2577, 32767.0
      %v2642 = vmin.f32 %v2578, 32767.0
      %v2643 = vmin.f32 %v2579, 32767.0
      %v2644 = vmin.f32 %v2580, 32767.0
      %v2645 = vmin.f32 %v2581, 32767.0
      %v2646 = vmin.f32 %v2582, 32767.0
      %v2647 = vmin.f32 %v2583, 32767.0
      %v2648 = vmin.f32 %v2584, 32767.0
      %v2649 = vmin.f32 %v2585, 32767.0
      %v2650 = vmin.f32 %v2586, 32767.0
      %v2651 = vmin.f32 %v2587, 32767.0
      %v2652 = vmin.f32 %v2588, 32767.0
      %v2653 = vmin.f32 %v2589, 32767.0
      %v2654 = vmin.f32 %v2590, 32767.0
      %v2655 = vmin.f32 %v2591, 32767.0
      %v2656 = vmin.f32 %v2592, 32767.0
      %v2657 = vmin.f32 %v2593, 32767.0
      %v2658 = vmin.f32 %v2594, 32767.0
      %v2659 = vmin.f32 %v2595, 32767.0
      %v2660 = vmin.f32 %v2596, 32767.0
      %v2661 = vmin.f32 %v2597, 32767.0
      %v2662 = vmin.f32 %v2598, 32767.0
      %v2663 = vmin.f32 %v2599, 32767.0
      %v2664 = vmin.f32 %v2600, 32767.0
      %v2665 = vmin.f32 %v2601, 32767.0
      %v2666 = vmin.f32 %v2602, 32767.0
      %v2667 = vmin.f32 %v2603, 32767.0
      %v2668 = vmin.f32 %v2604, 32767.0
      %v2669 = vmin.f32 %v2605, 32767.0
      %v2670 = vmin.f32 %v2606, 32767.0
      %v2671 = vmin.f32 %v2607, 32767.0
      %v2672 = vmin.f32 %v2608, 32767.0
      %v2673 = vmin.f32 %v2609, 32767.0
      %v2674 = vmin.f32 %v2610, 32767.0
      %v2675 = vmin.f32 %v2611, 32767.0
      %v2676 = vmin.f32 %v2612, 32767.0
      %v2677 = vmin.f32 %v2613, 32767.0
      %v2678 = vmin.f32 %v2614, 32767.0
      %v2679 = vmin.f32 %v2615, 32767.0
      %v2680 = vmin.f32 %v2616, 32767.0
      %v2681 = vmin.f32 %v2617, 32767.0
      %v2682 = vmin.f32 %v2618, 32767.0
      %v2683 = vmin.f32 %v2619, 32767.0
      %v2684 = vmin.f32 %v2620, 32767.0
      %v2685 = vmin.f32 %v2621, 32767.0
      %v2686 = vmin.f32 %v2622, 32767.0
      %v2687 = vmin.f32 %v2623, 32767.0
      %v2688 = vmin.f32 %v2624, 32767.0
      %v2689 = vmin.f32 %v2625, 32767.0
      %v2690 = vmin.f32 %v2626, 32767.0
      %v2691 = vmin.f32 %v2627, 32767.0
      %v2692 = vmin.f32 %v2628, 32767.0
      %v2693 = vmin.f32 %v2629, 32767.0
      %v2694 = vmin.f32 %v2630, 32767.0
      %v2695 = vmin.f32 %v2631, 32767.0
      %v2696 = vmin.f32 %v2632, 32767.0
      %v2697 = vmin.f32 %v2633, 32767.0
      %v2698 = vmin.f32 %v2634, 32767.0
      %v2699 = vmax.f32 %v2635, -32768.0
      %v2700 = vmax.f32 %v2636, -32768.0
      %v2701 = vmax.f32 %v2637, -32768.0
      %v2702 = vmax.f32 %v2638, -32768.0
      %v2703 = vmax.f32 %v2639, -32768.0
      %v2704 = vmax.f32 %v2640, -32768.0
      %v2705 = vmax.f32 %v2641, -32768.0
      %v2706 = vmax.f32 %v2642, -32768.0
      %v2707 = vmax.f32 %v2643, -32768.0
      %v2708 = vmax.f32 %v2644, -32768.0
      %v2709 = vmax.f32 %v2645, -32768.0
      %v2710 = vmax.f32 %v2646, -32768.0
      %v2711 = vmax.f32 %v2647, -32768.0
      %v2712 = vmax.f32 %v2648, -32768.0
      %v2713 = vmax.f32 %v2649, -32768.0
      %v2714 = vmax.f32 %v2650, -32768.0
      %v2715 = vmax.f32 %v2651, -32768.0
      %v2716 = vmax.f32 %v2652, -32768.0
      %v2717 = vmax.f32 %v2653, -32768.0
      %v2718 = vmax.f32 %v2654, -32768.0
      %v2719 = vmax.f32 %v2655, -32768.0
      %v2720 = vmax.f32 %v2656, -32768.0
      %v2721 = vmax.f32 %v2657, -32768.0
      %v2722 = vmax.f32 %v2658, -32768.0
      %v2723 = vmax.f32 %v2659, -32768.0
      %v2724 = vmax.f32 %v2660, -32768.0
      %v2725 = vmax.f32 %v2661, -32768.0
      %v2726 = vmax.f32 %v2662, -32768.0
      %v2727 = vmax.f32 %v2663, -32768.0
      %v2728 = vmax.f32 %v2664, -32768.0
      %v2729 = vmax.f32 %v2665, -32768.0
      %v2730 = vmax.f32 %v2666, -32768.0
      %v2731 = vmax.f32 %v2667, -32768.0
      %v2732 = vmax.f32 %v2668, -32768.0
      %v2733 = vmax.f32 %v2669, -32768.0
      %v2734 = vmax.f32 %v2670, -32768.0
      %v2735 = vmax.f32 %v2671, -32768.0
      %v2736 = vmax.f32 %v2672, -32768.0
      %v2737 = vmax.f32 %v2673, -32768.0
      %v2738 = vmax.f32 %v2674, -32768.0
      %v2739 = vmax.f32 %v2675, -32768.0
      %v2740 = vmax.f32 %v2676, -32768.0
      %v2741 = vmax.f32 %v2677, -32768.0
      %v2742 = vmax.f32 %v2678, -32768.0
      %v2743 = vmax.f32 %v2679, -32768.0
      %v2744 = vmax.f32 %v2680, -32768.0
      %v2745 = vmax.f32 %v2681, -32768.0
      %v2746 = vmax.f32 %v2682, -32768.0
      %v2747 = vmax.f32 %v2683, -32768.0
      %v2748 = vmax.f32 %v2684, -32768.0
      %v2749 = vmax.f32 %v2685, -32768.0
      %v2750 = vmax.f32 %v2686, -32768.0
      %v2751 = vmax.f32 %v2687, -32768.0
      %v2752 = vmax.f32 %v2688, -32768.0
      %v2753 = vmax.f32 %v2689, -32768.0
      %v2754 = vmax.f32 %v2690, -32768.0
      %v2755 = vmax.f32 %v2691, -32768.0
      %v2756 = vmax.f32 %v2692, -32768.0
      %v2757 = vmax.f32 %v2693, -32768.0
      %v2758 = vmax.f32 %v2694, -32768.0
      %v2759 = vmax.f32 %v2695, -32768.0
      %v2760 = vmax.f32 %v2696, -32768.0
      %v2761 = vmax.f32 %v2697, -32768.0
      %v2762 = vmax.f32 %v2698, -32768.0
      %v2763 = vmin.f32 %v2699, 32767.0
      %v2764 = vmin.f32 %v2700, 32767.0
      %v2765 = vmin.f32 %v2701, 32767.0
      %v2766 = vmin.f32 %v2702, 32767.0
      %v2767 = vmin.f32 %v2703, 32767.0
      %v2768 = vmin.f32 %v2704, 32767.0
      %v2769 = vmin.f32 %v2705, 32767.0
      %v2770 = vmin.f32 %v2706, 32767.0
      %v2771 = vmin.f32 %v2707, 32767.0
      %v2772 = vmin.f32 %v2708, 32767.0
      %v2773 = vmin.f32 %v2709, 32767.0
      %v2774 = vmin.f32 %v2710, 32767.0
      %v2775 = vmin.f32 %v2711, 32767.0
      %v2776 = vmin.f32 %v2712, 32767.0
      %v2777 = vmin.f32 %v2713, 32767.0
      %v2778 = vmin.f32 %v2714, 32767.0
      %v2779 = vmin.f32 %v2715, 32767.0
      %v2780 = vmin.f32 %v2716, 32767.0
      %v2781 = vmin.f32 %v2717, 32767.0
      %v2782 = vmin.f32 %v2718, 32767.0
      %v2783 = vmin.f32 %v2719, 32767.0
      %v2784 = vmin.f32 %v2720, 32767.0
      %v2785 = vmin.f32 %v2721, 32767.0
      %v2786 = vmin.f32 %v2722, 32767.0
      %v2787 = vmin.f32 %v2723, 32767.0
      %v2788 = vmin.f32 %v2724, 32767.0
      %v2789 = vmin.f32 %v2725, 32767.0
      %v2790 = vmin.f32 %v2726, 32767.0
      %v2791 = vmin.f32 %v2727, 32767.0
      %v2792 = vmin.f32 %v2728, 32767.0
      %v2793 = vmin.f32 %v2729, 32767.0
      %v2794 = vmin.f32 %v2730, 32767.0
      %v2795 = vmin.f32 %v2731, 32767.0
      %v2796 = vmin.f32 %v2732, 32767.0
      %v2797 = vmin.f32 %v2733, 32767.0
      %v2798 = vmin.f32 %v2734, 32767.0
      %v2799 = vmin.f32 %v2735, 32767.0
      %v2800 = vmin.f32 %v2736, 32767.0
      %v2801 = vmin.f32 %v2737, 32767.0
      %v2802 = vmin.f32 %v2738, 32767.0
      %v2803 = vmin.f32 %v2739, 32767.0
      %v2804 = vmin.f32 %v2740, 32767.0
      %v2805 = vmin.f32 %v2741, 32767.0
      %v2806 = vmin.f32 %v2742, 32767.0
      %v2807 = vmin.f32 %v2743, 32767.0
      %v2808 = vmin.f32 %v2744, 32767.0
      %v2809 = vmin.f32 %v2745, 32767.0
      %v2810 = vmin.f32 %v2746, 32767.0
      %v2811 = vmin.f32 %v2747, 32767.0
      %v2812 = vmin.f32 %v2748, 32767.0
      %v2813 = vmin.f32 %v2749, 32767.0
      %v2814 = vmin.f32 %v2750, 32767.0
      %v2815 = vmin.f32 %v2751, 32767.0
      %v2816 = vmin.f32 %v2752, 32767.0
      %v2817 = vmin.f32 %v2753, 32767.0
      %v2818 = vmin.f32 %v2754, 32767.0
      %v2819 = vmin.f32 %v2755, 32767.0
      %v2820 = vmin.f32 %v2756, 32767.0
      %v2821 = vmin.f32 %v2757, 32767.0
      %v2822 = vmin.f32 %v2758, 32767.0
      %v2823 = vmin.f32 %v2759, 32767.0
      %v2824 = vmin.f32 %v2760, 32767.0
      %v2825 = vmin.f32 %v2761, 32767.0
      %v2826 = vmin.f32 %v2762, 32767.0
      %v2827 = vcvt.f32.s32.to.zero.pseudo %v2763
      %v2828 = vcvt.f32.s32.to.zero.pseudo %v2764
      %v2829 = vcvt.f32.s32.to.zero.pseudo %v2765
      %v2830 = vcvt.f32.s32.to.zero.pseudo %v2766
      %v2831 = vcvt.f32.s32.to.zero.pseudo %v2767
      %v2832 = vcvt.f32.s32.to.zero.pseudo %v2768
      %v2833 = vcvt.f32.s32.to.zero.pseudo %v2769
      %v2834 = vcvt.f32.s32.to.zero.pseudo %v2770
      %v2835 = vcvt.f32.s32.to.zero.pseudo %v2771
      %v2836 = vcvt.f32.s32.to.zero.pseudo %v2772
      %v2837 = vcvt.f32.s32.to.zero.pseudo %v2773
      %v2838 = vcvt.f32.s32.to.zero.pseudo %v2774
      %v2839 = vcvt.f32.s32.to.zero.pseudo %v2775
      %v2840 = vcvt.f32.s32.to.zero.pseudo %v2776
      %v2841 = vcvt.f32.s32.to.zero.pseudo %v2777
      %v2842 = vcvt.f32.s32.to.zero.pseudo %v2778
      %v2843 = vcvt.f32.s32.to.zero.pseudo %v2779
      %v2844 = vcvt.f32.s32.to.zero.pseudo %v2780
      %v2845 = vcvt.f32.s32.to.zero.pseudo %v2781
      %v2846 = vcvt.f32.s32.to.zero.pseudo %v2782
      %v2847 = vcvt.f32.s32.to.zero.pseudo %v2783
      %v2848 = vcvt.f32.s32.to.zero.pseudo %v2784
      %v2849 = vcvt.f32.s32.to.zero.pseudo %v2785
      %v2850 = vcvt.f32.s32.to.zero.pseudo %v2786
      %v2851 = vcvt.f32.s32.to.zero.pseudo %v2787
      %v2852 = vcvt.f32.s32.to.zero.pseudo %v2788
      %v2853 = vcvt.f32.s32.to.zero.pseudo %v2789
      %v2854 = vcvt.f32.s32.to.zero.pseudo %v2790
      %v2855 = vcvt.f32.s32.to.zero.pseudo %v2791
      %v2856 = vcvt.f32.s32.to.zero.pseudo %v2792
      %v2857 = vcvt.f32.s32.to.zero.pseudo %v2793
      %v2858 = vcvt.f32.s32.to.zero.pseudo %v2794
      %v2859 = vcvt.f32.s32.to.zero.pseudo %v2795
      %v2860 = vcvt.f32.s32.to.zero.pseudo %v2796
      %v2861 = vcvt.f32.s32.to.zero.pseudo %v2797
      %v2862 = vcvt.f32.s32.to.zero.pseudo %v2798
      %v2863 = vcvt.f32.s32.to.zero.pseudo %v2799
      %v2864 = vcvt.f32.s32.to.zero.pseudo %v2800
      %v2865 = vcvt.f32.s32.to.zero.pseudo %v2801
      %v2866 = vcvt.f32.s32.to.zero.pseudo %v2802
      %v2867 = vcvt.f32.s32.to.zero.pseudo %v2803
      %v2868 = vcvt.f32.s32.to.zero.pseudo %v2804
      %v2869 = vcvt.f32.s32.to.zero.pseudo %v2805
      %v2870 = vcvt.f32.s32.to.zero.pseudo %v2806
      %v2871 = vcvt.f32.s32.to.zero.pseudo %v2807
      %v2872 = vcvt.f32.s32.to.zero.pseudo %v2808
      %v2873 = vcvt.f32.s32.to.zero.pseudo %v2809
      %v2874 = vcvt.f32.s32.to.zero.pseudo %v2810
      %v2875 = vcvt.f32.s32.to.zero.pseudo %v2811
      %v2876 = vcvt.f32.s32.to.zero.pseudo %v2812
      %v2877 = vcvt.f32.s32.to.zero.pseudo %v2813
      %v2878 = vcvt.f32.s32.to.zero.pseudo %v2814
      %v2879 = vcvt.f32.s32.to.zero.pseudo %v2815
      %v2880 = vcvt.f32.s32.to.zero.pseudo %v2816
      %v2881 = vcvt.f32.s32.to.zero.pseudo %v2817
      %v2882 = vcvt.f32.s32.to.zero.pseudo %v2818
      %v2883 = vcvt.f32.s32.to.zero.pseudo %v2819
      %v2884 = vcvt.f32.s32.to.zero.pseudo %v2820
      %v2885 = vcvt.f32.s32.to.zero.pseudo %v2821
      %v2886 = vcvt.f32.s32.to.zero.pseudo %v2822
      %v2887 = vcvt.f32.s32.to.zero.pseudo %v2823
      %v2888 = vcvt.f32.s32.to.zero.pseudo %v2824
      %v2889 = vcvt.f32.s32.to.zero.pseudo %v2825
      %v2890 = vcvt.f32.s32.to.zero.pseudo %v2826
      %v2891 = vpack.c.b16 %v2827, %v2827
      %v2892 = vpack.c.b16 %v2828, %v2828
      %v2893 = vpack.c.b16 %v2829, %v2829
      %v2894 = vpack.c.b16 %v2830, %v2830
      %v2895 = vpack.c.b16 %v2831, %v2831
      %v2896 = vpack.c.b16 %v2832, %v2832
      %v2897 = vpack.c.b16 %v2833, %v2833
      %v2898 = vpack.c.b16 %v2834, %v2834
      %v2899 = vpack.c.b16 %v2835, %v2835
      %v2900 = vpack.c.b16 %v2836, %v2836
      %v2901 = vpack.c.b16 %v2837, %v2837
      %v2902 = vpack.c.b16 %v2838, %v2838
      %v2903 = vpack.c.b16 %v2839, %v2839
      %v2904 = vpack.c.b16 %v2840, %v2840
      %v2905 = vpack.c.b16 %v2841, %v2841
      %v2906 = vpack.c.b16 %v2842, %v2842
      %v2907 = vpack.c.b16 %v2843, %v2843
      %v2908 = vpack.c.b16 %v2844, %v2844
      %v2909 = vpack.c.b16 %v2845, %v2845
      %v2910 = vpack.c.b16 %v2846, %v2846
      %v2911 = vpack.c.b16 %v2847, %v2847
      %v2912 = vpack.c.b16 %v2848, %v2848
      %v2913 = vpack.c.b16 %v2849, %v2849
      %v2914 = vpack.c.b16 %v2850, %v2850
      %v2915 = vpack.c.b16 %v2851, %v2851
      %v2916 = vpack.c.b16 %v2852, %v2852
      %v2917 = vpack.c.b16 %v2853, %v2853
      %v2918 = vpack.c.b16 %v2854, %v2854
      %v2919 = vpack.c.b16 %v2855, %v2855
      %v2920 = vpack.c.b16 %v2856, %v2856
      %v2921 = vpack.c.b16 %v2857, %v2857
      %v2922 = vpack.c.b16 %v2858, %v2858
      %v2923 = vpack.c.b16 %v2859, %v2859
      %v2924 = vpack.c.b16 %v2860, %v2860
      %v2925 = vpack.c.b16 %v2861, %v2861
      %v2926 = vpack.c.b16 %v2862, %v2862
      %v2927 = vpack.c.b16 %v2863, %v2863
      %v2928 = vpack.c.b16 %v2864, %v2864
      %v2929 = vpack.c.b16 %v2865, %v2865
      %v2930 = vpack.c.b16 %v2866, %v2866
      %v2931 = vpack.c.b16 %v2867, %v2867
      %v2932 = vpack.c.b16 %v2868, %v2868
      %v2933 = vpack.c.b16 %v2869, %v2869
      %v2934 = vpack.c.b16 %v2870, %v2870
      %v2935 = vpack.c.b16 %v2871, %v2871
      %v2936 = vpack.c.b16 %v2872, %v2872
      %v2937 = vpack.c.b16 %v2873, %v2873
      %v2938 = vpack.c.b16 %v2874, %v2874
      %v2939 = vpack.c.b16 %v2875, %v2875
      %v2940 = vpack.c.b16 %v2876, %v2876
      %v2941 = vpack.c.b16 %v2877, %v2877
      %v2942 = vpack.c.b16 %v2878, %v2878
      %v2943 = vpack.c.b16 %v2879, %v2879
      %v2944 = vpack.c.b16 %v2880, %v2880
      %v2945 = vpack.c.b16 %v2881, %v2881
      %v2946 = vpack.c.b16 %v2882, %v2882
      %v2947 = vpack.c.b16 %v2883, %v2883
      %v2948 = vpack.c.b16 %v2884, %v2884
      %v2949 = vpack.c.b16 %v2885, %v2885
      %v2950 = vpack.c.b16 %v2886, %v2886
      %v2951 = vpack.c.b16 %v2887, %v2887
      %v2952 = vpack.c.b16 %v2888, %v2888
      %v2953 = vpack.c.b16 %v2889, %v2889
      %v2954 = vpack.c.b16 %v2890, %v2890
      %2955 = vst [vmem:[#allocation9] sm:$0xf] %v2891
      %2956 = vst [vmem:[#allocation9 + $0x4] sm:$0xf] %v2892
      %2957 = vst [vmem:[#allocation9 + $0x8] sm:$0xf] %v2893
      %2958 = vst [vmem:[#allocation9 + $0xc] sm:$0xf] %v2894
      %2959 = vst [vmem:[#allocation9 + $0x10] sm:$0xf] %v2895
      %2960 = vst [vmem:[#allocation9 + $0x14] sm:$0xf] %v2896
      %2961 = vst [vmem:[#allocation9 + $0x18] sm:$0xf] %v2897
      %2962 = vst [vmem:[#allocation9 + $0x1c] sm:$0xf] %v2898
      %2963 = vst [vmem:[#allocation9 + $0x20] sm:$0xf] %v2899
      %2964 = vst [vmem:[#allocation9 + $0x24] sm:$0xf] %v2900
      %2965 = vst [vmem:[#allocation9 + $0x28] sm:$0xf] %v2901
      %2966 = vst [vmem:[#allocation9 + $0x2c] sm:$0xf] %v2902
      %2967 = vst [vmem:[#allocation9 + $0x30] sm:$0xf] %v2903
      %2968 = vst [vmem:[#allocation9 + $0x34] sm:$0xf] %v2904
      %2969 = vst [vmem:[#allocation9 + $0x38] sm:$0xf] %v2905
      %2970 = vst [vmem:[#allocation9 + $0x3c] sm:$0xf] %v2906
      %2971 = vst [vmem:[#allocation9 + $0x40] sm:$0xf] %v2907
      %2972 = vst [vmem:[#allocation9 + $0x44] sm:$0xf] %v2908
      %2973 = vst [vmem:[#allocation9 + $0x48] sm:$0xf] %v2909
      %2974 = vst [vmem:[#allocation9 + $0x4c] sm:$0xf] %v2910
      %2975 = vst [vmem:[#allocation9 + $0x50] sm:$0xf] %v2911
      %2976 = vst [vmem:[#allocation9 + $0x54] sm:$0xf] %v2912
      %2977 = vst [vmem:[#allocation9 + $0x58] sm:$0xf] %v2913
      %2978 = vst [vmem:[#allocation9 + $0x5c] sm:$0xf] %v2914
      %2979 = vst [vmem:[#allocation9 + $0x60] sm:$0xf] %v2915
      %2980 = vst [vmem:[#allocation9 + $0x64] sm:$0xf] %v2916
      %2981 = vst [vmem:[#allocation9 + $0x68] sm:$0xf] %v2917
      %2982 = vst [vmem:[#allocation9 + $0x6c] sm:$0xf] %v2918
      %2983 = vst [vmem:[#allocation9 + $0x70] sm:$0xf] %v2919
      %2984 = vst [vmem:[#allocation9 + $0x74] sm:$0xf] %v2920
      %2985 = vst [vmem:[#allocation9 + $0x78] sm:$0xf] %v2921
      %2986 = vst [vmem:[#allocation9 + $0x7c] sm:$0xf] %v2922
      %2987 = vst [vmem:[#allocation9 + $0x80] sm:$0xf] %v2923
      %2988 = vst [vmem:[#allocation9 + $0x84] sm:$0xf] %v2924
      %2989 = vst [vmem:[#allocation9 + $0x88] sm:$0xf] %v2925
      %2990 = vst [vmem:[#allocation9 + $0x8c] sm:$0xf] %v2926
      %2991 = vst [vmem:[#allocation9 + $0x90] sm:$0xf] %v2927
      %2992 = vst [vmem:[#allocation9 + $0x94] sm:$0xf] %v2928
      %2993 = vst [vmem:[#allocation9 + $0x98] sm:$0xf] %v2929
      %2994 = vst [vmem:[#allocation9 + $0x9c] sm:$0xf] %v2930
      %2995 = vst [vmem:[#allocation9 + $0xa0] sm:$0xf] %v2931
      %2996 = vst [vmem:[#allocation9 + $0xa4] sm:$0xf] %v2932
      %2997 = vst [vmem:[#allocation9 + $0xa8] sm:$0xf] %v2933
      %2998 = vst [vmem:[#allocation9 + $0xac] sm:$0xf] %v2934
      %2999 = vst [vmem:[#allocation9 + $0xb0] sm:$0xf] %v2935
      %3000 = vst [vmem:[#allocation9 + $0xb4] sm:$0xf] %v2936
      %3001 = vst [vmem:[#allocation9 + $0xb8] sm:$0xf] %v2937
      %3002 = vst [vmem:[#allocation9 + $0xbc] sm:$0xf] %v2938
      %3003 = vst [vmem:[#allocation9 + $0xc0] sm:$0xf] %v2939
      %3004 = vst [vmem:[#allocation9 + $0xc4] sm:$0xf] %v2940
      %3005 = vst [vmem:[#allocation9 + $0xc8] sm:$0xf] %v2941
      %3006 = vst [vmem:[#allocation9 + $0xcc] sm:$0xf] %v2942
      %3007 = vst [vmem:[#allocation9 + $0xd0] sm:$0xf] %v2943
      %3008 = vst [vmem:[#allocation9 + $0xd4] sm:$0xf] %v2944
      %3009 = vst [vmem:[#allocation9 + $0xd8] sm:$0xf] %v2945
      %3010 = vst [vmem:[#allocation9 + $0xdc] sm:$0xf] %v2946
      %3011 = vst [vmem:[#allocation9 + $0xe0] sm:$0xf] %v2947
      %3012 = vst [vmem:[#allocation9 + $0xe4] sm:$0xf] %v2948
      %3013 = vst [vmem:[#allocation9 + $0xe8] sm:$0xf] %v2949
      %3014 = vst [vmem:[#allocation9 + $0xec] sm:$0xf] %v2950
      %3015 = vst [vmem:[#allocation9 + $0xf0] sm:$0xf] %v2951
      %3016 = vst [vmem:[#allocation9 + $0xf4] sm:$0xf] %v2952
      %3017 = vst [vmem:[#allocation9 + $0xf8] sm:$0xf] %v2953
      %3018 = vst [vmem:[#allocation9 + $0xfc] sm:$0xf] %v2954
    $region33: #{tpu_custom_call.1} parent=1 // pred_fallthru
      _
    // Predicated region
    $region34: #{tpu_custom_call.1} parent=1 // pred_check
      _
    $region35: #{tpu_custom_call.1} parent=1 // pred_check_branch
      %3020 = sbr.rel (0) target = $region37
    $region36: #{tpu_custom_call.1} parent=1 // pred_region
      %s3022 = ssub.s32 4096, 4096
      %3023 = vsyncadd [#allocation5], %s3022
      %s3024 = sshll.u32 [#allocation9], 4
      %s3025 = int_to_ptr.vmem [resolvable:$true] %s3024
      %3030 = dma.vmem_to_hbm [thread:$0]  %s3025, 4096, %s3, [#allocation5], 64, 64, 4
    $region37: #{tpu_custom_call.1} parent=1 // pred_fallthru
      _
    // Predicated region
    $region38: #{tpu_custom_call.1} parent=1 // pred_check
      _
    $region39: #{tpu_custom_call.1} parent=1 // pred_check_branch
      %3032 = sbr.rel (0) target = $region41
    $region40: #{tpu_custom_call.1} parent=1 // pred_region
      %3033 = dma.done [#allocation5], 4096
    $region41: #{tpu_custom_call.1} parent=1 // pred_fallthru
      _
    %3034 = vsyncpa [#allocation4], 1
    %3035 = vsyncpa [#allocation7], 1
    %3036 = vsyncpa [#allocation5], 1

</llo_original>
